<compile_context>
chip_gen: v5e
topology: v5e:2x2
jax: 0.10.0
libtpu: 0.0.40
codegen_flags: <defaults>
</compile_context>

<pallas_src>
import functools

import jax
import jax.numpy as jnp
from jax.experimental import pallas as pl
from jax.experimental.pallas import tpu as pltpu


def capsnet_kernel(win_ref, w_ref, b_ref, rw_ref, out_ref, pri_ref, *,
                   B, HW, K, NP, CO, NR, D, J, iters):
    # win_ref: (K, B*HW)    lane-dense im2col windows, col = b*HW + h*W + w
    # w_ref:   (NP, CO*K)   conv weights, col = o*K + k
    # b_ref:   (NP, CO)     conv biases
    # rw_ref:  (J*NP*D, NR) route weights, row = j*NP*D + c*D + d, lanes = route nodes
    # out_ref: (B, J)       softmaxed class scores
    # pri_ref: (J*B*D, NR)  VMEM scratch for stacked priors, block p = j*B + b
    win = win_ref[...]
    w = w_ref[...]
    bias = b_ref[...]

    # ---- primary-capsule 1-D conv: CO*K broadcast FMAs on the VPU ------------
    conv = []
    for o in range(CO):
        acc = w[:, o * K:o * K + 1] * win[0:1, :]
        for k in range(1, K):
            acc = acc + w[:, o * K + k:o * K + k + 1] * win[k:k + 1, :]
        conv.append(acc + bias[:, o:o + 1])                    # (NP, B*HW)

    # rearrange to the torch .view/.cat flattening order: col = b*NR + o*HW + hw
    pieces = []
    for b in range(B):
        for o in range(CO):
            pieces.append(conv[o][:, b * HW:(b + 1) * HW])     # (NP, HW), lane-aligned
    u = jnp.concatenate(pieces, axis=1)                        # (NP, B*NR)

    # ---- BatchNorm1d(NP), training-mode batch stats, then LeakyReLU ----------
    mean = jnp.mean(u, axis=1, keepdims=True)
    cen = u - mean
    var = jnp.mean(cen * cen, axis=1, keepdims=True)
    u = cen * jax.lax.rsqrt(var + 1e-5)
    u = jnp.where(u >= 0.0, u, 0.01 * u)

    # ---- squash over the capsule (row) dimension ------------------------------
    sq = jnp.sum(u * u, axis=0, keepdims=True)                 # (1, B*NR)
    u = u * (sq * jax.lax.rsqrt(sq) * pl.reciprocal(1.0 + sq, approx=True))

    # ---- priors[p=j*B+b][d, n] = sum_c u[c, b*NR+n] * rw[j, c, d, n] ----------
    CD = NP * D
    for j in range(J):
        pri = [jnp.zeros((D, NR), jnp.float32) for _ in range(B)]
        for c in range(NP):
            rwb = rw_ref[pl.ds(j * CD + c * D, D), :]          # (D, NR), loaded once per (j,c)
            for b in range(B):
                pri[b] = pri[b] + rwb * u[c:c + 1, b * NR:(b + 1) * NR]
        for b in range(B):
            pri_ref[pl.ds((j * B + b) * D, D), :] = pri[b]

    # ---- dynamic routing, softmax vectorized across the J*B pairs -------------
    logits = jnp.zeros((J * B, NR), jnp.float32)
    norms = [None] * (J * B)
    inv_nr = 1.0 / NR
    probs = None
    for it in range(iters):
        last = it == iters - 1
        if it > 0:
            m = jnp.max(logits, axis=1, keepdims=True)
            e = jnp.exp(logits - m)
            probs = e * pl.reciprocal(jnp.sum(e, axis=1, keepdims=True), approx=True)
        deltas = []
        for p in range(J * B):
            pri_p = pri_ref[pl.ds(p * D, D), :]                        # (D, NR)
            if it == 0:
                # logits are all zero -> softmax is exactly uniform 1/NR
                s = jnp.sum(pri_p, axis=1, keepdims=True) * inv_nr     # (D, 1)
            else:
                s = jnp.sum(probs[p:p + 1, :] * pri_p, axis=1, keepdims=True)
            ssq = jnp.sum(s * s, axis=0, keepdims=True)                # (1, 1)
            v = s * (ssq * jax.lax.rsqrt(ssq)
                     * pl.reciprocal(1.0 + ssq, approx=True))          # squash over D
            if last:
                norms[p] = jnp.sqrt(jnp.sum(v * v, axis=0, keepdims=True))  # (1, 1)
            else:
                deltas.append(jnp.sum(pri_p * v, axis=0, keepdims=True))    # (1, NR)
        if not last:
            logits = logits + jnp.concatenate(deltas, axis=0)

    # ---- class lengths -> final softmax over classes (kept exact) -------------
    rows = [jnp.concatenate([norms[j * B + b] for j in range(J)], axis=1)
            for b in range(B)]
    cls = jnp.concatenate(rows, axis=0)                        # (B, J)
    m = jnp.max(cls, axis=1, keepdims=True)
    e = jnp.exp(cls - m)
    out_ref[...] = e / jnp.sum(e, axis=1, keepdims=True)


# --------------------------------- wrapper -----------------------------------
def init_params(key, out_num_capsules=2, num_primary=8, conv_out=2, ksize=9,
                num_route_nodes=512, in_ch_cls=8, out_ch_cls=16):
    """Deterministic synthetic parameters matching the module's shapes."""
    k1, k2, k3 = jax.random.split(key, 3)
    conv_w = 0.2 * jax.random.normal(k1, (num_primary, conv_out, ksize), jnp.float32)
    conv_b = 0.1 * jax.random.normal(k2, (num_primary, conv_out), jnp.float32)
    route_w = jax.random.normal(
        k3, (out_num_capsules, num_route_nodes, in_ch_cls, out_ch_cls), jnp.float32)
    return conv_w, conv_b, route_w


def prepare_route_weights(route_w):
    # (J, NR, C, D) -> (J, C, D, NR): done ONCE at init so the 512 KiB transpose is
    # not paid per forward and the kernel sees a contiguous lane-major (NR on lanes) array.
    return jnp.transpose(route_w, (0, 2, 3, 1))


@jax.jit
def capsule_net_forward(x, conv_w, conv_b, rw_t):
    B, cin, H, W = x.shape
    assert cin == 1
    NP, CO, K = conv_w.shape              # 8 primary capsules, 2 out channels, kernel 9
    J, C, D, NR = rw_t.shape              # 2 class capsules, 8, 16, 512 route nodes
    assert C == NP and NR == CO * H * W
    pad = (K - 1) // 2
    HW = H * W

    # lane-dense im2col (glue): windows[k, b*HW + h*W + w] = x_padded[b, h, w + k]
    xpad = jnp.pad(x[:, 0], ((0, 0), (0, 0), (pad, pad)))
    windows = jnp.stack([xpad[:, :, k:k + W].reshape(B * HW) for k in range(K)], axis=0)

    kernel = functools.partial(capsnet_kernel, B=B, HW=HW, K=K, NP=NP, CO=CO,
                               NR=NR, D=D, J=J, iters=3)
    return pl.pallas_call(
        kernel,
        out_shape=jax.ShapeDtypeStruct((B, J), jnp.float32),
        in_specs=[pl.BlockSpec(memory_space=pltpu.MemorySpace.VMEM)] * 4,
        out_specs=pl.BlockSpec(memory_space=pltpu.MemorySpace.VMEM),
        scratch_shapes=[pltpu.VMEM((J * B * D, NR), jnp.float32)],
    )(windows, conv_w.reshape(NP, CO * K), conv_b, rw_t.reshape(J * C * D, NR))


if __name__ == "__main__":
    key = jax.random.PRNGKey(0)
    kx, kp = jax.random.split(key)
    B, H, W = 2, 16, 16                   # 2*H*W = 512 route nodes (as in the module)
    x = jax.random.normal(kx, (B, 1, H, W), jnp.float32)
    conv_w, conv_b, route_w = init_params(kp)
    rw_t = prepare_route_weights(route_w)  # one-time param prep, outside the jitted forward

    out = capsule_net_forward(x, conv_w, conv_b, rw_t)
    out = jax.block_until_ready(out)

    assert out.shape == (B, 2)
    assert bool(jnp.all(jnp.isfinite(out)))
    assert bool(jnp.allclose(jnp.sum(out, axis=-1), 1.0, atol=1e-5))
    print("KERNEL_OK")
</pallas_src>

<mosaic_0001>
module attributes {stable_mosaic.version = 11 : i64} {
  func.func @capsnet_kernel(%arg0: memref<9x512xf32, #tpu.memory_space<vmem>>, %arg1: memref<8x18xf32, #tpu.memory_space<vmem>>, %arg2: memref<8x2xf32, #tpu.memory_space<vmem>>, %arg3: memref<256x512xf32, #tpu.memory_space<vmem>>, %arg4: memref<2x2xf32, #tpu.memory_space<vmem>>, %arg5: memref<64x512xf32, #tpu.memory_space<vmem>>) attributes {dimension_semantics = [], scalar_prefetch = 0 : i64, scratch_operands = 1 : i64, tpu.core_type = #tpu.core_type<tc>} {
    %c0 = arith.constant 0 : index
    %c0_0 = arith.constant 0 : index
    %0 = vector.load %arg0[%c0, %c0_0] : memref<9x512xf32, #tpu.memory_space<vmem>>, vector<9x512xf32>
    %c0_1 = arith.constant 0 : index
    %c0_2 = arith.constant 0 : index
    %1 = vector.load %arg1[%c0_1, %c0_2] : memref<8x18xf32, #tpu.memory_space<vmem>>, vector<8x18xf32>
    %c0_3 = arith.constant 0 : index
    %c0_4 = arith.constant 0 : index
    %2 = vector.load %arg2[%c0_3, %c0_4] : memref<8x2xf32, #tpu.memory_space<vmem>>, vector<8x2xf32>
    %3 = vector.extract_strided_slice %1 {offsets = [0, 0], sizes = [8, 1], strides = [1, 1]} : vector<8x18xf32> to vector<8x1xf32>
    %4 = vector.extract_strided_slice %0 {offsets = [0, 0], sizes = [1, 512], strides = [1, 1]} : vector<9x512xf32> to vector<1x512xf32>
    %5 = vector.broadcast %3 : vector<8x1xf32> to vector<8x512xf32>
    %6 = vector.broadcast %4 : vector<1x512xf32> to vector<8x512xf32>
    %7 = arith.mulf %5, %6 : vector<8x512xf32>
    %8 = vector.extract_strided_slice %1 {offsets = [0, 1], sizes = [8, 1], strides = [1, 1]} : vector<8x18xf32> to vector<8x1xf32>
    %9 = vector.extract_strided_slice %0 {offsets = [1, 0], sizes = [1, 512], strides = [1, 1]} : vector<9x512xf32> to vector<1x512xf32>
    %10 = vector.broadcast %8 : vector<8x1xf32> to vector<8x512xf32>
    %11 = vector.broadcast %9 : vector<1x512xf32> to vector<8x512xf32>
    %12 = arith.mulf %10, %11 : vector<8x512xf32>
    %13 = arith.addf %7, %12 : vector<8x512xf32>
    %14 = vector.extract_strided_slice %1 {offsets = [0, 2], sizes = [8, 1], strides = [1, 1]} : vector<8x18xf32> to vector<8x1xf32>
    %15 = vector.extract_strided_slice %0 {offsets = [2, 0], sizes = [1, 512], strides = [1, 1]} : vector<9x512xf32> to vector<1x512xf32>
    %16 = vector.broadcast %14 : vector<8x1xf32> to vector<8x512xf32>
    %17 = vector.broadcast %15 : vector<1x512xf32> to vector<8x512xf32>
    %18 = arith.mulf %16, %17 : vector<8x512xf32>
    %19 = arith.addf %13, %18 : vector<8x512xf32>
    %20 = vector.extract_strided_slice %1 {offsets = [0, 3], sizes = [8, 1], strides = [1, 1]} : vector<8x18xf32> to vector<8x1xf32>
    %21 = vector.extract_strided_slice %0 {offsets = [3, 0], sizes = [1, 512], strides = [1, 1]} : vector<9x512xf32> to vector<1x512xf32>
    %22 = vector.broadcast %20 : vector<8x1xf32> to vector<8x512xf32>
    %23 = vector.broadcast %21 : vector<1x512xf32> to vector<8x512xf32>
    %24 = arith.mulf %22, %23 : vector<8x512xf32>
    %25 = arith.addf %19, %24 : vector<8x512xf32>
    %26 = vector.extract_strided_slice %1 {offsets = [0, 4], sizes = [8, 1], strides = [1, 1]} : vector<8x18xf32> to vector<8x1xf32>
    %27 = vector.extract_strided_slice %0 {offsets = [4, 0], sizes = [1, 512], strides = [1, 1]} : vector<9x512xf32> to vector<1x512xf32>
    %28 = vector.broadcast %26 : vector<8x1xf32> to vector<8x512xf32>
    %29 = vector.broadcast %27 : vector<1x512xf32> to vector<8x512xf32>
    %30 = arith.mulf %28, %29 : vector<8x512xf32>
    %31 = arith.addf %25, %30 : vector<8x512xf32>
    %32 = vector.extract_strided_slice %1 {offsets = [0, 5], sizes = [8, 1], strides = [1, 1]} : vector<8x18xf32> to vector<8x1xf32>
    %33 = vector.extract_strided_slice %0 {offsets = [5, 0], sizes = [1, 512], strides = [1, 1]} : vector<9x512xf32> to vector<1x512xf32>
    %34 = vector.broadcast %32 : vector<8x1xf32> to vector<8x512xf32>
    %35 = vector.broadcast %33 : vector<1x512xf32> to vector<8x512xf32>
    %36 = arith.mulf %34, %35 : vector<8x512xf32>
    %37 = arith.addf %31, %36 : vector<8x512xf32>
    %38 = vector.extract_strided_slice %1 {offsets = [0, 6], sizes = [8, 1], strides = [1, 1]} : vector<8x18xf32> to vector<8x1xf32>
    %39 = vector.extract_strided_slice %0 {offsets = [6, 0], sizes = [1, 512], strides = [1, 1]} : vector<9x512xf32> to vector<1x512xf32>
    %40 = vector.broadcast %38 : vector<8x1xf32> to vector<8x512xf32>
    %41 = vector.broadcast %39 : vector<1x512xf32> to vector<8x512xf32>
    %42 = arith.mulf %40, %41 : vector<8x512xf32>
    %43 = arith.addf %37, %42 : vector<8x512xf32>
    %44 = vector.extract_strided_slice %1 {offsets = [0, 7], sizes = [8, 1], strides = [1, 1]} : vector<8x18xf32> to vector<8x1xf32>
    %45 = vector.extract_strided_slice %0 {offsets = [7, 0], sizes = [1, 512], strides = [1, 1]} : vector<9x512xf32> to vector<1x512xf32>
    %46 = vector.broadcast %44 : vector<8x1xf32> to vector<8x512xf32>
    %47 = vector.broadcast %45 : vector<1x512xf32> to vector<8x512xf32>
    %48 = arith.mulf %46, %47 : vector<8x512xf32>
    %49 = arith.addf %43, %48 : vector<8x512xf32>
    %50 = vector.extract_strided_slice %1 {offsets = [0, 8], sizes = [8, 1], strides = [1, 1]} : vector<8x18xf32> to vector<8x1xf32>
    %51 = vector.extract_strided_slice %0 {offsets = [8, 0], sizes = [1, 512], strides = [1, 1]} : vector<9x512xf32> to vector<1x512xf32>
    %52 = vector.broadcast %50 : vector<8x1xf32> to vector<8x512xf32>
    %53 = vector.broadcast %51 : vector<1x512xf32> to vector<8x512xf32>
    %54 = arith.mulf %52, %53 : vector<8x512xf32>
    %55 = arith.addf %49, %54 : vector<8x512xf32>
    %56 = vector.extract_strided_slice %2 {offsets = [0, 0], sizes = [8, 1], strides = [1, 1]} : vector<8x2xf32> to vector<8x1xf32>
    %57 = vector.broadcast %56 : vector<8x1xf32> to vector<8x512xf32>
    %58 = arith.addf %55, %57 : vector<8x512xf32>
    %59 = vector.extract_strided_slice %1 {offsets = [0, 9], sizes = [8, 1], strides = [1, 1]} : vector<8x18xf32> to vector<8x1xf32>
    %60 = vector.extract_strided_slice %0 {offsets = [0, 0], sizes = [1, 512], strides = [1, 1]} : vector<9x512xf32> to vector<1x512xf32>
    %61 = vector.broadcast %59 : vector<8x1xf32> to vector<8x512xf32>
    %62 = vector.broadcast %60 : vector<1x512xf32> to vector<8x512xf32>
    %63 = arith.mulf %61, %62 : vector<8x512xf32>
    %64 = vector.extract_strided_slice %1 {offsets = [0, 10], sizes = [8, 1], strides = [1, 1]} : vector<8x18xf32> to vector<8x1xf32>
    %65 = vector.extract_strided_slice %0 {offsets = [1, 0], sizes = [1, 512], strides = [1, 1]} : vector<9x512xf32> to vector<1x512xf32>
    %66 = vector.broadcast %64 : vector<8x1xf32> to vector<8x512xf32>
    %67 = vector.broadcast %65 : vector<1x512xf32> to vector<8x512xf32>
    %68 = arith.mulf %66, %67 : vector<8x512xf32>
    %69 = arith.addf %63, %68 : vector<8x512xf32>
    %70 = vector.extract_strided_slice %1 {offsets = [0, 11], sizes = [8, 1], strides = [1, 1]} : vector<8x18xf32> to vector<8x1xf32>
    %71 = vector.extract_strided_slice %0 {offsets = [2, 0], sizes = [1, 512], strides = [1, 1]} : vector<9x512xf32> to vector<1x512xf32>
    %72 = vector.broadcast %70 : vector<8x1xf32> to vector<8x512xf32>
    %73 = vector.broadcast %71 : vector<1x512xf32> to vector<8x512xf32>
    %74 = arith.mulf %72, %73 : vector<8x512xf32>
    %75 = arith.addf %69, %74 : vector<8x512xf32>
    %76 = vector.extract_strided_slice %1 {offsets = [0, 12], sizes = [8, 1], strides = [1, 1]} : vector<8x18xf32> to vector<8x1xf32>
    %77 = vector.extract_strided_slice %0 {offsets = [3, 0], sizes = [1, 512], strides = [1, 1]} : vector<9x512xf32> to vector<1x512xf32>
    %78 = vector.broadcast %76 : vector<8x1xf32> to vector<8x512xf32>
    %79 = vector.broadcast %77 : vector<1x512xf32> to vector<8x512xf32>
    %80 = arith.mulf %78, %79 : vector<8x512xf32>
    %81 = arith.addf %75, %80 : vector<8x512xf32>
    %82 = vector.extract_strided_slice %1 {offsets = [0, 13], sizes = [8, 1], strides = [1, 1]} : vector<8x18xf32> to vector<8x1xf32>
    %83 = vector.extract_strided_slice %0 {offsets = [4, 0], sizes = [1, 512], strides = [1, 1]} : vector<9x512xf32> to vector<1x512xf32>
    %84 = vector.broadcast %82 : vector<8x1xf32> to vector<8x512xf32>
    %85 = vector.broadcast %83 : vector<1x512xf32> to vector<8x512xf32>
    %86 = arith.mulf %84, %85 : vector<8x512xf32>
    %87 = arith.addf %81, %86 : vector<8x512xf32>
    %88 = vector.extract_strided_slice %1 {offsets = [0, 14], sizes = [8, 1], strides = [1, 1]} : vector<8x18xf32> to vector<8x1xf32>
    %89 = vector.extract_strided_slice %0 {offsets = [5, 0], sizes = [1, 512], strides = [1, 1]} : vector<9x512xf32> to vector<1x512xf32>
    %90 = vector.broadcast %88 : vector<8x1xf32> to vector<8x512xf32>
    %91 = vector.broadcast %89 : vector<1x512xf32> to vector<8x512xf32>
    %92 = arith.mulf %90, %91 : vector<8x512xf32>
    %93 = arith.addf %87, %92 : vector<8x512xf32>
    %94 = vector.extract_strided_slice %1 {offsets = [0, 15], sizes = [8, 1], strides = [1, 1]} : vector<8x18xf32> to vector<8x1xf32>
    %95 = vector.extract_strided_slice %0 {offsets = [6, 0], sizes = [1, 512], strides = [1, 1]} : vector<9x512xf32> to vector<1x512xf32>
    %96 = vector.broadcast %94 : vector<8x1xf32> to vector<8x512xf32>
    %97 = vector.broadcast %95 : vector<1x512xf32> to vector<8x512xf32>
    %98 = arith.mulf %96, %97 : vector<8x512xf32>
    %99 = arith.addf %93, %98 : vector<8x512xf32>
    %100 = vector.extract_strided_slice %1 {offsets = [0, 16], sizes = [8, 1], strides = [1, 1]} : vector<8x18xf32> to vector<8x1xf32>
    %101 = vector.extract_strided_slice %0 {offsets = [7, 0], sizes = [1, 512], strides = [1, 1]} : vector<9x512xf32> to vector<1x512xf32>
    %102 = vector.broadcast %100 : vector<8x1xf32> to vector<8x512xf32>
    %103 = vector.broadcast %101 : vector<1x512xf32> to vector<8x512xf32>
    %104 = arith.mulf %102, %103 : vector<8x512xf32>
    %105 = arith.addf %99, %104 : vector<8x512xf32>
    %106 = vector.extract_strided_slice %1 {offsets = [0, 17], sizes = [8, 1], strides = [1, 1]} : vector<8x18xf32> to vector<8x1xf32>
    %107 = vector.extract_strided_slice %0 {offsets = [8, 0], sizes = [1, 512], strides = [1, 1]} : vector<9x512xf32> to vector<1x512xf32>
    %108 = vector.broadcast %106 : vector<8x1xf32> to vector<8x512xf32>
    %109 = vector.broadcast %107 : vector<1x512xf32> to vector<8x512xf32>
    %110 = arith.mulf %108, %109 : vector<8x512xf32>
    %111 = arith.addf %105, %110 : vector<8x512xf32>
    %112 = vector.extract_strided_slice %2 {offsets = [0, 1], sizes = [8, 1], strides = [1, 1]} : vector<8x2xf32> to vector<8x1xf32>
    %113 = vector.broadcast %112 : vector<8x1xf32> to vector<8x512xf32>
    %114 = arith.addf %111, %113 : vector<8x512xf32>
    %115 = vector.extract_strided_slice %58 {offsets = [0, 0], sizes = [8, 256], strides = [1, 1]} : vector<8x512xf32> to vector<8x256xf32>
    %116 = vector.extract_strided_slice %114 {offsets = [0, 0], sizes = [8, 256], strides = [1, 1]} : vector<8x512xf32> to vector<8x256xf32>
    %117 = vector.extract_strided_slice %58 {offsets = [0, 256], sizes = [8, 256], strides = [1, 1]} : vector<8x512xf32> to vector<8x256xf32>
    %118 = vector.extract_strided_slice %114 {offsets = [0, 256], sizes = [8, 256], strides = [1, 1]} : vector<8x512xf32> to vector<8x256xf32>
    %119 = tpu.concatenate %115, %116, %117, %118 in 1 : vector<8x256xf32>, vector<8x256xf32>, vector<8x256xf32>, vector<8x256xf32> -> vector<8x1024xf32>
    %cst = arith.constant dense<0.000000e+00> : vector<8xf32>
    %120 = vector.multi_reduction <add>, %119, %cst [1] : vector<8x1024xf32> to vector<8xf32>
    %121 = vector.shape_cast %120 : vector<8xf32> to vector<8x1xf32>
    %cst_5 = arith.constant 1.024000e+03 : f32
    %122 = vector.broadcast %cst_5 : f32 to vector<8x1xf32>
    %123 = arith.divf %121, %122 : vector<8x1xf32>
    %124 = vector.broadcast %123 : vector<8x1xf32> to vector<8x1024xf32>
    %125 = arith.subf %119, %124 : vector<8x1024xf32>
    %126 = arith.mulf %125, %125 : vector<8x1024xf32>
    %cst_6 = arith.constant dense<0.000000e+00> : vector<8xf32>
    %127 = vector.multi_reduction <add>, %126, %cst_6 [1] : vector<8x1024xf32> to vector<8xf32>
    %128 = vector.shape_cast %127 : vector<8xf32> to vector<8x1xf32>
    %cst_7 = arith.constant 1.024000e+03 : f32
    %129 = vector.broadcast %cst_7 : f32 to vector<8x1xf32>
    %130 = arith.divf %128, %129 : vector<8x1xf32>
    %cst_8 = arith.constant 9.99999974E-6 : f32
    %131 = vector.broadcast %cst_8 : f32 to vector<8x1xf32>
    %132 = arith.addf %130, %131 : vector<8x1xf32>
    %133 = math.rsqrt %132 : vector<8x1xf32>
    %134 = vector.broadcast %133 : vector<8x1xf32> to vector<8x1024xf32>
    %135 = arith.mulf %125, %134 : vector<8x1024xf32>
    %cst_9 = arith.constant 0.000000e+00 : f32
    %136 = vector.broadcast %cst_9 : f32 to vector<8x1024xf32>
    %137 = arith.cmpf oge, %135, %136 : vector<8x1024xf32>
    %cst_10 = arith.constant 0.00999999977 : f32
    %138 = vector.broadcast %cst_10 : f32 to vector<8x1024xf32>
    %139 = arith.mulf %138, %135 : vector<8x1024xf32>
    %140 = arith.select %137, %135, %139 : vector<8x1024xi1>, vector<8x1024xf32>
    %141 = arith.mulf %140, %140 : vector<8x1024xf32>
    %cst_11 = arith.constant dense<0.000000e+00> : vector<1024xf32>
    %142 = vector.multi_reduction <add>, %141, %cst_11 [0] : vector<8x1024xf32> to vector<1024xf32>
    %143 = vector.shape_cast %142 : vector<1024xf32> to vector<1x1024xf32>
    %144 = math.rsqrt %143 : vector<1x1024xf32>
    %145 = arith.mulf %143, %144 : vector<1x1024xf32>
    %cst_12 = arith.constant 1.000000e+00 : f32
    %146 = vector.broadcast %cst_12 : f32 to vector<1x1024xf32>
    %147 = arith.addf %146, %143 : vector<1x1024xf32>
    %148 = tpu.reciprocal %147 {approx = true} : vector<1x1024xf32> -> vector<1x1024xf32>
    %149 = arith.mulf %145, %148 : vector<1x1024xf32>
    %150 = vector.broadcast %149 : vector<1x1024xf32> to vector<8x1024xf32>
    %151 = arith.mulf %140, %150 : vector<8x1024xf32>
    %cst_13 = arith.constant 0.000000e+00 : f32
    %152 = vector.broadcast %cst_13 : f32 to vector<16x512xf32>
    %cst_14 = arith.constant 0.000000e+00 : f32
    %153 = vector.broadcast %cst_14 : f32 to vector<16x512xf32>
    %c0_15 = arith.constant 0 : index
    %c0_16 = arith.constant 0 : index
    %154 = vector.load %arg3[%c0_15, %c0_16] : memref<256x512xf32, #tpu.memory_space<vmem>>, vector<16x512xf32>
    %155 = vector.extract_strided_slice %151 {offsets = [0, 0], sizes = [1, 512], strides = [1, 1]} : vector<8x1024xf32> to vector<1x512xf32>
    %156 = vector.broadcast %155 : vector<1x512xf32> to vector<16x512xf32>
    %157 = arith.mulf %154, %156 : vector<16x512xf32>
    %158 = arith.addf %152, %157 : vector<16x512xf32>
    %159 = vector.extract_strided_slice %151 {offsets = [0, 512], sizes = [1, 512], strides = [1, 1]} : vector<8x1024xf32> to vector<1x512xf32>
    %160 = vector.broadcast %159 : vector<1x512xf32> to vector<16x512xf32>
    %161 = arith.mulf %154, %160 : vector<16x512xf32>
    %162 = arith.addf %153, %161 : vector<16x512xf32>
    %c16 = arith.constant 16 : index
    %c0_17 = arith.constant 0 : index
    %163 = vector.load %arg3[%c16, %c0_17] : memref<256x512xf32, #tpu.memory_space<vmem>>, vector<16x512xf32>
    %164 = vector.extract_strided_slice %151 {offsets = [1, 0], sizes = [1, 512], strides = [1, 1]} : vector<8x1024xf32> to vector<1x512xf32>
    %165 = vector.broadcast %164 : vector<1x512xf32> to vector<16x512xf32>
    %166 = arith.mulf %163, %165 : vector<16x512xf32>
    %167 = arith.addf %158, %166 : vector<16x512xf32>
    %168 = vector.extract_strided_slice %151 {offsets = [1, 512], sizes = [1, 512], strides = [1, 1]} : vector<8x1024xf32> to vector<1x512xf32>
    %169 = vector.broadcast %168 : vector<1x512xf32> to vector<16x512xf32>
    %170 = arith.mulf %163, %169 : vector<16x512xf32>
    %171 = arith.addf %162, %170 : vector<16x512xf32>
    %c32 = arith.constant 32 : index
    %c0_18 = arith.constant 0 : index
    %172 = vector.load %arg3[%c32, %c0_18] : memref<256x512xf32, #tpu.memory_space<vmem>>, vector<16x512xf32>
    %173 = vector.extract_strided_slice %151 {offsets = [2, 0], sizes = [1, 512], strides = [1, 1]} : vector<8x1024xf32> to vector<1x512xf32>
    %174 = vector.broadcast %173 : vector<1x512xf32> to vector<16x512xf32>
    %175 = arith.mulf %172, %174 : vector<16x512xf32>
    %176 = arith.addf %167, %175 : vector<16x512xf32>
    %177 = vector.extract_strided_slice %151 {offsets = [2, 512], sizes = [1, 512], strides = [1, 1]} : vector<8x1024xf32> to vector<1x512xf32>
    %178 = vector.broadcast %177 : vector<1x512xf32> to vector<16x512xf32>
    %179 = arith.mulf %172, %178 : vector<16x512xf32>
    %180 = arith.addf %171, %179 : vector<16x512xf32>
    %c48 = arith.constant 48 : index
    %c0_19 = arith.constant 0 : index
    %181 = vector.load %arg3[%c48, %c0_19] : memref<256x512xf32, #tpu.memory_space<vmem>>, vector<16x512xf32>
    %182 = vector.extract_strided_slice %151 {offsets = [3, 0], sizes = [1, 512], strides = [1, 1]} : vector<8x1024xf32> to vector<1x512xf32>
    %183 = vector.broadcast %182 : vector<1x512xf32> to vector<16x512xf32>
    %184 = arith.mulf %181, %183 : vector<16x512xf32>
    %185 = arith.addf %176, %184 : vector<16x512xf32>
    %186 = vector.extract_strided_slice %151 {offsets = [3, 512], sizes = [1, 512], strides = [1, 1]} : vector<8x1024xf32> to vector<1x512xf32>
    %187 = vector.broadcast %186 : vector<1x512xf32> to vector<16x512xf32>
    %188 = arith.mulf %181, %187 : vector<16x512xf32>
    %189 = arith.addf %180, %188 : vector<16x512xf32>
    %c64 = arith.constant 64 : index
    %c0_20 = arith.constant 0 : index
    %190 = vector.load %arg3[%c64, %c0_20] : memref<256x512xf32, #tpu.memory_space<vmem>>, vector<16x512xf32>
    %191 = vector.extract_strided_slice %151 {offsets = [4, 0], sizes = [1, 512], strides = [1, 1]} : vector<8x1024xf32> to vector<1x512xf32>
    %192 = vector.broadcast %191 : vector<1x512xf32> to vector<16x512xf32>
    %193 = arith.mulf %190, %192 : vector<16x512xf32>
    %194 = arith.addf %185, %193 : vector<16x512xf32>
    %195 = vector.extract_strided_slice %151 {offsets = [4, 512], sizes = [1, 512], strides = [1, 1]} : vector<8x1024xf32> to vector<1x512xf32>
    %196 = vector.broadcast %195 : vector<1x512xf32> to vector<16x512xf32>
    %197 = arith.mulf %190, %196 : vector<16x512xf32>
    %198 = arith.addf %189, %197 : vector<16x512xf32>
    %c80 = arith.constant 80 : index
    %c0_21 = arith.constant 0 : index
    %199 = vector.load %arg3[%c80, %c0_21] : memref<256x512xf32, #tpu.memory_space<vmem>>, vector<16x512xf32>
    %200 = vector.extract_strided_slice %151 {offsets = [5, 0], sizes = [1, 512], strides = [1, 1]} : vector<8x1024xf32> to vector<1x512xf32>
    %201 = vector.broadcast %200 : vector<1x512xf32> to vector<16x512xf32>
    %202 = arith.mulf %199, %201 : vector<16x512xf32>
    %203 = arith.addf %194, %202 : vector<16x512xf32>
    %204 = vector.extract_strided_slice %151 {offsets = [5, 512], sizes = [1, 512], strides = [1, 1]} : vector<8x1024xf32> to vector<1x512xf32>
    %205 = vector.broadcast %204 : vector<1x512xf32> to vector<16x512xf32>
    %206 = arith.mulf %199, %205 : vector<16x512xf32>
    %207 = arith.addf %198, %206 : vector<16x512xf32>
    %c96 = arith.constant 96 : index
    %c0_22 = arith.constant 0 : index
    %208 = vector.load %arg3[%c96, %c0_22] : memref<256x512xf32, #tpu.memory_space<vmem>>, vector<16x512xf32>
    %209 = vector.extract_strided_slice %151 {offsets = [6, 0], sizes = [1, 512], strides = [1, 1]} : vector<8x1024xf32> to vector<1x512xf32>
    %210 = vector.broadcast %209 : vector<1x512xf32> to vector<16x512xf32>
    %211 = arith.mulf %208, %210 : vector<16x512xf32>
    %212 = arith.addf %203, %211 : vector<16x512xf32>
    %213 = vector.extract_strided_slice %151 {offsets = [6, 512], sizes = [1, 512], strides = [1, 1]} : vector<8x1024xf32> to vector<1x512xf32>
    %214 = vector.broadcast %213 : vector<1x512xf32> to vector<16x512xf32>
    %215 = arith.mulf %208, %214 : vector<16x512xf32>
    %216 = arith.addf %207, %215 : vector<16x512xf32>
    %c112 = arith.constant 112 : index
    %c0_23 = arith.constant 0 : index
    %217 = vector.load %arg3[%c112, %c0_23] : memref<256x512xf32, #tpu.memory_space<vmem>>, vector<16x512xf32>
    %218 = vector.extract_strided_slice %151 {offsets = [7, 0], sizes = [1, 512], strides = [1, 1]} : vector<8x1024xf32> to vector<1x512xf32>
    %219 = vector.broadcast %218 : vector<1x512xf32> to vector<16x512xf32>
    %220 = arith.mulf %217, %219 : vector<16x512xf32>
    %221 = arith.addf %212, %220 : vector<16x512xf32>
    %222 = vector.extract_strided_slice %151 {offsets = [7, 512], sizes = [1, 512], strides = [1, 1]} : vector<8x1024xf32> to vector<1x512xf32>
    %223 = vector.broadcast %222 : vector<1x512xf32> to vector<16x512xf32>
    %224 = arith.mulf %217, %223 : vector<16x512xf32>
    %225 = arith.addf %216, %224 : vector<16x512xf32>
    %c0_24 = arith.constant 0 : index
    %c0_25 = arith.constant 0 : index
    %226 = vector.load %arg5[%c0_24, %c0_25] : memref<64x512xf32, #tpu.memory_space<vmem>>, vector<16x512xf32>
    tpu.vector_store %arg5[%c0_24, %c0_25], %221 {strides = array<i32>} : memref<64x512xf32, #tpu.memory_space<vmem>>, vector<16x512xf32>,
    %c16_26 = arith.constant 16 : index
    %c0_27 = arith.constant 0 : index
    %227 = vector.load %arg5[%c16_26, %c0_27] : memref<64x512xf32, #tpu.memory_space<vmem>>, vector<16x512xf32>
    tpu.vector_store %arg5[%c16_26, %c0_27], %225 {strides = array<i32>} : memref<64x512xf32, #tpu.memory_space<vmem>>, vector<16x512xf32>,
    %cst_28 = arith.constant 0.000000e+00 : f32
    %228 = vector.broadcast %cst_28 : f32 to vector<16x512xf32>
    %cst_29 = arith.constant 0.000000e+00 : f32
    %229 = vector.broadcast %cst_29 : f32 to vector<16x512xf32>
    %c128 = arith.constant 128 : index
    %c0_30 = arith.constant 0 : index
    %230 = vector.load %arg3[%c128, %c0_30] : memref<256x512xf32, #tpu.memory_space<vmem>>, vector<16x512xf32>
    %231 = vector.extract_strided_slice %151 {offsets = [0, 0], sizes = [1, 512], strides = [1, 1]} : vector<8x1024xf32> to vector<1x512xf32>
    %232 = vector.broadcast %231 : vector<1x512xf32> to vector<16x512xf32>
    %233 = arith.mulf %230, %232 : vector<16x512xf32>
    %234 = arith.addf %228, %233 : vector<16x512xf32>
    %235 = vector.extract_strided_slice %151 {offsets = [0, 512], sizes = [1, 512], strides = [1, 1]} : vector<8x1024xf32> to vector<1x512xf32>
    %236 = vector.broadcast %235 : vector<1x512xf32> to vector<16x512xf32>
    %237 = arith.mulf %230, %236 : vector<16x512xf32>
    %238 = arith.addf %229, %237 : vector<16x512xf32>
    %c144 = arith.constant 144 : index
    %c0_31 = arith.constant 0 : index
    %239 = vector.load %arg3[%c144, %c0_31] : memref<256x512xf32, #tpu.memory_space<vmem>>, vector<16x512xf32>
    %240 = vector.extract_strided_slice %151 {offsets = [1, 0], sizes = [1, 512], strides = [1, 1]} : vector<8x1024xf32> to vector<1x512xf32>
    %241 = vector.broadcast %240 : vector<1x512xf32> to vector<16x512xf32>
    %242 = arith.mulf %239, %241 : vector<16x512xf32>
    %243 = arith.addf %234, %242 : vector<16x512xf32>
    %244 = vector.extract_strided_slice %151 {offsets = [1, 512], sizes = [1, 512], strides = [1, 1]} : vector<8x1024xf32> to vector<1x512xf32>
    %245 = vector.broadcast %244 : vector<1x512xf32> to vector<16x512xf32>
    %246 = arith.mulf %239, %245 : vector<16x512xf32>
    %247 = arith.addf %238, %246 : vector<16x512xf32>
    %c160 = arith.constant 160 : index
    %c0_32 = arith.constant 0 : index
    %248 = vector.load %arg3[%c160, %c0_32] : memref<256x512xf32, #tpu.memory_space<vmem>>, vector<16x512xf32>
    %249 = vector.extract_strided_slice %151 {offsets = [2, 0], sizes = [1, 512], strides = [1, 1]} : vector<8x1024xf32> to vector<1x512xf32>
    %250 = vector.broadcast %249 : vector<1x512xf32> to vector<16x512xf32>
    %251 = arith.mulf %248, %250 : vector<16x512xf32>
    %252 = arith.addf %243, %251 : vector<16x512xf32>
    %253 = vector.extract_strided_slice %151 {offsets = [2, 512], sizes = [1, 512], strides = [1, 1]} : vector<8x1024xf32> to vector<1x512xf32>
    %254 = vector.broadcast %253 : vector<1x512xf32> to vector<16x512xf32>
    %255 = arith.mulf %248, %254 : vector<16x512xf32>
    %256 = arith.addf %247, %255 : vector<16x512xf32>
    %c176 = arith.constant 176 : index
    %c0_33 = arith.constant 0 : index
    %257 = vector.load %arg3[%c176, %c0_33] : memref<256x512xf32, #tpu.memory_space<vmem>>, vector<16x512xf32>
    %258 = vector.extract_strided_slice %151 {offsets = [3, 0], sizes = [1, 512], strides = [1, 1]} : vector<8x1024xf32> to vector<1x512xf32>
    %259 = vector.broadcast %258 : vector<1x512xf32> to vector<16x512xf32>
    %260 = arith.mulf %257, %259 : vector<16x512xf32>
    %261 = arith.addf %252, %260 : vector<16x512xf32>
    %262 = vector.extract_strided_slice %151 {offsets = [3, 512], sizes = [1, 512], strides = [1, 1]} : vector<8x1024xf32> to vector<1x512xf32>
    %263 = vector.broadcast %262 : vector<1x512xf32> to vector<16x512xf32>
    %264 = arith.mulf %257, %263 : vector<16x512xf32>
    %265 = arith.addf %256, %264 : vector<16x512xf32>
    %c192 = arith.constant 192 : index
    %c0_34 = arith.constant 0 : index
    %266 = vector.load %arg3[%c192, %c0_34] : memref<256x512xf32, #tpu.memory_space<vmem>>, vector<16x512xf32>
    %267 = vector.extract_strided_slice %151 {offsets = [4, 0], sizes = [1, 512], strides = [1, 1]} : vector<8x1024xf32> to vector<1x512xf32>
    %268 = vector.broadcast %267 : vector<1x512xf32> to vector<16x512xf32>
    %269 = arith.mulf %266, %268 : vector<16x512xf32>
    %270 = arith.addf %261, %269 : vector<16x512xf32>
    %271 = vector.extract_strided_slice %151 {offsets = [4, 512], sizes = [1, 512], strides = [1, 1]} : vector<8x1024xf32> to vector<1x512xf32>
    %272 = vector.broadcast %271 : vector<1x512xf32> to vector<16x512xf32>
    %273 = arith.mulf %266, %272 : vector<16x512xf32>
    %274 = arith.addf %265, %273 : vector<16x512xf32>
    %c208 = arith.constant 208 : index
    %c0_35 = arith.constant 0 : index
    %275 = vector.load %arg3[%c208, %c0_35] : memref<256x512xf32, #tpu.memory_space<vmem>>, vector<16x512xf32>
    %276 = vector.extract_strided_slice %151 {offsets = [5, 0], sizes = [1, 512], strides = [1, 1]} : vector<8x1024xf32> to vector<1x512xf32>
    %277 = vector.broadcast %276 : vector<1x512xf32> to vector<16x512xf32>
    %278 = arith.mulf %275, %277 : vector<16x512xf32>
    %279 = arith.addf %270, %278 : vector<16x512xf32>
    %280 = vector.extract_strided_slice %151 {offsets = [5, 512], sizes = [1, 512], strides = [1, 1]} : vector<8x1024xf32> to vector<1x512xf32>
    %281 = vector.broadcast %280 : vector<1x512xf32> to vector<16x512xf32>
    %282 = arith.mulf %275, %281 : vector<16x512xf32>
    %283 = arith.addf %274, %282 : vector<16x512xf32>
    %c224 = arith.constant 224 : index
    %c0_36 = arith.constant 0 : index
    %284 = vector.load %arg3[%c224, %c0_36] : memref<256x512xf32, #tpu.memory_space<vmem>>, vector<16x512xf32>
    %285 = vector.extract_strided_slice %151 {offsets = [6, 0], sizes = [1, 512], strides = [1, 1]} : vector<8x1024xf32> to vector<1x512xf32>
    %286 = vector.broadcast %285 : vector<1x512xf32> to vector<16x512xf32>
    %287 = arith.mulf %284, %286 : vector<16x512xf32>
    %288 = arith.addf %279, %287 : vector<16x512xf32>
    %289 = vector.extract_strided_slice %151 {offsets = [6, 512], sizes = [1, 512], strides = [1, 1]} : vector<8x1024xf32> to vector<1x512xf32>
    %290 = vector.broadcast %289 : vector<1x512xf32> to vector<16x512xf32>
    %291 = arith.mulf %284, %290 : vector<16x512xf32>
    %292 = arith.addf %283, %291 : vector<16x512xf32>
    %c240 = arith.constant 240 : index
    %c0_37 = arith.constant 0 : index
    %293 = vector.load %arg3[%c240, %c0_37] : memref<256x512xf32, #tpu.memory_space<vmem>>, vector<16x512xf32>
    %294 = vector.extract_strided_slice %151 {offsets = [7, 0], sizes = [1, 512], strides = [1, 1]} : vector<8x1024xf32> to vector<1x512xf32>
    %295 = vector.broadcast %294 : vector<1x512xf32> to vector<16x512xf32>
    %296 = arith.mulf %293, %295 : vector<16x512xf32>
    %297 = arith.addf %288, %296 : vector<16x512xf32>
    %298 = vector.extract_strided_slice %151 {offsets = [7, 512], sizes = [1, 512], strides = [1, 1]} : vector<8x1024xf32> to vector<1x512xf32>
    %299 = vector.broadcast %298 : vector<1x512xf32> to vector<16x512xf32>
    %300 = arith.mulf %293, %299 : vector<16x512xf32>
    %301 = arith.addf %292, %300 : vector<16x512xf32>
    %c32_38 = arith.constant 32 : index
    %c0_39 = arith.constant 0 : index
    %302 = vector.load %arg5[%c32_38, %c0_39] : memref<64x512xf32, #tpu.memory_space<vmem>>, vector<16x512xf32>
    tpu.vector_store %arg5[%c32_38, %c0_39], %297 {strides = array<i32>} : memref<64x512xf32, #tpu.memory_space<vmem>>, vector<16x512xf32>,
    %c48_40 = arith.constant 48 : index
    %c0_41 = arith.constant 0 : index
    %303 = vector.load %arg5[%c48_40, %c0_41] : memref<64x512xf32, #tpu.memory_space<vmem>>, vector<16x512xf32>
    tpu.vector_store %arg5[%c48_40, %c0_41], %301 {strides = array<i32>} : memref<64x512xf32, #tpu.memory_space<vmem>>, vector<16x512xf32>,
    %cst_42 = arith.constant 0.000000e+00 : f32
    %304 = vector.broadcast %cst_42 : f32 to vector<4x512xf32>
    %c0_43 = arith.constant 0 : index
    %c0_44 = arith.constant 0 : index
    %305 = vector.load %arg5[%c0_43, %c0_44] : memref<64x512xf32, #tpu.memory_space<vmem>>, vector<16x512xf32>
    %cst_45 = arith.constant dense<0.000000e+00> : vector<16xf32>
    %306 = vector.multi_reduction <add>, %305, %cst_45 [1] : vector<16x512xf32> to vector<16xf32>
    %307 = vector.shape_cast %306 : vector<16xf32> to vector<16x1xf32>
    %cst_46 = arith.constant 0.001953125 : f32
    %308 = vector.broadcast %cst_46 : f32 to vector<16x1xf32>
    %309 = arith.mulf %307, %308 : vector<16x1xf32>
    %310 = arith.mulf %309, %309 : vector<16x1xf32>
    %cst_47 = arith.constant dense<0.000000e+00> : vector<1xf32>
    %311 = vector.multi_reduction <add>, %310, %cst_47 [0] : vector<16x1xf32> to vector<1xf32>
    %312 = vector.shape_cast %311 : vector<1xf32> to vector<1x1xf32>
    %313 = math.rsqrt %312 : vector<1x1xf32>
    %314 = arith.mulf %312, %313 : vector<1x1xf32>
    %cst_48 = arith.constant 1.000000e+00 : f32
    %315 = vector.broadcast %cst_48 : f32 to vector<1x1xf32>
    %316 = arith.addf %315, %312 : vector<1x1xf32>
    %317 = tpu.reciprocal %316 {approx = true} : vector<1x1xf32> -> vector<1x1xf32>
    %318 = arith.mulf %314, %317 : vector<1x1xf32>
    %319 = vector.broadcast %318 : vector<1x1xf32> to vector<16x1xf32>
    %320 = arith.mulf %309, %319 : vector<16x1xf32>
    %321 = vector.broadcast %320 : vector<16x1xf32> to vector<16x512xf32>
    %322 = arith.mulf %305, %321 : vector<16x512xf32>
    %cst_49 = arith.constant dense<0.000000e+00> : vector<512xf32>
    %323 = vector.multi_reduction <add>, %322, %cst_49 [0] : vector<16x512xf32> to vector<512xf32>
    %324 = vector.shape_cast %323 : vector<512xf32> to vector<1x512xf32>
    %c16_50 = arith.constant 16 : index
    %c0_51 = arith.constant 0 : index
    %325 = vector.load %arg5[%c16_50, %c0_51] : memref<64x512xf32, #tpu.memory_space<vmem>>, vector<16x512xf32>
    %cst_52 = arith.constant dense<0.000000e+00> : vector<16xf32>
    %326 = vector.multi_reduction <add>, %325, %cst_52 [1] : vector<16x512xf32> to vector<16xf32>
    %327 = vector.shape_cast %326 : vector<16xf32> to vector<16x1xf32>
    %cst_53 = arith.constant 0.001953125 : f32
    %328 = vector.broadcast %cst_53 : f32 to vector<16x1xf32>
    %329 = arith.mulf %327, %328 : vector<16x1xf32>
    %330 = arith.mulf %329, %329 : vector<16x1xf32>
    %cst_54 = arith.constant dense<0.000000e+00> : vector<1xf32>
    %331 = vector.multi_reduction <add>, %330, %cst_54 [0] : vector<16x1xf32> to vector<1xf32>
    %332 = vector.shape_cast %331 : vector<1xf32> to vector<1x1xf32>
    %333 = math.rsqrt %332 : vector<1x1xf32>
    %334 = arith.mulf %332, %333 : vector<1x1xf32>
    %cst_55 = arith.constant 1.000000e+00 : f32
    %335 = vector.broadcast %cst_55 : f32 to vector<1x1xf32>
    %336 = arith.addf %335, %332 : vector<1x1xf32>
    %337 = tpu.reciprocal %336 {approx = true} : vector<1x1xf32> -> vector<1x1xf32>
    %338 = arith.mulf %334, %337 : vector<1x1xf32>
    %339 = vector.broadcast %338 : vector<1x1xf32> to vector<16x1xf32>
    %340 = arith.mulf %329, %339 : vector<16x1xf32>
    %341 = vector.broadcast %340 : vector<16x1xf32> to vector<16x512xf32>
    %342 = arith.mulf %325, %341 : vector<16x512xf32>
    %cst_56 = arith.constant dense<0.000000e+00> : vector<512xf32>
    %343 = vector.multi_reduction <add>, %342, %cst_56 [0] : vector<16x512xf32> to vector<512xf32>
    %344 = vector.shape_cast %343 : vector<512xf32> to vector<1x512xf32>
    %c32_57 = arith.constant 32 : index
    %c0_58 = arith.constant 0 : index
    %345 = vector.load %arg5[%c32_57, %c0_58] : memref<64x512xf32, #tpu.memory_space<vmem>>, vector<16x512xf32>
    %cst_59 = arith.constant dense<0.000000e+00> : vector<16xf32>
    %346 = vector.multi_reduction <add>, %345, %cst_59 [1] : vector<16x512xf32> to vector<16xf32>
    %347 = vector.shape_cast %346 : vector<16xf32> to vector<16x1xf32>
    %cst_60 = arith.constant 0.001953125 : f32
    %348 = vector.broadcast %cst_60 : f32 to vector<16x1xf32>
    %349 = arith.mulf %347, %348 : vector<16x1xf32>
    %350 = arith.mulf %349, %349 : vector<16x1xf32>
    %cst_61 = arith.constant dense<0.000000e+00> : vector<1xf32>
    %351 = vector.multi_reduction <add>, %350, %cst_61 [0] : vector<16x1xf32> to vector<1xf32>
    %352 = vector.shape_cast %351 : vector<1xf32> to vector<1x1xf32>
    %353 = math.rsqrt %352 : vector<1x1xf32>
    %354 = arith.mulf %352, %353 : vector<1x1xf32>
    %cst_62 = arith.constant 1.000000e+00 : f32
    %355 = vector.broadcast %cst_62 : f32 to vector<1x1xf32>
    %356 = arith.addf %355, %352 : vector<1x1xf32>
    %357 = tpu.reciprocal %356 {approx = true} : vector<1x1xf32> -> vector<1x1xf32>
    %358 = arith.mulf %354, %357 : vector<1x1xf32>
    %359 = vector.broadcast %358 : vector<1x1xf32> to vector<16x1xf32>
    %360 = arith.mulf %349, %359 : vector<16x1xf32>
    %361 = vector.broadcast %360 : vector<16x1xf32> to vector<16x512xf32>
    %362 = arith.mulf %345, %361 : vector<16x512xf32>
    %cst_63 = arith.constant dense<0.000000e+00> : vector<512xf32>
    %363 = vector.multi_reduction <add>, %362, %cst_63 [0] : vector<16x512xf32> to vector<512xf32>
    %364 = vector.shape_cast %363 : vector<512xf32> to vector<1x512xf32>
    %c48_64 = arith.constant 48 : index
    %c0_65 = arith.constant 0 : index
    %365 = vector.load %arg5[%c48_64, %c0_65] : memref<64x512xf32, #tpu.memory_space<vmem>>, vector<16x512xf32>
    %cst_66 = arith.constant dense<0.000000e+00> : vector<16xf32>
    %366 = vector.multi_reduction <add>, %365, %cst_66 [1] : vector<16x512xf32> to vector<16xf32>
    %367 = vector.shape_cast %366 : vector<16xf32> to vector<16x1xf32>
    %cst_67 = arith.constant 0.001953125 : f32
    %368 = vector.broadcast %cst_67 : f32 to vector<16x1xf32>
    %369 = arith.mulf %367, %368 : vector<16x1xf32>
    %370 = arith.mulf %369, %369 : vector<16x1xf32>
    %cst_68 = arith.constant dense<0.000000e+00> : vector<1xf32>
    %371 = vector.multi_reduction <add>, %370, %cst_68 [0] : vector<16x1xf32> to vector<1xf32>
    %372 = vector.shape_cast %371 : vector<1xf32> to vector<1x1xf32>
    %373 = math.rsqrt %372 : vector<1x1xf32>
    %374 = arith.mulf %372, %373 : vector<1x1xf32>
    %cst_69 = arith.constant 1.000000e+00 : f32
    %375 = vector.broadcast %cst_69 : f32 to vector<1x1xf32>
    %376 = arith.addf %375, %372 : vector<1x1xf32>
    %377 = tpu.reciprocal %376 {approx = true} : vector<1x1xf32> -> vector<1x1xf32>
    %378 = arith.mulf %374, %377 : vector<1x1xf32>
    %379 = vector.broadcast %378 : vector<1x1xf32> to vector<16x1xf32>
    %380 = arith.mulf %369, %379 : vector<16x1xf32>
    %381 = vector.broadcast %380 : vector<16x1xf32> to vector<16x512xf32>
    %382 = arith.mulf %365, %381 : vector<16x512xf32>
    %cst_70 = arith.constant dense<0.000000e+00> : vector<512xf32>
    %383 = vector.multi_reduction <add>, %382, %cst_70 [0] : vector<16x512xf32> to vector<512xf32>
    %384 = vector.shape_cast %383 : vector<512xf32> to vector<1x512xf32>
    %385 = tpu.concatenate %324, %344, %364, %384 in 0 : vector<1x512xf32>, vector<1x512xf32>, vector<1x512xf32>, vector<1x512xf32> -> vector<4x512xf32>
    %386 = arith.addf %304, %385 : vector<4x512xf32>
    %cst_71 = arith.constant dense<0xFF800000> : vector<4xf32>
    %387 = vector.multi_reduction <maximumf>, %386, %cst_71 [1] : vector<4x512xf32> to vector<4xf32>
    %388 = vector.shape_cast %387 : vector<4xf32> to vector<4x1xf32>
    %389 = vector.broadcast %388 : vector<4x1xf32> to vector<4x512xf32>
    %390 = arith.subf %386, %389 : vector<4x512xf32>
    %391 = math.exp %390 : vector<4x512xf32>
    %cst_72 = arith.constant dense<0.000000e+00> : vector<4xf32>
    %392 = vector.multi_reduction <add>, %391, %cst_72 [1] : vector<4x512xf32> to vector<4xf32>
    %393 = vector.shape_cast %392 : vector<4xf32> to vector<4x1xf32>
    %394 = tpu.reciprocal %393 {approx = true} : vector<4x1xf32> -> vector<4x1xf32>
    %395 = vector.broadcast %394 : vector<4x1xf32> to vector<4x512xf32>
    %396 = arith.mulf %391, %395 : vector<4x512xf32>
    %c0_73 = arith.constant 0 : index
    %c0_74 = arith.constant 0 : index
    %397 = vector.load %arg5[%c0_73, %c0_74] : memref<64x512xf32, #tpu.memory_space<vmem>>, vector<16x512xf32>
    %398 = vector.extract_strided_slice %396 {offsets = [0, 0], sizes = [1, 512], strides = [1, 1]} : vector<4x512xf32> to vector<1x512xf32>
    %399 = vector.broadcast %398 : vector<1x512xf32> to vector<16x512xf32>
    %400 = arith.mulf %399, %397 : vector<16x512xf32>
    %cst_75 = arith.constant dense<0.000000e+00> : vector<16xf32>
    %401 = vector.multi_reduction <add>, %400, %cst_75 [1] : vector<16x512xf32> to vector<16xf32>
    %402 = vector.shape_cast %401 : vector<16xf32> to vector<16x1xf32>
    %403 = arith.mulf %402, %402 : vector<16x1xf32>
    %cst_76 = arith.constant dense<0.000000e+00> : vector<1xf32>
    %404 = vector.multi_reduction <add>, %403, %cst_76 [0] : vector<16x1xf32> to vector<1xf32>
    %405 = vector.shape_cast %404 : vector<1xf32> to vector<1x1xf32>
    %406 = math.rsqrt %405 : vector<1x1xf32>
    %407 = arith.mulf %405, %406 : vector<1x1xf32>
    %cst_77 = arith.constant 1.000000e+00 : f32
    %408 = vector.broadcast %cst_77 : f32 to vector<1x1xf32>
    %409 = arith.addf %408, %405 : vector<1x1xf32>
    %410 = tpu.reciprocal %409 {approx = true} : vector<1x1xf32> -> vector<1x1xf32>
    %411 = arith.mulf %407, %410 : vector<1x1xf32>
    %412 = vector.broadcast %411 : vector<1x1xf32> to vector<16x1xf32>
    %413 = arith.mulf %402, %412 : vector<16x1xf32>
    %414 = vector.broadcast %413 : vector<16x1xf32> to vector<16x512xf32>
    %415 = arith.mulf %397, %414 : vector<16x512xf32>
    %cst_78 = arith.constant dense<0.000000e+00> : vector<512xf32>
    %416 = vector.multi_reduction <add>, %415, %cst_78 [0] : vector<16x512xf32> to vector<512xf32>
    %417 = vector.shape_cast %416 : vector<512xf32> to vector<1x512xf32>
    %c16_79 = arith.constant 16 : index
    %c0_80 = arith.constant 0 : index
    %418 = vector.load %arg5[%c16_79, %c0_80] : memref<64x512xf32, #tpu.memory_space<vmem>>, vector<16x512xf32>
    %419 = vector.extract_strided_slice %396 {offsets = [1, 0], sizes = [1, 512], strides = [1, 1]} : vector<4x512xf32> to vector<1x512xf32>
    %420 = vector.broadcast %419 : vector<1x512xf32> to vector<16x512xf32>
    %421 = arith.mulf %420, %418 : vector<16x512xf32>
    %cst_81 = arith.constant dense<0.000000e+00> : vector<16xf32>
    %422 = vector.multi_reduction <add>, %421, %cst_81 [1] : vector<16x512xf32> to vector<16xf32>
    %423 = vector.shape_cast %422 : vector<16xf32> to vector<16x1xf32>
    %424 = arith.mulf %423, %423 : vector<16x1xf32>
    %cst_82 = arith.constant dense<0.000000e+00> : vector<1xf32>
    %425 = vector.multi_reduction <add>, %424, %cst_82 [0] : vector<16x1xf32> to vector<1xf32>
    %426 = vector.shape_cast %425 : vector<1xf32> to vector<1x1xf32>
    %427 = math.rsqrt %426 : vector<1x1xf32>
    %428 = arith.mulf %426, %427 : vector<1x1xf32>
    %cst_83 = arith.constant 1.000000e+00 : f32
    %429 = vector.broadcast %cst_83 : f32 to vector<1x1xf32>
    %430 = arith.addf %429, %426 : vector<1x1xf32>
    %431 = tpu.reciprocal %430 {approx = true} : vector<1x1xf32> -> vector<1x1xf32>
    %432 = arith.mulf %428, %431 : vector<1x1xf32>
    %433 = vector.broadcast %432 : vector<1x1xf32> to vector<16x1xf32>
    %434 = arith.mulf %423, %433 : vector<16x1xf32>
    %435 = vector.broadcast %434 : vector<16x1xf32> to vector<16x512xf32>
    %436 = arith.mulf %418, %435 : vector<16x512xf32>
    %cst_84 = arith.constant dense<0.000000e+00> : vector<512xf32>
    %437 = vector.multi_reduction <add>, %436, %cst_84 [0] : vector<16x512xf32> to vector<512xf32>
    %438 = vector.shape_cast %437 : vector<512xf32> to vector<1x512xf32>
    %c32_85 = arith.constant 32 : index
    %c0_86 = arith.constant 0 : index
    %439 = vector.load %arg5[%c32_85, %c0_86] : memref<64x512xf32, #tpu.memory_space<vmem>>, vector<16x512xf32>
    %440 = vector.extract_strided_slice %396 {offsets = [2, 0], sizes = [1, 512], strides = [1, 1]} : vector<4x512xf32> to vector<1x512xf32>
    %441 = vector.broadcast %440 : vector<1x512xf32> to vector<16x512xf32>
    %442 = arith.mulf %441, %439 : vector<16x512xf32>
    %cst_87 = arith.constant dense<0.000000e+00> : vector<16xf32>
    %443 = vector.multi_reduction <add>, %442, %cst_87 [1] : vector<16x512xf32> to vector<16xf32>
    %444 = vector.shape_cast %443 : vector<16xf32> to vector<16x1xf32>
    %445 = arith.mulf %444, %444 : vector<16x1xf32>
    %cst_88 = arith.constant dense<0.000000e+00> : vector<1xf32>
    %446 = vector.multi_reduction <add>, %445, %cst_88 [0] : vector<16x1xf32> to vector<1xf32>
    %447 = vector.shape_cast %446 : vector<1xf32> to vector<1x1xf32>
    %448 = math.rsqrt %447 : vector<1x1xf32>
    %449 = arith.mulf %447, %448 : vector<1x1xf32>
    %cst_89 = arith.constant 1.000000e+00 : f32
    %450 = vector.broadcast %cst_89 : f32 to vector<1x1xf32>
    %451 = arith.addf %450, %447 : vector<1x1xf32>
    %452 = tpu.reciprocal %451 {approx = true} : vector<1x1xf32> -> vector<1x1xf32>
    %453 = arith.mulf %449, %452 : vector<1x1xf32>
    %454 = vector.broadcast %453 : vector<1x1xf32> to vector<16x1xf32>
    %455 = arith.mulf %444, %454 : vector<16x1xf32>
    %456 = vector.broadcast %455 : vector<16x1xf32> to vector<16x512xf32>
    %457 = arith.mulf %439, %456 : vector<16x512xf32>
    %cst_90 = arith.constant dense<0.000000e+00> : vector<512xf32>
    %458 = vector.multi_reduction <add>, %457, %cst_90 [0] : vector<16x512xf32> to vector<512xf32>
    %459 = vector.shape_cast %458 : vector<512xf32> to vector<1x512xf32>
    %c48_91 = arith.constant 48 : index
    %c0_92 = arith.constant 0 : index
    %460 = vector.load %arg5[%c48_91, %c0_92] : memref<64x512xf32, #tpu.memory_space<vmem>>, vector<16x512xf32>
    %461 = vector.extract_strided_slice %396 {offsets = [3, 0], sizes = [1, 512], strides = [1, 1]} : vector<4x512xf32> to vector<1x512xf32>
    %462 = vector.broadcast %461 : vector<1x512xf32> to vector<16x512xf32>
    %463 = arith.mulf %462, %460 : vector<16x512xf32>
    %cst_93 = arith.constant dense<0.000000e+00> : vector<16xf32>
    %464 = vector.multi_reduction <add>, %463, %cst_93 [1] : vector<16x512xf32> to vector<16xf32>
    %465 = vector.shape_cast %464 : vector<16xf32> to vector<16x1xf32>
    %466 = arith.mulf %465, %465 : vector<16x1xf32>
    %cst_94 = arith.constant dense<0.000000e+00> : vector<1xf32>
    %467 = vector.multi_reduction <add>, %466, %cst_94 [0] : vector<16x1xf32> to vector<1xf32>
    %468 = vector.shape_cast %467 : vector<1xf32> to vector<1x1xf32>
    %469 = math.rsqrt %468 : vector<1x1xf32>
    %470 = arith.mulf %468, %469 : vector<1x1xf32>
    %cst_95 = arith.constant 1.000000e+00 : f32
    %471 = vector.broadcast %cst_95 : f32 to vector<1x1xf32>
    %472 = arith.addf %471, %468 : vector<1x1xf32>
    %473 = tpu.reciprocal %472 {approx = true} : vector<1x1xf32> -> vector<1x1xf32>
    %474 = arith.mulf %470, %473 : vector<1x1xf32>
    %475 = vector.broadcast %474 : vector<1x1xf32> to vector<16x1xf32>
    %476 = arith.mulf %465, %475 : vector<16x1xf32>
    %477 = vector.broadcast %476 : vector<16x1xf32> to vector<16x512xf32>
    %478 = arith.mulf %460, %477 : vector<16x512xf32>
    %cst_96 = arith.constant dense<0.000000e+00> : vector<512xf32>
    %479 = vector.multi_reduction <add>, %478, %cst_96 [0] : vector<16x512xf32> to vector<512xf32>
    %480 = vector.shape_cast %479 : vector<512xf32> to vector<1x512xf32>
    %481 = tpu.concatenate %417, %438, %459, %480 in 0 : vector<1x512xf32>, vector<1x512xf32>, vector<1x512xf32>, vector<1x512xf32> -> vector<4x512xf32>
    %482 = arith.addf %386, %481 : vector<4x512xf32>
    %cst_97 = arith.constant dense<0xFF800000> : vector<4xf32>
    %483 = vector.multi_reduction <maximumf>, %482, %cst_97 [1] : vector<4x512xf32> to vector<4xf32>
    %484 = vector.shape_cast %483 : vector<4xf32> to vector<4x1xf32>
    %485 = vector.broadcast %484 : vector<4x1xf32> to vector<4x512xf32>
    %486 = arith.subf %482, %485 : vector<4x512xf32>
    %487 = math.exp %486 : vector<4x512xf32>
    %cst_98 = arith.constant dense<0.000000e+00> : vector<4xf32>
    %488 = vector.multi_reduction <add>, %487, %cst_98 [1] : vector<4x512xf32> to vector<4xf32>
    %489 = vector.shape_cast %488 : vector<4xf32> to vector<4x1xf32>
    %490 = tpu.reciprocal %489 {approx = true} : vector<4x1xf32> -> vector<4x1xf32>
    %491 = vector.broadcast %490 : vector<4x1xf32> to vector<4x512xf32>
    %492 = arith.mulf %487, %491 : vector<4x512xf32>
    %c0_99 = arith.constant 0 : index
    %c0_100 = arith.constant 0 : index
    %493 = vector.load %arg5[%c0_99, %c0_100] : memref<64x512xf32, #tpu.memory_space<vmem>>, vector<16x512xf32>
    %494 = vector.extract_strided_slice %492 {offsets = [0, 0], sizes = [1, 512], strides = [1, 1]} : vector<4x512xf32> to vector<1x512xf32>
    %495 = vector.broadcast %494 : vector<1x512xf32> to vector<16x512xf32>
    %496 = arith.mulf %495, %493 : vector<16x512xf32>
    %cst_101 = arith.constant dense<0.000000e+00> : vector<16xf32>
    %497 = vector.multi_reduction <add>, %496, %cst_101 [1] : vector<16x512xf32> to vector<16xf32>
    %498 = vector.shape_cast %497 : vector<16xf32> to vector<16x1xf32>
    %499 = arith.mulf %498, %498 : vector<16x1xf32>
    %cst_102 = arith.constant dense<0.000000e+00> : vector<1xf32>
    %500 = vector.multi_reduction <add>, %499, %cst_102 [0] : vector<16x1xf32> to vector<1xf32>
    %501 = vector.shape_cast %500 : vector<1xf32> to vector<1x1xf32>
    %502 = math.rsqrt %501 : vector<1x1xf32>
    %503 = arith.mulf %501, %502 : vector<1x1xf32>
    %cst_103 = arith.constant 1.000000e+00 : f32
    %504 = vector.broadcast %cst_103 : f32 to vector<1x1xf32>
    %505 = arith.addf %504, %501 : vector<1x1xf32>
    %506 = tpu.reciprocal %505 {approx = true} : vector<1x1xf32> -> vector<1x1xf32>
    %507 = arith.mulf %503, %506 : vector<1x1xf32>
    %508 = vector.broadcast %507 : vector<1x1xf32> to vector<16x1xf32>
    %509 = arith.mulf %498, %508 : vector<16x1xf32>
    %510 = arith.mulf %509, %509 : vector<16x1xf32>
    %cst_104 = arith.constant dense<0.000000e+00> : vector<1xf32>
    %511 = vector.multi_reduction <add>, %510, %cst_104 [0] : vector<16x1xf32> to vector<1xf32>
    %512 = vector.shape_cast %511 : vector<1xf32> to vector<1x1xf32>
    %513 = math.sqrt %512 : vector<1x1xf32>
    %c16_105 = arith.constant 16 : index
    %c0_106 = arith.constant 0 : index
    %514 = vector.load %arg5[%c16_105, %c0_106] : memref<64x512xf32, #tpu.memory_space<vmem>>, vector<16x512xf32>
    %515 = vector.extract_strided_slice %492 {offsets = [1, 0], sizes = [1, 512], strides = [1, 1]} : vector<4x512xf32> to vector<1x512xf32>
    %516 = vector.broadcast %515 : vector<1x512xf32> to vector<16x512xf32>
    %517 = arith.mulf %516, %514 : vector<16x512xf32>
    %cst_107 = arith.constant dense<0.000000e+00> : vector<16xf32>
    %518 = vector.multi_reduction <add>, %517, %cst_107 [1] : vector<16x512xf32> to vector<16xf32>
    %519 = vector.shape_cast %518 : vector<16xf32> to vector<16x1xf32>
    %520 = arith.mulf %519, %519 : vector<16x1xf32>
    %cst_108 = arith.constant dense<0.000000e+00> : vector<1xf32>
    %521 = vector.multi_reduction <add>, %520, %cst_108 [0] : vector<16x1xf32> to vector<1xf32>
    %522 = vector.shape_cast %521 : vector<1xf32> to vector<1x1xf32>
    %523 = math.rsqrt %522 : vector<1x1xf32>
    %524 = arith.mulf %522, %523 : vector<1x1xf32>
    %cst_109 = arith.constant 1.000000e+00 : f32
    %525 = vector.broadcast %cst_109 : f32 to vector<1x1xf32>
    %526 = arith.addf %525, %522 : vector<1x1xf32>
    %527 = tpu.reciprocal %526 {approx = true} : vector<1x1xf32> -> vector<1x1xf32>
    %528 = arith.mulf %524, %527 : vector<1x1xf32>
    %529 = vector.broadcast %528 : vector<1x1xf32> to vector<16x1xf32>
    %530 = arith.mulf %519, %529 : vector<16x1xf32>
    %531 = arith.mulf %530, %530 : vector<16x1xf32>
    %cst_110 = arith.constant dense<0.000000e+00> : vector<1xf32>
    %532 = vector.multi_reduction <add>, %531, %cst_110 [0] : vector<16x1xf32> to vector<1xf32>
    %533 = vector.shape_cast %532 : vector<1xf32> to vector<1x1xf32>
    %534 = math.sqrt %533 : vector<1x1xf32>
    %c32_111 = arith.constant 32 : index
    %c0_112 = arith.constant 0 : index
    %535 = vector.load %arg5[%c32_111, %c0_112] : memref<64x512xf32, #tpu.memory_space<vmem>>, vector<16x512xf32>
    %536 = vector.extract_strided_slice %492 {offsets = [2, 0], sizes = [1, 512], strides = [1, 1]} : vector<4x512xf32> to vector<1x512xf32>
    %537 = vector.broadcast %536 : vector<1x512xf32> to vector<16x512xf32>
    %538 = arith.mulf %537, %535 : vector<16x512xf32>
    %cst_113 = arith.constant dense<0.000000e+00> : vector<16xf32>
    %539 = vector.multi_reduction <add>, %538, %cst_113 [1] : vector<16x512xf32> to vector<16xf32>
    %540 = vector.shape_cast %539 : vector<16xf32> to vector<16x1xf32>
    %541 = arith.mulf %540, %540 : vector<16x1xf32>
    %cst_114 = arith.constant dense<0.000000e+00> : vector<1xf32>
    %542 = vector.multi_reduction <add>, %541, %cst_114 [0] : vector<16x1xf32> to vector<1xf32>
    %543 = vector.shape_cast %542 : vector<1xf32> to vector<1x1xf32>
    %544 = math.rsqrt %543 : vector<1x1xf32>
    %545 = arith.mulf %543, %544 : vector<1x1xf32>
    %cst_115 = arith.constant 1.000000e+00 : f32
    %546 = vector.broadcast %cst_115 : f32 to vector<1x1xf32>
    %547 = arith.addf %546, %543 : vector<1x1xf32>
    %548 = tpu.reciprocal %547 {approx = true} : vector<1x1xf32> -> vector<1x1xf32>
    %549 = arith.mulf %545, %548 : vector<1x1xf32>
    %550 = vector.broadcast %549 : vector<1x1xf32> to vector<16x1xf32>
    %551 = arith.mulf %540, %550 : vector<16x1xf32>
    %552 = arith.mulf %551, %551 : vector<16x1xf32>
    %cst_116 = arith.constant dense<0.000000e+00> : vector<1xf32>
    %553 = vector.multi_reduction <add>, %552, %cst_116 [0] : vector<16x1xf32> to vector<1xf32>
    %554 = vector.shape_cast %553 : vector<1xf32> to vector<1x1xf32>
    %555 = math.sqrt %554 : vector<1x1xf32>
    %c48_117 = arith.constant 48 : index
    %c0_118 = arith.constant 0 : index
    %556 = vector.load %arg5[%c48_117, %c0_118] : memref<64x512xf32, #tpu.memory_space<vmem>>, vector<16x512xf32>
    %557 = vector.extract_strided_slice %492 {offsets = [3, 0], sizes = [1, 512], strides = [1, 1]} : vector<4x512xf32> to vector<1x512xf32>
    %558 = vector.broadcast %557 : vector<1x512xf32> to vector<16x512xf32>
    %559 = arith.mulf %558, %556 : vector<16x512xf32>
    %cst_119 = arith.constant dense<0.000000e+00> : vector<16xf32>
    %560 = vector.multi_reduction <add>, %559, %cst_119 [1] : vector<16x512xf32> to vector<16xf32>
    %561 = vector.shape_cast %560 : vector<16xf32> to vector<16x1xf32>
    %562 = arith.mulf %561, %561 : vector<16x1xf32>
    %cst_120 = arith.constant dense<0.000000e+00> : vector<1xf32>
    %563 = vector.multi_reduction <add>, %562, %cst_120 [0] : vector<16x1xf32> to vector<1xf32>
    %564 = vector.shape_cast %563 : vector<1xf32> to vector<1x1xf32>
    %565 = math.rsqrt %564 : vector<1x1xf32>
    %566 = arith.mulf %564, %565 : vector<1x1xf32>
    %cst_121 = arith.constant 1.000000e+00 : f32
    %567 = vector.broadcast %cst_121 : f32 to vector<1x1xf32>
    %568 = arith.addf %567, %564 : vector<1x1xf32>
    %569 = tpu.reciprocal %568 {approx = true} : vector<1x1xf32> -> vector<1x1xf32>
    %570 = arith.mulf %566, %569 : vector<1x1xf32>
    %571 = vector.broadcast %570 : vector<1x1xf32> to vector<16x1xf32>
    %572 = arith.mulf %561, %571 : vector<16x1xf32>
    %573 = arith.mulf %572, %572 : vector<16x1xf32>
    %cst_122 = arith.constant dense<0.000000e+00> : vector<1xf32>
    %574 = vector.multi_reduction <add>, %573, %cst_122 [0] : vector<16x1xf32> to vector<1xf32>
    %575 = vector.shape_cast %574 : vector<1xf32> to vector<1x1xf32>
    %576 = math.sqrt %575 : vector<1x1xf32>
    %577 = tpu.concatenate %513, %555 in 1 : vector<1x1xf32>, vector<1x1xf32> -> vector<1x2xf32>
    %578 = tpu.concatenate %534, %576 in 1 : vector<1x1xf32>, vector<1x1xf32> -> vector<1x2xf32>
    %579 = tpu.concatenate %577, %578 in 0 : vector<1x2xf32>, vector<1x2xf32> -> vector<2x2xf32>
    %cst_123 = arith.constant dense<0xFF800000> : vector<2xf32>
    %580 = vector.multi_reduction <maximumf>, %579, %cst_123 [1] : vector<2x2xf32> to vector<2xf32>
    %581 = vector.shape_cast %580 : vector<2xf32> to vector<2x1xf32>
    %582 = vector.broadcast %581 : vector<2x1xf32> to vector<2x2xf32>
    %583 = arith.subf %579, %582 : vector<2x2xf32>
    %584 = math.exp %583 : vector<2x2xf32>
    %cst_124 = arith.constant dense<0.000000e+00> : vector<2xf32>
    %585 = vector.multi_reduction <add>, %584, %cst_124 [1] : vector<2x2xf32> to vector<2xf32>
    %586 = vector.shape_cast %585 : vector<2xf32> to vector<2x1xf32>
    %587 = vector.broadcast %586 : vector<2x1xf32> to vector<2x2xf32>
    %588 = arith.divf %584, %587 : vector<2x2xf32>
    %c0_125 = arith.constant 0 : index
    %c0_126 = arith.constant 0 : index
    %589 = vector.load %arg4[%c0_125, %c0_126] : memref<2x2xf32, #tpu.memory_space<vmem>>, vector<2x2xf32>
    tpu.vector_store %arg4[%c0_125, %c0_126], %588 {strides = array<i32>} : memref<2x2xf32, #tpu.memory_space<vmem>>, vector<2x2xf32>,
    return
  }
}

</mosaic_0001>

<llo_original>
// kernel: capsule_net_forward.1
$region0: #{capsule_net_forward.1}
  #allocation0 [shape = 'u32[]', space=smem, size = 0x4, offset = 0x4, fixed_abs, tag = 'smem constant byte address 0x4 - core index']
  #allocation1 [shape = 'u32[72,128]{1,0:T(1,128)}', space=vmem, size = 0x9000, scoped, tag = 'internal scratch']
  #allocation2 [shape = 'f32[64,512]{1,0:T(8,128)}', space=vmem, size = 0x20000, scoped, tag = 'scratch operand']
  %s0 = inlined_call_operand.vmem [shape: f32[9,512], index: 0, kind: input, shape index: {}]
  %s1 = inlined_call_operand.vmem [shape: f32[8,18], index: 1, kind: input, shape index: {}]
  %s2 = inlined_call_operand.vmem [shape: f32[8,2], index: 2, kind: input, shape index: {}]
  %s3 = inlined_call_operand.hbm [shape: f32[256,512], index: 3, kind: input, shape index: {}]
  %s4 = inlined_call_operand.hbm [shape: f32[2,2], index: 4, kind: output, shape index: {}]
  %s5 = sld [smem:[#allocation0]]
  $region30: #{capsule_net_forward.1} parent=0
    _
  %s7 = ssub.s32 1, %s5
  %s8 = scalar_select 0, %s7, %s5
  $region1: #{capsule_net_forward.1} parent=0
    #allocation3 [shape = 'u8[524288]{0}', space=vmem, size = 0x80000, scoped, tag = 'input window, operand 3, single buffered']
    #allocation4 [shape = 's32[1]{0}', space=sflag, size = 0x4, scoped, tag = 'scoped memory for capsule_net_forward.1']
    #allocation5 [shape = 's32[1]{0}', space=sflag, size = 0x4, scoped, tag = 'scoped memory for capsule_net_forward.1']
    #allocation6 [shape = 'u8[1024]{0}', space=vmem, size = 0x400, scoped, tag = 'output window, operand 0, single buffered']
    %9 = vsyncpa [#allocation4], 0
    %10 = vsyncpa [#allocation5], 0
    // Predicated region
    $region2: #{capsule_net_forward.1} parent=1 // pred_check
      _
    $region3: #{capsule_net_forward.1} parent=1 // pred_check_branch
      %12 = sbr.rel (0) target = $region5
    $region4: #{capsule_net_forward.1} parent=1 // pred_region
      _
    $region5: #{capsule_net_forward.1} parent=1 // pred_fallthru
      _
    // Predicated region
    $region6: #{capsule_net_forward.1} parent=1 // pred_check
      _
    $region7: #{capsule_net_forward.1} parent=1 // pred_check_branch
      %14 = sbr.rel (0) target = $region9
    $region8: #{capsule_net_forward.1} parent=1 // pred_region
      _
    $region9: #{capsule_net_forward.1} parent=1 // pred_fallthru
      _
    // Predicated region
    $region10: #{capsule_net_forward.1} parent=1 // pred_check
      _
    $region11: #{capsule_net_forward.1} parent=1 // pred_check_branch
      %16 = sbr.rel (0) target = $region13
    $region12: #{capsule_net_forward.1} parent=1 // pred_region
      _
    $region13: #{capsule_net_forward.1} parent=1 // pred_fallthru
      _
    // Predicated region
    $region14: #{capsule_net_forward.1} parent=1 // pred_check
      _
    $region15: #{capsule_net_forward.1} parent=1 // pred_check_branch
      %18 = sbr.rel (0) target = $region17
    $region16: #{capsule_net_forward.1} parent=1 // pred_region
      %20 = vsyncadd [#allocation4], 0
      %s21 = sshll.u32 %s3, 4
      %s22 = int_to_ptr.hbm [resolvable:$true] %s21
      %s23 = sshll.u32 [#allocation3], 4
      %s24 = int_to_ptr.vmem [resolvable:$true] %s23
      %29 = dma.hbm_to_vmem [thread:$0]  %s22, 16384, %s24, [#allocation4], 512, 512, 32
    $region17: #{capsule_net_forward.1} parent=1 // pred_fallthru
      _
    // Predicated region
    $region18: #{capsule_net_forward.1} parent=1 // pred_check
      _
    $region19: #{capsule_net_forward.1} parent=1 // pred_check_branch
      %31 = sbr.rel (0) target = $region21
    $region20: #{capsule_net_forward.1} parent=1 // pred_region
      %33 = dma.done [#allocation4], 16384
    $region21: #{capsule_net_forward.1} parent=1 // pred_fallthru
      _
    %v34 = vld [vmem:[%s0] sm:$0xff]
    %v35 = vld [vmem:[%s0 + $0x8] sm:$0xff]
    %v36 = vld [vmem:[%s0 + $0x10] sm:$0xff]
    %v37 = vld [vmem:[%s0 + $0x18] sm:$0xff]
    %v38 = vld [vmem:[%s0 + $0x20] sm:$0x1]
    %v39 = vld [vmem:[%s0 + $0x28] sm:$0x1]
    %v40 = vld [vmem:[%s0 + $0x30] sm:$0x1]
    %v41 = vld [vmem:[%s0 + $0x38] sm:$0x1]
    %v42 = vld [vmem:[%s1] sm:$0xff]
    %v43 = vld [vmem:[%s2] sm:$0xff]
    %45 = vset.pattern.permute.xlu0 0
    %46 = vperm.xlu0 %45, %v42
    %v47 = vpop.permute.xlu0 %46
    %v49 = vperm.slane %v34, 0
    %v50 = vperm.slane %v35, 0
    %v51 = vperm.slane %v36, 0
    %v52 = vperm.slane %v37, 0
    %v53 = vmul.f32 %v47, %v49
    %v54 = vmul.f32 %v47, %v50
    %v55 = vmul.f32 %v47, %v51
    %v56 = vmul.f32 %v47, %v52
    %57 = vset.pattern.permute.xlu0 1
    %58 = vperm.xlu0 %57, %v42
    %v59 = vpop.permute.xlu0 %58
    %v61 = vperm.slane %v34, 1
    %v62 = vperm.slane %v35, 1
    %v63 = vperm.slane %v36, 1
    %v64 = vperm.slane %v37, 1
    %v65 = vmul.f32 %v59, %v61
    %v66 = vmul.f32 %v59, %v62
    %v67 = vmul.f32 %v59, %v63
    %v68 = vmul.f32 %v59, %v64
    %v69 = vadd.f32 %v53, %v65
    %v70 = vadd.f32 %v54, %v66
    %v71 = vadd.f32 %v55, %v67
    %v72 = vadd.f32 %v56, %v68
    %73 = vset.pattern.permute.xlu0 2
    %74 = vperm.xlu0 %73, %v42
    %v75 = vpop.permute.xlu0 %74
    %v77 = vperm.slane %v34, 2
    %v78 = vperm.slane %v35, 2
    %v79 = vperm.slane %v36, 2
    %v80 = vperm.slane %v37, 2
    %v81 = vmul.f32 %v75, %v77
    %v82 = vmul.f32 %v75, %v78
    %v83 = vmul.f32 %v75, %v79
    %v84 = vmul.f32 %v75, %v80
    %v85 = vadd.f32 %v69, %v81
    %v86 = vadd.f32 %v70, %v82
    %v87 = vadd.f32 %v71, %v83
    %v88 = vadd.f32 %v72, %v84
    %89 = vset.pattern.permute.xlu0 3
    %90 = vperm.xlu0 %89, %v42
    %v91 = vpop.permute.xlu0 %90
    %v93 = vperm.slane %v34, 3
    %v94 = vperm.slane %v35, 3
    %v95 = vperm.slane %v36, 3
    %v96 = vperm.slane %v37, 3
    %v97 = vmul.f32 %v91, %v93
    %v98 = vmul.f32 %v91, %v94
    %v99 = vmul.f32 %v91, %v95
    %v100 = vmul.f32 %v91, %v96
    %v101 = vadd.f32 %v85, %v97
    %v102 = vadd.f32 %v86, %v98
    %v103 = vadd.f32 %v87, %v99
    %v104 = vadd.f32 %v88, %v100
    %105 = vset.pattern.permute.xlu0 4
    %106 = vperm.xlu0 %105, %v42
    %v107 = vpop.permute.xlu0 %106
    %v109 = vperm.slane %v34, 4
    %v110 = vperm.slane %v35, 4
    %v111 = vperm.slane %v36, 4
    %v112 = vperm.slane %v37, 4
    %v113 = vmul.f32 %v107, %v109
    %v114 = vmul.f32 %v107, %v110
    %v115 = vmul.f32 %v107, %v111
    %v116 = vmul.f32 %v107, %v112
    %v117 = vadd.f32 %v101, %v113
    %v118 = vadd.f32 %v102, %v114
    %v119 = vadd.f32 %v103, %v115
    %v120 = vadd.f32 %v104, %v116
    %121 = vset.pattern.permute.xlu0 5
    %122 = vperm.xlu0 %121, %v42
    %v123 = vpop.permute.xlu0 %122
    %v125 = vperm.slane %v34, 5
    %v126 = vperm.slane %v35, 5
    %v127 = vperm.slane %v36, 5
    %v128 = vperm.slane %v37, 5
    %v129 = vmul.f32 %v123, %v125
    %v130 = vmul.f32 %v123, %v126
    %v131 = vmul.f32 %v123, %v127
    %v132 = vmul.f32 %v123, %v128
    %v133 = vadd.f32 %v117, %v129
    %v134 = vadd.f32 %v118, %v130
    %v135 = vadd.f32 %v119, %v131
    %v136 = vadd.f32 %v120, %v132
    %137 = vset.pattern.permute.xlu0 6
    %138 = vperm.xlu0 %137, %v42
    %v139 = vpop.permute.xlu0 %138
    %v141 = vperm.slane %v34, 6
    %v142 = vperm.slane %v35, 6
    %v143 = vperm.slane %v36, 6
    %v144 = vperm.slane %v37, 6
    %v145 = vmul.f32 %v139, %v141
    %v146 = vmul.f32 %v139, %v142
    %v147 = vmul.f32 %v139, %v143
    %v148 = vmul.f32 %v139, %v144
    %v149 = vadd.f32 %v133, %v145
    %v150 = vadd.f32 %v134, %v146
    %v151 = vadd.f32 %v135, %v147
    %v152 = vadd.f32 %v136, %v148
    %153 = vset.pattern.permute.xlu0 7
    %154 = vperm.xlu0 %153, %v42
    %v155 = vpop.permute.xlu0 %154
    %v157 = vperm.slane %v34, 7
    %v158 = vperm.slane %v35, 7
    %v159 = vperm.slane %v36, 7
    %v160 = vperm.slane %v37, 7
    %v161 = vmul.f32 %v155, %v157
    %v162 = vmul.f32 %v155, %v158
    %v163 = vmul.f32 %v155, %v159
    %v164 = vmul.f32 %v155, %v160
    %v165 = vadd.f32 %v149, %v161
    %v166 = vadd.f32 %v150, %v162
    %v167 = vadd.f32 %v151, %v163
    %v168 = vadd.f32 %v152, %v164
    %169 = vset.pattern.permute.xlu0 8
    %170 = vperm.xlu0 %169, %v42
    %v171 = vpop.permute.xlu0 %170
    %v173 = vperm.slane %v38, 0
    %v174 = vperm.slane %v39, 0
    %v175 = vperm.slane %v40, 0
    %v176 = vperm.slane %v41, 0
    %v177 = vmul.f32 %v171, %v173
    %v178 = vmul.f32 %v171, %v174
    %v179 = vmul.f32 %v171, %v175
    %v180 = vmul.f32 %v171, %v176
    %v181 = vadd.f32 %v165, %v177
    %v182 = vadd.f32 %v166, %v178
    %v183 = vadd.f32 %v167, %v179
    %v184 = vadd.f32 %v168, %v180
    %186 = vset.pattern.permute.xlu0 0
    %187 = vperm.xlu0 %186, %v43
    %v188 = vpop.permute.xlu0 %187
    %v190 = vadd.f32 %v181, %v188
    %v191 = vadd.f32 %v182, %v188
    %v192 = vadd.f32 %v183, %v188
    %v193 = vadd.f32 %v184, %v188
    %194 = vset.pattern.permute.xlu0 9
    %195 = vperm.xlu0 %194, %v42
    %v196 = vpop.permute.xlu0 %195
    %v198 = vmul.f32 %v196, %v49
    %v199 = vmul.f32 %v196, %v50
    %v200 = vmul.f32 %v196, %v51
    %v201 = vmul.f32 %v196, %v52
    %202 = vset.pattern.permute.xlu0 10
    %203 = vperm.xlu0 %202, %v42
    %v204 = vpop.permute.xlu0 %203
    %v206 = vmul.f32 %v204, %v61
    %v207 = vmul.f32 %v204, %v62
    %v208 = vmul.f32 %v204, %v63
    %v209 = vmul.f32 %v204, %v64
    %v210 = vadd.f32 %v198, %v206
    %v211 = vadd.f32 %v199, %v207
    %v212 = vadd.f32 %v200, %v208
    %v213 = vadd.f32 %v201, %v209
    %214 = vset.pattern.permute.xlu0 11
    %215 = vperm.xlu0 %214, %v42
    %v216 = vpop.permute.xlu0 %215
    %v218 = vmul.f32 %v216, %v77
    %v219 = vmul.f32 %v216, %v78
    %v220 = vmul.f32 %v216, %v79
    %v221 = vmul.f32 %v216, %v80
    %v222 = vadd.f32 %v210, %v218
    %v223 = vadd.f32 %v211, %v219
    %v224 = vadd.f32 %v212, %v220
    %v225 = vadd.f32 %v213, %v221
    %226 = vset.pattern.permute.xlu0 12
    %227 = vperm.xlu0 %226, %v42
    %v228 = vpop.permute.xlu0 %227
    %v230 = vmul.f32 %v228, %v93
    %v231 = vmul.f32 %v228, %v94
    %v232 = vmul.f32 %v228, %v95
    %v233 = vmul.f32 %v228, %v96
    %v234 = vadd.f32 %v222, %v230
    %v235 = vadd.f32 %v223, %v231
    %v236 = vadd.f32 %v224, %v232
    %v237 = vadd.f32 %v225, %v233
    %238 = vset.pattern.permute.xlu0 13
    %239 = vperm.xlu0 %238, %v42
    %v240 = vpop.permute.xlu0 %239
    %v242 = vmul.f32 %v240, %v109
    %v243 = vmul.f32 %v240, %v110
    %v244 = vmul.f32 %v240, %v111
    %v245 = vmul.f32 %v240, %v112
    %v246 = vadd.f32 %v234, %v242
    %v247 = vadd.f32 %v235, %v243
    %v248 = vadd.f32 %v236, %v244
    %v249 = vadd.f32 %v237, %v245
    %250 = vset.pattern.permute.xlu0 14
    %251 = vperm.xlu0 %250, %v42
    %v252 = vpop.permute.xlu0 %251
    %v254 = vmul.f32 %v252, %v125
    %v255 = vmul.f32 %v252, %v126
    %v256 = vmul.f32 %v252, %v127
    %v257 = vmul.f32 %v252, %v128
    %v258 = vadd.f32 %v246, %v254
    %v259 = vadd.f32 %v247, %v255
    %v260 = vadd.f32 %v248, %v256
    %v261 = vadd.f32 %v249, %v257
    %262 = vset.pattern.permute.xlu0 15
    %263 = vperm.xlu0 %262, %v42
    %v264 = vpop.permute.xlu0 %263
    %v266 = vmul.f32 %v264, %v141
    %v267 = vmul.f32 %v264, %v142
    %v268 = vmul.f32 %v264, %v143
    %v269 = vmul.f32 %v264, %v144
    %v270 = vadd.f32 %v258, %v266
    %v271 = vadd.f32 %v259, %v267
    %v272 = vadd.f32 %v260, %v268
    %v273 = vadd.f32 %v261, %v269
    %274 = vset.pattern.permute.xlu0 16
    %275 = vperm.xlu0 %274, %v42
    %v276 = vpop.permute.xlu0 %275
    %v278 = vmul.f32 %v276, %v157
    %v279 = vmul.f32 %v276, %v158
    %v280 = vmul.f32 %v276, %v159
    %v281 = vmul.f32 %v276, %v160
    %v282 = vadd.f32 %v270, %v278
    %v283 = vadd.f32 %v271, %v279
    %v284 = vadd.f32 %v272, %v280
    %v285 = vadd.f32 %v273, %v281
    %286 = vset.pattern.permute.xlu0 17
    %287 = vperm.xlu0 %286, %v42
    %v288 = vpop.permute.xlu0 %287
    %v290 = vmul.f32 %v288, %v173
    %v291 = vmul.f32 %v288, %v174
    %v292 = vmul.f32 %v288, %v175
    %v293 = vmul.f32 %v288, %v176
    %v294 = vadd.f32 %v282, %v290
    %v295 = vadd.f32 %v283, %v291
    %v296 = vadd.f32 %v284, %v292
    %v297 = vadd.f32 %v285, %v293
    %298 = vset.pattern.permute.xlu0 1
    %299 = vperm.xlu0 %298, %v43
    %v300 = vpop.permute.xlu0 %299
    %v302 = vadd.f32 %v294, %v300
    %v303 = vadd.f32 %v295, %v300
    %v304 = vadd.f32 %v296, %v300
    %v305 = vadd.f32 %v297, %v300
    %v306 = vadd.f32 %v190, %v191
    %v307 = vadd.f32 %v306, %v302
    %v308 = vadd.f32 %v307, %v303
    %v309 = vadd.f32 %v308, %v192
    %v310 = vadd.f32 %v309, %v193
    %v311 = vadd.f32 %v310, %v304
    %v312 = vadd.f32 %v311, %v305
    %313 = vadd.xlane.f32.xlu0 %v312
    %v314 = vpop.xlane.xlu0 %313
    %v315 = vrcp.pop 1024.0
    %v316 = vmul.f32 1024.0, %v315
    %v317 = vsub.f32 1.0, %v316
    %v318 = vmul.f32 %v315, %v317
    %v319 = vadd.f32 %v315, %v318
    %vm320 = vweird.f32 %v315
    %v321 = vsel %vm320, %v315, %v319
    %v322 = vmul.f32 %v314, %v321
    %v323 = vsub.f32 %v190, %v322
    %v324 = vsub.f32 %v191, %v322
    %v325 = vsub.f32 %v302, %v322
    %v326 = vsub.f32 %v303, %v322
    %v327 = vsub.f32 %v192, %v322
    %v328 = vsub.f32 %v193, %v322
    %v329 = vsub.f32 %v304, %v322
    %v330 = vsub.f32 %v305, %v322
    %v331 = vmul.f32 %v323, %v323
    %v332 = vmul.f32 %v324, %v324
    %v333 = vmul.f32 %v325, %v325
    %v334 = vmul.f32 %v326, %v326
    %v335 = vmul.f32 %v327, %v327
    %v336 = vmul.f32 %v328, %v328
    %v337 = vmul.f32 %v329, %v329
    %v338 = vmul.f32 %v330, %v330
    %v339 = vadd.f32 %v331, %v332
    %v340 = vadd.f32 %v339, %v333
    %v341 = vadd.f32 %v340, %v334
    %v342 = vadd.f32 %v341, %v335
    %v343 = vadd.f32 %v342, %v336
    %v344 = vadd.f32 %v343, %v337
    %v345 = vadd.f32 %v344, %v338
    %346 = vadd.xlane.f32.xlu0 %v345
    %v347 = vpop.xlane.xlu0 %346
    %v348 = vmul.f32 %v347, %v321
    %v349 = vadd.f32 %v348, 1e-05
    %v350 = vrsqrt.pop %v349
    %v351 = vmul.f32 %v350, %v349
    %v352 = vmul.f32 %v351, %v350
    %v353 = vmul.f32 0.5, %v352
    %v354 = vsub.f32 1.5, %v353
    %v355 = vmul.f32 %v350, %v354
    %vm356 = vweird.f32 %v349
    %vm357 = vweird.f32 %v350
    %vm358 = vmor %vm356, %vm357
    %v359 = vsel %vm358, %v350, %v355
    %v360 = vmul.f32 %v323, %v359
    %v361 = vmul.f32 %v324, %v359
    %v362 = vmul.f32 %v325, %v359
    %v363 = vmul.f32 %v326, %v359
    %v364 = vmul.f32 %v327, %v359
    %v365 = vmul.f32 %v328, %v359
    %v366 = vmul.f32 %v329, %v359
    %v367 = vmul.f32 %v330, %v359
    %vm368 = vcmp.ge.f32.partialorder %v360, 0.0
    %vm369 = vcmp.ge.f32.partialorder %v361, 0.0
    %vm370 = vcmp.ge.f32.partialorder %v362, 0.0
    %vm371 = vcmp.ge.f32.partialorder %v363, 0.0
    %vm372 = vcmp.ge.f32.partialorder %v364, 0.0
    %vm373 = vcmp.ge.f32.partialorder %v365, 0.0
    %vm374 = vcmp.ge.f32.partialorder %v366, 0.0
    %vm375 = vcmp.ge.f32.partialorder %v367, 0.0
    %v376 = vmul.f32 %v360, 0.01
    %v377 = vmul.f32 %v361, 0.01
    %v378 = vmul.f32 %v362, 0.01
    %v379 = vmul.f32 %v363, 0.01
    %v380 = vmul.f32 %v364, 0.01
    %v381 = vmul.f32 %v365, 0.01
    %v382 = vmul.f32 %v366, 0.01
    %v383 = vmul.f32 %v367, 0.01
    %v384 = vsel %vm368, %v360, %v376
    %v385 = vsel %vm369, %v361, %v377
    %v386 = vsel %vm370, %v362, %v378
    %v387 = vsel %vm371, %v363, %v379
    %v388 = vsel %vm372, %v364, %v380
    %v389 = vsel %vm373, %v365, %v381
    %v390 = vsel %vm374, %v366, %v382
    %v391 = vsel %vm375, %v367, %v383
    %v392 = vmul.f32 %v384, %v384
    %v393 = vmul.f32 %v385, %v385
    %v394 = vmul.f32 %v386, %v386
    %v395 = vmul.f32 %v387, %v387
    %v396 = vmul.f32 %v388, %v388
    %v397 = vmul.f32 %v389, %v389
    %v398 = vmul.f32 %v390, %v390
    %v399 = vmul.f32 %v391, %v391
    %v400 = vrot.slane %v392, 4
    %v401 = vadd.f32 %v392, %v400
    %v402 = vrot.slane %v401, 2
    %v403 = vadd.f32 %v401, %v402
    %v404 = vrot.slane %v403, 1
    %v405 = vadd.f32 %v403, %v404
    %v406 = vrot.slane %v393, 4
    %v407 = vadd.f32 %v393, %v406
    %v408 = vrot.slane %v407, 2
    %v409 = vadd.f32 %v407, %v408
    %v410 = vrot.slane %v409, 1
    %v411 = vadd.f32 %v409, %v410
    %v412 = vrot.slane %v394, 4
    %v413 = vadd.f32 %v394, %v412
    %v414 = vrot.slane %v413, 2
    %v415 = vadd.f32 %v413, %v414
    %v416 = vrot.slane %v415, 1
    %v417 = vadd.f32 %v415, %v416
    %v418 = vrot.slane %v395, 4
    %v419 = vadd.f32 %v395, %v418
    %v420 = vrot.slane %v419, 2
    %v421 = vadd.f32 %v419, %v420
    %v422 = vrot.slane %v421, 1
    %v423 = vadd.f32 %v421, %v422
    %v424 = vrot.slane %v396, 4
    %v425 = vadd.f32 %v396, %v424
    %v426 = vrot.slane %v425, 2
    %v427 = vadd.f32 %v425, %v426
    %v428 = vrot.slane %v427, 1
    %v429 = vadd.f32 %v427, %v428
    %v430 = vrot.slane %v397, 4
    %v431 = vadd.f32 %v397, %v430
    %v432 = vrot.slane %v431, 2
    %v433 = vadd.f32 %v431, %v432
    %v434 = vrot.slane %v433, 1
    %v435 = vadd.f32 %v433, %v434
    %v436 = vrot.slane %v398, 4
    %v437 = vadd.f32 %v398, %v436
    %v438 = vrot.slane %v437, 2
    %v439 = vadd.f32 %v437, %v438
    %v440 = vrot.slane %v439, 1
    %v441 = vadd.f32 %v439, %v440
    %v442 = vrot.slane %v399, 4
    %v443 = vadd.f32 %v399, %v442
    %v444 = vrot.slane %v443, 2
    %v445 = vadd.f32 %v443, %v444
    %v446 = vrot.slane %v445, 1
    %v447 = vadd.f32 %v445, %v446
    %v448 = vrsqrt.pop %v405
    %v449 = vmul.f32 %v448, %v405
    %v450 = vmul.f32 %v449, %v448
    %v451 = vmul.f32 0.5, %v450
    %v452 = vsub.f32 1.5, %v451
    %v453 = vmul.f32 %v448, %v452
    %vm454 = vweird.f32 %v405
    %vm455 = vweird.f32 %v448
    %vm456 = vmor %vm454, %vm455
    %v457 = vsel %vm456, %v448, %v453
    %v458 = vrsqrt.pop %v411
    %v459 = vmul.f32 %v458, %v411
    %v460 = vmul.f32 %v459, %v458
    %v461 = vmul.f32 0.5, %v460
    %v462 = vsub.f32 1.5, %v461
    %v463 = vmul.f32 %v458, %v462
    %vm464 = vweird.f32 %v411
    %vm465 = vweird.f32 %v458
    %vm466 = vmor %vm464, %vm465
    %v467 = vsel %vm466, %v458, %v463
    %v468 = vrsqrt.pop %v417
    %v469 = vmul.f32 %v468, %v417
    %v470 = vmul.f32 %v469, %v468
    %v471 = vmul.f32 0.5, %v470
    %v472 = vsub.f32 1.5, %v471
    %v473 = vmul.f32 %v468, %v472
    %vm474 = vweird.f32 %v417
    %vm475 = vweird.f32 %v468
    %vm476 = vmor %vm474, %vm475
    %v477 = vsel %vm476, %v468, %v473
    %v478 = vrsqrt.pop %v423
    %v479 = vmul.f32 %v478, %v423
    %v480 = vmul.f32 %v479, %v478
    %v481 = vmul.f32 0.5, %v480
    %v482 = vsub.f32 1.5, %v481
    %v483 = vmul.f32 %v478, %v482
    %vm484 = vweird.f32 %v423
    %vm485 = vweird.f32 %v478
    %vm486 = vmor %vm484, %vm485
    %v487 = vsel %vm486, %v478, %v483
    %v488 = vrsqrt.pop %v429
    %v489 = vmul.f32 %v488, %v429
    %v490 = vmul.f32 %v489, %v488
    %v491 = vmul.f32 0.5, %v490
    %v492 = vsub.f32 1.5, %v491
    %v493 = vmul.f32 %v488, %v492
    %vm494 = vweird.f32 %v429
    %vm495 = vweird.f32 %v488
    %vm496 = vmor %vm494, %vm495
    %v497 = vsel %vm496, %v488, %v493
    %v498 = vrsqrt.pop %v435
    %v499 = vmul.f32 %v498, %v435
    %v500 = vmul.f32 %v499, %v498
    %v501 = vmul.f32 0.5, %v500
    %v502 = vsub.f32 1.5, %v501
    %v503 = vmul.f32 %v498, %v502
    %vm504 = vweird.f32 %v435
    %vm505 = vweird.f32 %v498
    %vm506 = vmor %vm504, %vm505
    %v507 = vsel %vm506, %v498, %v503
    %v508 = vrsqrt.pop %v441
    %v509 = vmul.f32 %v508, %v441
    %v510 = vmul.f32 %v509, %v508
    %v511 = vmul.f32 0.5, %v510
    %v512 = vsub.f32 1.5, %v511
    %v513 = vmul.f32 %v508, %v512
    %vm514 = vweird.f32 %v441
    %vm515 = vweird.f32 %v508
    %vm516 = vmor %vm514, %vm515
    %v517 = vsel %vm516, %v508, %v513
    %v518 = vrsqrt.pop %v447
    %v519 = vmul.f32 %v518, %v447
    %v520 = vmul.f32 %v519, %v518
    %v521 = vmul.f32 0.5, %v520
    %v522 = vsub.f32 1.5, %v521
    %v523 = vmul.f32 %v518, %v522
    %vm524 = vweird.f32 %v447
    %vm525 = vweird.f32 %v518
    %vm526 = vmor %vm524, %vm525
    %v527 = vsel %vm526, %v518, %v523
    %v528 = vmul.f32 %v405, %v457
    %v529 = vmul.f32 %v411, %v467
    %v530 = vmul.f32 %v417, %v477
    %v531 = vmul.f32 %v423, %v487
    %v532 = vmul.f32 %v429, %v497
    %v533 = vmul.f32 %v435, %v507
    %v534 = vmul.f32 %v441, %v517
    %v535 = vmul.f32 %v447, %v527
    %v536 = vadd.f32 %v405, 1.0
    %v537 = vadd.f32 %v411, 1.0
    %v538 = vadd.f32 %v417, 1.0
    %v539 = vadd.f32 %v423, 1.0
    %v540 = vadd.f32 %v429, 1.0
    %v541 = vadd.f32 %v435, 1.0
    %v542 = vadd.f32 %v441, 1.0
    %v543 = vadd.f32 %v447, 1.0
    %v544 = vrcp.pop %v536
    %v545 = vrcp.pop %v537
    %v546 = vrcp.pop %v538
    %v547 = vrcp.pop %v539
    %v548 = vrcp.pop %v540
    %v549 = vrcp.pop %v541
    %v550 = vrcp.pop %v542
    %v551 = vrcp.pop %v543
    %v552 = vmul.f32 %v528, %v544
    %v553 = vmul.f32 %v529, %v545
    %v554 = vmul.f32 %v530, %v546
    %v555 = vmul.f32 %v531, %v547
    %v556 = vmul.f32 %v532, %v548
    %v557 = vmul.f32 %v533, %v549
    %v558 = vmul.f32 %v534, %v550
    %v559 = vmul.f32 %v535, %v551
    %v560 = vmul.f32 %v384, %v552
    %v561 = vmul.f32 %v385, %v553
    %v562 = vmul.f32 %v386, %v554
    %v563 = vmul.f32 %v387, %v555
    %v564 = vmul.f32 %v388, %v556
    %v565 = vmul.f32 %v389, %v557
    %v566 = vmul.f32 %v390, %v558
    %v567 = vmul.f32 %v391, %v559
    %v568 = vld [vmem:[#allocation3] sm:$0xff]
    %v569 = vld [vmem:[#allocation3 + $0x8] sm:$0xff]
    %v570 = vld [vmem:[#allocation3 + $0x10] sm:$0xff]
    %v571 = vld [vmem:[#allocation3 + $0x18] sm:$0xff]
    %v572 = vld [vmem:[#allocation3 + $0x20] sm:$0xff]
    %v573 = vld [vmem:[#allocation3 + $0x28] sm:$0xff]
    %v574 = vld [vmem:[#allocation3 + $0x30] sm:$0xff]
    %v575 = vld [vmem:[#allocation3 + $0x38] sm:$0xff]
    %v576 = vperm.slane %v560, 0
    %v577 = vperm.slane %v561, 0
    %v578 = vperm.slane %v562, 0
    %v579 = vperm.slane %v563, 0
    %v580 = vmul.f32 %v568, %v576
    %v581 = vmul.f32 %v569, %v577
    %v582 = vmul.f32 %v570, %v578
    %v583 = vmul.f32 %v571, %v579
    %v584 = vmul.f32 %v572, %v576
    %v585 = vmul.f32 %v573, %v577
    %v586 = vmul.f32 %v574, %v578
    %v587 = vmul.f32 %v575, %v579
    %v588 = vadd.f32 %v580, 0.0
    %v589 = vadd.f32 %v581, 0.0
    %v590 = vadd.f32 %v582, 0.0
    %v591 = vadd.f32 %v583, 0.0
    %v592 = vadd.f32 %v584, 0.0
    %v593 = vadd.f32 %v585, 0.0
    %v594 = vadd.f32 %v586, 0.0
    %v595 = vadd.f32 %v587, 0.0
    %v596 = vperm.slane %v564, 0
    %v597 = vperm.slane %v565, 0
    %v598 = vperm.slane %v566, 0
    %v599 = vperm.slane %v567, 0
    %v600 = vmul.f32 %v568, %v596
    %v601 = vmul.f32 %v569, %v597
    %v602 = vmul.f32 %v570, %v598
    %v603 = vmul.f32 %v571, %v599
    %v604 = vmul.f32 %v572, %v596
    %v605 = vmul.f32 %v573, %v597
    %v606 = vmul.f32 %v574, %v598
    %v607 = vmul.f32 %v575, %v599
    %v608 = vadd.f32 %v600, 0.0
    %v609 = vadd.f32 %v601, 0.0
    %v610 = vadd.f32 %v602, 0.0
    %v611 = vadd.f32 %v603, 0.0
    %v612 = vadd.f32 %v604, 0.0
    %v613 = vadd.f32 %v605, 0.0
    %v614 = vadd.f32 %v606, 0.0
    %v615 = vadd.f32 %v607, 0.0
    %v616 = vld [vmem:[#allocation3 + $0x40] sm:$0xff]
    %v617 = vld [vmem:[#allocation3 + $0x48] sm:$0xff]
    %v618 = vld [vmem:[#allocation3 + $0x50] sm:$0xff]
    %v619 = vld [vmem:[#allocation3 + $0x58] sm:$0xff]
    %v620 = vld [vmem:[#allocation3 + $0x60] sm:$0xff]
    %v621 = vld [vmem:[#allocation3 + $0x68] sm:$0xff]
    %v622 = vld [vmem:[#allocation3 + $0x70] sm:$0xff]
    %v623 = vld [vmem:[#allocation3 + $0x78] sm:$0xff]
    %v624 = vperm.slane %v560, 1
    %v625 = vperm.slane %v561, 1
    %v626 = vperm.slane %v562, 1
    %v627 = vperm.slane %v563, 1
    %v628 = vmul.f32 %v616, %v624
    %v629 = vmul.f32 %v617, %v625
    %v630 = vmul.f32 %v618, %v626
    %v631 = vmul.f32 %v619, %v627
    %v632 = vmul.f32 %v620, %v624
    %v633 = vmul.f32 %v621, %v625
    %v634 = vmul.f32 %v622, %v626
    %v635 = vmul.f32 %v623, %v627
    %v636 = vadd.f32 %v588, %v628
    %v637 = vadd.f32 %v589, %v629
    %v638 = vadd.f32 %v590, %v630
    %v639 = vadd.f32 %v591, %v631
    %v640 = vadd.f32 %v592, %v632
    %v641 = vadd.f32 %v593, %v633
    %v642 = vadd.f32 %v594, %v634
    %v643 = vadd.f32 %v595, %v635
    %v644 = vperm.slane %v564, 1
    %v645 = vperm.slane %v565, 1
    %v646 = vperm.slane %v566, 1
    %v647 = vperm.slane %v567, 1
    %v648 = vmul.f32 %v616, %v644
    %v649 = vmul.f32 %v617, %v645
    %v650 = vmul.f32 %v618, %v646
    %v651 = vmul.f32 %v619, %v647
    %v652 = vmul.f32 %v620, %v644
    %v653 = vmul.f32 %v621, %v645
    %v654 = vmul.f32 %v622, %v646
    %v655 = vmul.f32 %v623, %v647
    %v656 = vadd.f32 %v608, %v648
    %v657 = vadd.f32 %v609, %v649
    %v658 = vadd.f32 %v610, %v650
    %v659 = vadd.f32 %v611, %v651
    %v660 = vadd.f32 %v612, %v652
    %v661 = vadd.f32 %v613, %v653
    %v662 = vadd.f32 %v614, %v654
    %v663 = vadd.f32 %v615, %v655
    %v664 = vld [vmem:[#allocation3 + $0x80] sm:$0xff]
    %v665 = vld [vmem:[#allocation3 + $0x88] sm:$0xff]
    %v666 = vld [vmem:[#allocation3 + $0x90] sm:$0xff]
    %v667 = vld [vmem:[#allocation3 + $0x98] sm:$0xff]
    %v668 = vld [vmem:[#allocation3 + $0xa0] sm:$0xff]
    %v669 = vld [vmem:[#allocation3 + $0xa8] sm:$0xff]
    %v670 = vld [vmem:[#allocation3 + $0xb0] sm:$0xff]
    %v671 = vld [vmem:[#allocation3 + $0xb8] sm:$0xff]
    %v672 = vperm.slane %v560, 2
    %v673 = vperm.slane %v561, 2
    %v674 = vperm.slane %v562, 2
    %v675 = vperm.slane %v563, 2
    %v676 = vmul.f32 %v664, %v672
    %v677 = vmul.f32 %v665, %v673
    %v678 = vmul.f32 %v666, %v674
    %v679 = vmul.f32 %v667, %v675
    %v680 = vmul.f32 %v668, %v672
    %v681 = vmul.f32 %v669, %v673
    %v682 = vmul.f32 %v670, %v674
    %v683 = vmul.f32 %v671, %v675
    %v684 = vadd.f32 %v636, %v676
    %v685 = vadd.f32 %v637, %v677
    %v686 = vadd.f32 %v638, %v678
    %v687 = vadd.f32 %v639, %v679
    %v688 = vadd.f32 %v640, %v680
    %v689 = vadd.f32 %v641, %v681
    %v690 = vadd.f32 %v642, %v682
    %v691 = vadd.f32 %v643, %v683
    %v692 = vperm.slane %v564, 2
    %v693 = vperm.slane %v565, 2
    %v694 = vperm.slane %v566, 2
    %v695 = vperm.slane %v567, 2
    %v696 = vmul.f32 %v664, %v692
    %v697 = vmul.f32 %v665, %v693
    %v698 = vmul.f32 %v666, %v694
    %v699 = vmul.f32 %v667, %v695
    %v700 = vmul.f32 %v668, %v692
    %v701 = vmul.f32 %v669, %v693
    %v702 = vmul.f32 %v670, %v694
    %v703 = vmul.f32 %v671, %v695
    %v704 = vadd.f32 %v656, %v696
    %v705 = vadd.f32 %v657, %v697
    %v706 = vadd.f32 %v658, %v698
    %v707 = vadd.f32 %v659, %v699
    %v708 = vadd.f32 %v660, %v700
    %v709 = vadd.f32 %v661, %v701
    %v710 = vadd.f32 %v662, %v702
    %v711 = vadd.f32 %v663, %v703
    %v712 = vld [vmem:[#allocation3 + $0xc0] sm:$0xff]
    %v713 = vld [vmem:[#allocation3 + $0xc8] sm:$0xff]
    %v714 = vld [vmem:[#allocation3 + $0xd0] sm:$0xff]
    %v715 = vld [vmem:[#allocation3 + $0xd8] sm:$0xff]
    %v716 = vld [vmem:[#allocation3 + $0xe0] sm:$0xff]
    %v717 = vld [vmem:[#allocation3 + $0xe8] sm:$0xff]
    %v718 = vld [vmem:[#allocation3 + $0xf0] sm:$0xff]
    %v719 = vld [vmem:[#allocation3 + $0xf8] sm:$0xff]
    %v720 = vperm.slane %v560, 3
    %v721 = vperm.slane %v561, 3
    %v722 = vperm.slane %v562, 3
    %v723 = vperm.slane %v563, 3
    %v724 = vmul.f32 %v712, %v720
    %v725 = vmul.f32 %v713, %v721
    %v726 = vmul.f32 %v714, %v722
    %v727 = vmul.f32 %v715, %v723
    %v728 = vmul.f32 %v716, %v720
    %v729 = vmul.f32 %v717, %v721
    %v730 = vmul.f32 %v718, %v722
    %v731 = vmul.f32 %v719, %v723
    %v732 = vadd.f32 %v684, %v724
    %v733 = vadd.f32 %v685, %v725
    %v734 = vadd.f32 %v686, %v726
    %v735 = vadd.f32 %v687, %v727
    %v736 = vadd.f32 %v688, %v728
    %v737 = vadd.f32 %v689, %v729
    %v738 = vadd.f32 %v690, %v730
    %v739 = vadd.f32 %v691, %v731
    %v740 = vperm.slane %v564, 3
    %v741 = vperm.slane %v565, 3
    %v742 = vperm.slane %v566, 3
    %v743 = vperm.slane %v567, 3
    %v744 = vmul.f32 %v712, %v740
    %v745 = vmul.f32 %v713, %v741
    %v746 = vmul.f32 %v714, %v742
    %v747 = vmul.f32 %v715, %v743
    %v748 = vmul.f32 %v716, %v740
    %v749 = vmul.f32 %v717, %v741
    %v750 = vmul.f32 %v718, %v742
    %v751 = vmul.f32 %v719, %v743
    %v752 = vadd.f32 %v704, %v744
    %v753 = vadd.f32 %v705, %v745
    %v754 = vadd.f32 %v706, %v746
    %v755 = vadd.f32 %v707, %v747
    %v756 = vadd.f32 %v708, %v748
    %v757 = vadd.f32 %v709, %v749
    %v758 = vadd.f32 %v710, %v750
    %v759 = vadd.f32 %v711, %v751
    %v760 = vld [vmem:[#allocation3 + $0x100] sm:$0xff]
    %v761 = vld [vmem:[#allocation3 + $0x108] sm:$0xff]
    %v762 = vld [vmem:[#allocation3 + $0x110] sm:$0xff]
    %v763 = vld [vmem:[#allocation3 + $0x118] sm:$0xff]
    %v764 = vld [vmem:[#allocation3 + $0x120] sm:$0xff]
    %v765 = vld [vmem:[#allocation3 + $0x128] sm:$0xff]
    %v766 = vld [vmem:[#allocation3 + $0x130] sm:$0xff]
    %v767 = vld [vmem:[#allocation3 + $0x138] sm:$0xff]
    %v768 = vperm.slane %v560, 4
    %v769 = vperm.slane %v561, 4
    %v770 = vperm.slane %v562, 4
    %v771 = vperm.slane %v563, 4
    %v772 = vmul.f32 %v760, %v768
    %v773 = vmul.f32 %v761, %v769
    %v774 = vmul.f32 %v762, %v770
    %v775 = vmul.f32 %v763, %v771
    %v776 = vmul.f32 %v764, %v768
    %v777 = vmul.f32 %v765, %v769
    %v778 = vmul.f32 %v766, %v770
    %v779 = vmul.f32 %v767, %v771
    %v780 = vadd.f32 %v732, %v772
    %v781 = vadd.f32 %v733, %v773
    %v782 = vadd.f32 %v734, %v774
    %v783 = vadd.f32 %v735, %v775
    %v784 = vadd.f32 %v736, %v776
    %v785 = vadd.f32 %v737, %v777
    %v786 = vadd.f32 %v738, %v778
    %v787 = vadd.f32 %v739, %v779
    %v788 = vperm.slane %v564, 4
    %v789 = vperm.slane %v565, 4
    %v790 = vperm.slane %v566, 4
    %v791 = vperm.slane %v567, 4
    %v792 = vmul.f32 %v760, %v788
    %v793 = vmul.f32 %v761, %v789
    %v794 = vmul.f32 %v762, %v790
    %v795 = vmul.f32 %v763, %v791
    %v796 = vmul.f32 %v764, %v788
    %v797 = vmul.f32 %v765, %v789
    %v798 = vmul.f32 %v766, %v790
    %v799 = vmul.f32 %v767, %v791
    %v800 = vadd.f32 %v752, %v792
    %v801 = vadd.f32 %v753, %v793
    %v802 = vadd.f32 %v754, %v794
    %v803 = vadd.f32 %v755, %v795
    %v804 = vadd.f32 %v756, %v796
    %v805 = vadd.f32 %v757, %v797
    %v806 = vadd.f32 %v758, %v798
    %v807 = vadd.f32 %v759, %v799
    %v808 = vld [vmem:[#allocation3 + $0x140] sm:$0xff]
    %v809 = vld [vmem:[#allocation3 + $0x148] sm:$0xff]
    %v810 = vld [vmem:[#allocation3 + $0x150] sm:$0xff]
    %v811 = vld [vmem:[#allocation3 + $0x158] sm:$0xff]
    %v812 = vld [vmem:[#allocation3 + $0x160] sm:$0xff]
    %v813 = vld [vmem:[#allocation3 + $0x168] sm:$0xff]
    %v814 = vld [vmem:[#allocation3 + $0x170] sm:$0xff]
    %v815 = vld [vmem:[#allocation3 + $0x178] sm:$0xff]
    %v816 = vperm.slane %v560, 5
    %v817 = vperm.slane %v561, 5
    %v818 = vperm.slane %v562, 5
    %v819 = vperm.slane %v563, 5
    %v820 = vmul.f32 %v808, %v816
    %v821 = vmul.f32 %v809, %v817
    %v822 = vmul.f32 %v810, %v818
    %v823 = vmul.f32 %v811, %v819
    %v824 = vmul.f32 %v812, %v816
    %v825 = vmul.f32 %v813, %v817
    %v826 = vmul.f32 %v814, %v818
    %v827 = vmul.f32 %v815, %v819
    %v828 = vadd.f32 %v780, %v820
    %v829 = vadd.f32 %v781, %v821
    %v830 = vadd.f32 %v782, %v822
    %v831 = vadd.f32 %v783, %v823
    %v832 = vadd.f32 %v784, %v824
    %v833 = vadd.f32 %v785, %v825
    %v834 = vadd.f32 %v786, %v826
    %v835 = vadd.f32 %v787, %v827
    %v836 = vperm.slane %v564, 5
    %v837 = vperm.slane %v565, 5
    %v838 = vperm.slane %v566, 5
    %v839 = vperm.slane %v567, 5
    %v840 = vmul.f32 %v808, %v836
    %v841 = vmul.f32 %v809, %v837
    %v842 = vmul.f32 %v810, %v838
    %v843 = vmul.f32 %v811, %v839
    %v844 = vmul.f32 %v812, %v836
    %v845 = vmul.f32 %v813, %v837
    %v846 = vmul.f32 %v814, %v838
    %v847 = vmul.f32 %v815, %v839
    %v848 = vadd.f32 %v800, %v840
    %v849 = vadd.f32 %v801, %v841
    %v850 = vadd.f32 %v802, %v842
    %v851 = vadd.f32 %v803, %v843
    %v852 = vadd.f32 %v804, %v844
    %v853 = vadd.f32 %v805, %v845
    %v854 = vadd.f32 %v806, %v846
    %v855 = vadd.f32 %v807, %v847
    %v856 = vld [vmem:[#allocation3 + $0x180] sm:$0xff]
    %v857 = vld [vmem:[#allocation3 + $0x188] sm:$0xff]
    %v858 = vld [vmem:[#allocation3 + $0x190] sm:$0xff]
    %v859 = vld [vmem:[#allocation3 + $0x198] sm:$0xff]
    %v860 = vld [vmem:[#allocation3 + $0x1a0] sm:$0xff]
    %v861 = vld [vmem:[#allocation3 + $0x1a8] sm:$0xff]
    %v862 = vld [vmem:[#allocation3 + $0x1b0] sm:$0xff]
    %v863 = vld [vmem:[#allocation3 + $0x1b8] sm:$0xff]
    %v864 = vperm.slane %v560, 6
    %v865 = vperm.slane %v561, 6
    %v866 = vperm.slane %v562, 6
    %v867 = vperm.slane %v563, 6
    %v868 = vmul.f32 %v856, %v864
    %v869 = vmul.f32 %v857, %v865
    %v870 = vmul.f32 %v858, %v866
    %v871 = vmul.f32 %v859, %v867
    %v872 = vmul.f32 %v860, %v864
    %v873 = vmul.f32 %v861, %v865
    %v874 = vmul.f32 %v862, %v866
    %v875 = vmul.f32 %v863, %v867
    %v876 = vadd.f32 %v828, %v868
    %v877 = vadd.f32 %v829, %v869
    %v878 = vadd.f32 %v830, %v870
    %v879 = vadd.f32 %v831, %v871
    %v880 = vadd.f32 %v832, %v872
    %v881 = vadd.f32 %v833, %v873
    %v882 = vadd.f32 %v834, %v874
    %v883 = vadd.f32 %v835, %v875
    %v884 = vperm.slane %v564, 6
    %v885 = vperm.slane %v565, 6
    %v886 = vperm.slane %v566, 6
    %v887 = vperm.slane %v567, 6
    %v888 = vmul.f32 %v856, %v884
    %v889 = vmul.f32 %v857, %v885
    %v890 = vmul.f32 %v858, %v886
    %v891 = vmul.f32 %v859, %v887
    %v892 = vmul.f32 %v860, %v884
    %v893 = vmul.f32 %v861, %v885
    %v894 = vmul.f32 %v862, %v886
    %v895 = vmul.f32 %v863, %v887
    %v896 = vadd.f32 %v848, %v888
    %v897 = vadd.f32 %v849, %v889
    %v898 = vadd.f32 %v850, %v890
    %v899 = vadd.f32 %v851, %v891
    %v900 = vadd.f32 %v852, %v892
    %v901 = vadd.f32 %v853, %v893
    %v902 = vadd.f32 %v854, %v894
    %v903 = vadd.f32 %v855, %v895
    %v904 = vld [vmem:[#allocation3 + $0x1c0] sm:$0xff]
    %v905 = vld [vmem:[#allocation3 + $0x1c8] sm:$0xff]
    %v906 = vld [vmem:[#allocation3 + $0x1d0] sm:$0xff]
    %v907 = vld [vmem:[#allocation3 + $0x1d8] sm:$0xff]
    %v908 = vld [vmem:[#allocation3 + $0x1e0] sm:$0xff]
    %v909 = vld [vmem:[#allocation3 + $0x1e8] sm:$0xff]
    %v910 = vld [vmem:[#allocation3 + $0x1f0] sm:$0xff]
    %v911 = vld [vmem:[#allocation3 + $0x1f8] sm:$0xff]
    %v912 = vperm.slane %v560, 7
    %v913 = vperm.slane %v561, 7
    %v914 = vperm.slane %v562, 7
    %v915 = vperm.slane %v563, 7
    %v916 = vmul.f32 %v904, %v912
    %v917 = vmul.f32 %v905, %v913
    %v918 = vmul.f32 %v906, %v914
    %v919 = vmul.f32 %v907, %v915
    %v920 = vmul.f32 %v908, %v912
    %v921 = vmul.f32 %v909, %v913
    %v922 = vmul.f32 %v910, %v914
    %v923 = vmul.f32 %v911, %v915
    %v924 = vadd.f32 %v876, %v916
    %v925 = vadd.f32 %v877, %v917
    %v926 = vadd.f32 %v878, %v918
    %v927 = vadd.f32 %v879, %v919
    %v928 = vadd.f32 %v880, %v920
    %v929 = vadd.f32 %v881, %v921
    %v930 = vadd.f32 %v882, %v922
    %v931 = vadd.f32 %v883, %v923
    %v932 = vperm.slane %v564, 7
    %v933 = vperm.slane %v565, 7
    %v934 = vperm.slane %v566, 7
    %v935 = vperm.slane %v567, 7
    %v936 = vmul.f32 %v904, %v932
    %v937 = vmul.f32 %v905, %v933
    %v938 = vmul.f32 %v906, %v934
    %v939 = vmul.f32 %v907, %v935
    %v940 = vmul.f32 %v908, %v932
    %v941 = vmul.f32 %v909, %v933
    %v942 = vmul.f32 %v910, %v934
    %v943 = vmul.f32 %v911, %v935
    %v944 = vadd.f32 %v896, %v936
    %v945 = vadd.f32 %v897, %v937
    %v946 = vadd.f32 %v898, %v938
    %v947 = vadd.f32 %v899, %v939
    %v948 = vadd.f32 %v900, %v940
    %v949 = vadd.f32 %v901, %v941
    %v950 = vadd.f32 %v902, %v942
    %v951 = vadd.f32 %v903, %v943
    %952 = vst [vmem:[#allocation2] sm:$0xff] %v924
    %953 = vst [vmem:[#allocation2 + $0x8] sm:$0xff] %v925
    %954 = vst [vmem:[#allocation2 + $0x10] sm:$0xff] %v926
    %955 = vst [vmem:[#allocation2 + $0x18] sm:$0xff] %v927
    %956 = vst [vmem:[#allocation2 + $0x20] sm:$0xff] %v928
    %957 = vst [vmem:[#allocation2 + $0x28] sm:$0xff] %v929
    %958 = vst [vmem:[#allocation2 + $0x30] sm:$0xff] %v930
    %959 = vst [vmem:[#allocation2 + $0x38] sm:$0xff] %v931
    %960 = vst [vmem:[#allocation2 + $0x40] sm:$0xff] %v944
    %961 = vst [vmem:[#allocation2 + $0x48] sm:$0xff] %v945
    %962 = vst [vmem:[#allocation2 + $0x50] sm:$0xff] %v946
    %963 = vst [vmem:[#allocation2 + $0x58] sm:$0xff] %v947
    %964 = vst [vmem:[#allocation2 + $0x60] sm:$0xff] %v948
    %965 = vst [vmem:[#allocation2 + $0x68] sm:$0xff] %v949
    %966 = vst [vmem:[#allocation2 + $0x70] sm:$0xff] %v950
    %967 = vst [vmem:[#allocation2 + $0x78] sm:$0xff] %v951
    %v968 = vld [vmem:[#allocation3 + $0x200] sm:$0xff]
    %v969 = vld [vmem:[#allocation3 + $0x208] sm:$0xff]
    %v970 = vld [vmem:[#allocation3 + $0x210] sm:$0xff]
    %v971 = vld [vmem:[#allocation3 + $0x218] sm:$0xff]
    %v972 = vld [vmem:[#allocation3 + $0x220] sm:$0xff]
    %v973 = vld [vmem:[#allocation3 + $0x228] sm:$0xff]
    %v974 = vld [vmem:[#allocation3 + $0x230] sm:$0xff]
    %v975 = vld [vmem:[#allocation3 + $0x238] sm:$0xff]
    %v976 = vmul.f32 %v968, %v576
    %v977 = vmul.f32 %v969, %v577
    %v978 = vmul.f32 %v970, %v578
    %v979 = vmul.f32 %v971, %v579
    %v980 = vmul.f32 %v972, %v576
    %v981 = vmul.f32 %v973, %v577
    %v982 = vmul.f32 %v974, %v578
    %v983 = vmul.f32 %v975, %v579
    %v984 = vadd.f32 %v976, 0.0
    %v985 = vadd.f32 %v977, 0.0
    %v986 = vadd.f32 %v978, 0.0
    %v987 = vadd.f32 %v979, 0.0
    %v988 = vadd.f32 %v980, 0.0
    %v989 = vadd.f32 %v981, 0.0
    %v990 = vadd.f32 %v982, 0.0
    %v991 = vadd.f32 %v983, 0.0
    %v992 = vmul.f32 %v968, %v596
    %v993 = vmul.f32 %v969, %v597
    %v994 = vmul.f32 %v970, %v598
    %v995 = vmul.f32 %v971, %v599
    %v996 = vmul.f32 %v972, %v596
    %v997 = vmul.f32 %v973, %v597
    %v998 = vmul.f32 %v974, %v598
    %v999 = vmul.f32 %v975, %v599
    %v1000 = vadd.f32 %v992, 0.0
    %v1001 = vadd.f32 %v993, 0.0
    %v1002 = vadd.f32 %v994, 0.0
    %v1003 = vadd.f32 %v995, 0.0
    %v1004 = vadd.f32 %v996, 0.0
    %v1005 = vadd.f32 %v997, 0.0
    %v1006 = vadd.f32 %v998, 0.0
    %v1007 = vadd.f32 %v999, 0.0
    %v1008 = vld [vmem:[#allocation3 + $0x240] sm:$0xff]
    %v1009 = vld [vmem:[#allocation3 + $0x248] sm:$0xff]
    %v1010 = vld [vmem:[#allocation3 + $0x250] sm:$0xff]
    %v1011 = vld [vmem:[#allocation3 + $0x258] sm:$0xff]
    %v1012 = vld [vmem:[#allocation3 + $0x260] sm:$0xff]
    %v1013 = vld [vmem:[#allocation3 + $0x268] sm:$0xff]
    %v1014 = vld [vmem:[#allocation3 + $0x270] sm:$0xff]
    %v1015 = vld [vmem:[#allocation3 + $0x278] sm:$0xff]
    %v1016 = vmul.f32 %v1008, %v624
    %v1017 = vmul.f32 %v1009, %v625
    %v1018 = vmul.f32 %v1010, %v626
    %v1019 = vmul.f32 %v1011, %v627
    %v1020 = vmul.f32 %v1012, %v624
    %v1021 = vmul.f32 %v1013, %v625
    %v1022 = vmul.f32 %v1014, %v626
    %v1023 = vmul.f32 %v1015, %v627
    %v1024 = vadd.f32 %v984, %v1016
    %v1025 = vadd.f32 %v985, %v1017
    %v1026 = vadd.f32 %v986, %v1018
    %v1027 = vadd.f32 %v987, %v1019
    %v1028 = vadd.f32 %v988, %v1020
    %v1029 = vadd.f32 %v989, %v1021
    %v1030 = vadd.f32 %v990, %v1022
    %v1031 = vadd.f32 %v991, %v1023
    %v1032 = vmul.f32 %v1008, %v644
    %v1033 = vmul.f32 %v1009, %v645
    %v1034 = vmul.f32 %v1010, %v646
    %v1035 = vmul.f32 %v1011, %v647
    %v1036 = vmul.f32 %v1012, %v644
    %v1037 = vmul.f32 %v1013, %v645
    %v1038 = vmul.f32 %v1014, %v646
    %v1039 = vmul.f32 %v1015, %v647
    %v1040 = vadd.f32 %v1000, %v1032
    %v1041 = vadd.f32 %v1001, %v1033
    %v1042 = vadd.f32 %v1002, %v1034
    %v1043 = vadd.f32 %v1003, %v1035
    %v1044 = vadd.f32 %v1004, %v1036
    %v1045 = vadd.f32 %v1005, %v1037
    %v1046 = vadd.f32 %v1006, %v1038
    %v1047 = vadd.f32 %v1007, %v1039
    %v1048 = vld [vmem:[#allocation3 + $0x280] sm:$0xff]
    %v1049 = vld [vmem:[#allocation3 + $0x288] sm:$0xff]
    %v1050 = vld [vmem:[#allocation3 + $0x290] sm:$0xff]
    %v1051 = vld [vmem:[#allocation3 + $0x298] sm:$0xff]
    %v1052 = vld [vmem:[#allocation3 + $0x2a0] sm:$0xff]
    %v1053 = vld [vmem:[#allocation3 + $0x2a8] sm:$0xff]
    %v1054 = vld [vmem:[#allocation3 + $0x2b0] sm:$0xff]
    %v1055 = vld [vmem:[#allocation3 + $0x2b8] sm:$0xff]
    %v1056 = vmul.f32 %v1048, %v672
    %v1057 = vmul.f32 %v1049, %v673
    %v1058 = vmul.f32 %v1050, %v674
    %v1059 = vmul.f32 %v1051, %v675
    %v1060 = vmul.f32 %v1052, %v672
    %v1061 = vmul.f32 %v1053, %v673
    %v1062 = vmul.f32 %v1054, %v674
    %v1063 = vmul.f32 %v1055, %v675
    %v1064 = vadd.f32 %v1024, %v1056
    %v1065 = vadd.f32 %v1025, %v1057
    %v1066 = vadd.f32 %v1026, %v1058
    %v1067 = vadd.f32 %v1027, %v1059
    %v1068 = vadd.f32 %v1028, %v1060
    %v1069 = vadd.f32 %v1029, %v1061
    %v1070 = vadd.f32 %v1030, %v1062
    %v1071 = vadd.f32 %v1031, %v1063
    %v1072 = vmul.f32 %v1048, %v692
    %v1073 = vmul.f32 %v1049, %v693
    %v1074 = vmul.f32 %v1050, %v694
    %v1075 = vmul.f32 %v1051, %v695
    %v1076 = vmul.f32 %v1052, %v692
    %v1077 = vmul.f32 %v1053, %v693
    %v1078 = vmul.f32 %v1054, %v694
    %v1079 = vmul.f32 %v1055, %v695
    %v1080 = vadd.f32 %v1040, %v1072
    %v1081 = vadd.f32 %v1041, %v1073
    %v1082 = vadd.f32 %v1042, %v1074
    %v1083 = vadd.f32 %v1043, %v1075
    %v1084 = vadd.f32 %v1044, %v1076
    %v1085 = vadd.f32 %v1045, %v1077
    %v1086 = vadd.f32 %v1046, %v1078
    %v1087 = vadd.f32 %v1047, %v1079
    %v1088 = vld [vmem:[#allocation3 + $0x2c0] sm:$0xff]
    %v1089 = vld [vmem:[#allocation3 + $0x2c8] sm:$0xff]
    %v1090 = vld [vmem:[#allocation3 + $0x2d0] sm:$0xff]
    %v1091 = vld [vmem:[#allocation3 + $0x2d8] sm:$0xff]
    %v1092 = vld [vmem:[#allocation3 + $0x2e0] sm:$0xff]
    %v1093 = vld [vmem:[#allocation3 + $0x2e8] sm:$0xff]
    %v1094 = vld [vmem:[#allocation3 + $0x2f0] sm:$0xff]
    %v1095 = vld [vmem:[#allocation3 + $0x2f8] sm:$0xff]
    %v1096 = vmul.f32 %v1088, %v720
    %v1097 = vmul.f32 %v1089, %v721
    %v1098 = vmul.f32 %v1090, %v722
    %v1099 = vmul.f32 %v1091, %v723
    %v1100 = vmul.f32 %v1092, %v720
    %v1101 = vmul.f32 %v1093, %v721
    %v1102 = vmul.f32 %v1094, %v722
    %v1103 = vmul.f32 %v1095, %v723
    %v1104 = vadd.f32 %v1064, %v1096
    %v1105 = vadd.f32 %v1065, %v1097
    %v1106 = vadd.f32 %v1066, %v1098
    %v1107 = vadd.f32 %v1067, %v1099
    %v1108 = vadd.f32 %v1068, %v1100
    %v1109 = vadd.f32 %v1069, %v1101
    %v1110 = vadd.f32 %v1070, %v1102
    %v1111 = vadd.f32 %v1071, %v1103
    %v1112 = vmul.f32 %v1088, %v740
    %v1113 = vmul.f32 %v1089, %v741
    %v1114 = vmul.f32 %v1090, %v742
    %v1115 = vmul.f32 %v1091, %v743
    %v1116 = vmul.f32 %v1092, %v740
    %v1117 = vmul.f32 %v1093, %v741
    %v1118 = vmul.f32 %v1094, %v742
    %v1119 = vmul.f32 %v1095, %v743
    %v1120 = vadd.f32 %v1080, %v1112
    %v1121 = vadd.f32 %v1081, %v1113
    %v1122 = vadd.f32 %v1082, %v1114
    %v1123 = vadd.f32 %v1083, %v1115
    %v1124 = vadd.f32 %v1084, %v1116
    %v1125 = vadd.f32 %v1085, %v1117
    %v1126 = vadd.f32 %v1086, %v1118
    %v1127 = vadd.f32 %v1087, %v1119
    %v1128 = vld [vmem:[#allocation3 + $0x300] sm:$0xff]
    %v1129 = vld [vmem:[#allocation3 + $0x308] sm:$0xff]
    %v1130 = vld [vmem:[#allocation3 + $0x310] sm:$0xff]
    %v1131 = vld [vmem:[#allocation3 + $0x318] sm:$0xff]
    %v1132 = vld [vmem:[#allocation3 + $0x320] sm:$0xff]
    %v1133 = vld [vmem:[#allocation3 + $0x328] sm:$0xff]
    %v1134 = vld [vmem:[#allocation3 + $0x330] sm:$0xff]
    %v1135 = vld [vmem:[#allocation3 + $0x338] sm:$0xff]
    %v1136 = vmul.f32 %v1128, %v768
    %v1137 = vmul.f32 %v1129, %v769
    %v1138 = vmul.f32 %v1130, %v770
    %v1139 = vmul.f32 %v1131, %v771
    %v1140 = vmul.f32 %v1132, %v768
    %v1141 = vmul.f32 %v1133, %v769
    %v1142 = vmul.f32 %v1134, %v770
    %v1143 = vmul.f32 %v1135, %v771
    %v1144 = vadd.f32 %v1104, %v1136
    %v1145 = vadd.f32 %v1105, %v1137
    %v1146 = vadd.f32 %v1106, %v1138
    %v1147 = vadd.f32 %v1107, %v1139
    %v1148 = vadd.f32 %v1108, %v1140
    %v1149 = vadd.f32 %v1109, %v1141
    %v1150 = vadd.f32 %v1110, %v1142
    %v1151 = vadd.f32 %v1111, %v1143
    %v1152 = vmul.f32 %v1128, %v788
    %v1153 = vmul.f32 %v1129, %v789
    %v1154 = vmul.f32 %v1130, %v790
    %v1155 = vmul.f32 %v1131, %v791
    %v1156 = vmul.f32 %v1132, %v788
    %v1157 = vmul.f32 %v1133, %v789
    %v1158 = vmul.f32 %v1134, %v790
    %v1159 = vmul.f32 %v1135, %v791
    %v1160 = vadd.f32 %v1120, %v1152
    %v1161 = vadd.f32 %v1121, %v1153
    %v1162 = vadd.f32 %v1122, %v1154
    %v1163 = vadd.f32 %v1123, %v1155
    %v1164 = vadd.f32 %v1124, %v1156
    %v1165 = vadd.f32 %v1125, %v1157
    %v1166 = vadd.f32 %v1126, %v1158
    %v1167 = vadd.f32 %v1127, %v1159
    %v1168 = vld [vmem:[#allocation3 + $0x340] sm:$0xff]
    %v1169 = vld [vmem:[#allocation3 + $0x348] sm:$0xff]
    %v1170 = vld [vmem:[#allocation3 + $0x350] sm:$0xff]
    %v1171 = vld [vmem:[#allocation3 + $0x358] sm:$0xff]
    %v1172 = vld [vmem:[#allocation3 + $0x360] sm:$0xff]
    %v1173 = vld [vmem:[#allocation3 + $0x368] sm:$0xff]
    %v1174 = vld [vmem:[#allocation3 + $0x370] sm:$0xff]
    %v1175 = vld [vmem:[#allocation3 + $0x378] sm:$0xff]
    %v1176 = vmul.f32 %v1168, %v816
    %v1177 = vmul.f32 %v1169, %v817
    %v1178 = vmul.f32 %v1170, %v818
    %v1179 = vmul.f32 %v1171, %v819
    %v1180 = vmul.f32 %v1172, %v816
    %v1181 = vmul.f32 %v1173, %v817
    %v1182 = vmul.f32 %v1174, %v818
    %v1183 = vmul.f32 %v1175, %v819
    %v1184 = vadd.f32 %v1144, %v1176
    %v1185 = vadd.f32 %v1145, %v1177
    %v1186 = vadd.f32 %v1146, %v1178
    %v1187 = vadd.f32 %v1147, %v1179
    %v1188 = vadd.f32 %v1148, %v1180
    %v1189 = vadd.f32 %v1149, %v1181
    %v1190 = vadd.f32 %v1150, %v1182
    %v1191 = vadd.f32 %v1151, %v1183
    %v1192 = vmul.f32 %v1168, %v836
    %v1193 = vmul.f32 %v1169, %v837
    %v1194 = vmul.f32 %v1170, %v838
    %v1195 = vmul.f32 %v1171, %v839
    %v1196 = vmul.f32 %v1172, %v836
    %v1197 = vmul.f32 %v1173, %v837
    %v1198 = vmul.f32 %v1174, %v838
    %v1199 = vmul.f32 %v1175, %v839
    %v1200 = vadd.f32 %v1160, %v1192
    %v1201 = vadd.f32 %v1161, %v1193
    %v1202 = vadd.f32 %v1162, %v1194
    %v1203 = vadd.f32 %v1163, %v1195
    %v1204 = vadd.f32 %v1164, %v1196
    %v1205 = vadd.f32 %v1165, %v1197
    %v1206 = vadd.f32 %v1166, %v1198
    %v1207 = vadd.f32 %v1167, %v1199
    %v1208 = vld [vmem:[#allocation3 + $0x380] sm:$0xff]
    %v1209 = vld [vmem:[#allocation3 + $0x388] sm:$0xff]
    %v1210 = vld [vmem:[#allocation3 + $0x390] sm:$0xff]
    %v1211 = vld [vmem:[#allocation3 + $0x398] sm:$0xff]
    %v1212 = vld [vmem:[#allocation3 + $0x3a0] sm:$0xff]
    %v1213 = vld [vmem:[#allocation3 + $0x3a8] sm:$0xff]
    %v1214 = vld [vmem:[#allocation3 + $0x3b0] sm:$0xff]
    %v1215 = vld [vmem:[#allocation3 + $0x3b8] sm:$0xff]
    %v1216 = vmul.f32 %v1208, %v864
    %v1217 = vmul.f32 %v1209, %v865
    %v1218 = vmul.f32 %v1210, %v866
    %v1219 = vmul.f32 %v1211, %v867
    %v1220 = vmul.f32 %v1212, %v864
    %v1221 = vmul.f32 %v1213, %v865
    %v1222 = vmul.f32 %v1214, %v866
    %v1223 = vmul.f32 %v1215, %v867
    %v1224 = vadd.f32 %v1184, %v1216
    %v1225 = vadd.f32 %v1185, %v1217
    %v1226 = vadd.f32 %v1186, %v1218
    %v1227 = vadd.f32 %v1187, %v1219
    %v1228 = vadd.f32 %v1188, %v1220
    %v1229 = vadd.f32 %v1189, %v1221
    %v1230 = vadd.f32 %v1190, %v1222
    %v1231 = vadd.f32 %v1191, %v1223
    %v1232 = vmul.f32 %v1208, %v884
    %v1233 = vmul.f32 %v1209, %v885
    %v1234 = vmul.f32 %v1210, %v886
    %v1235 = vmul.f32 %v1211, %v887
    %v1236 = vmul.f32 %v1212, %v884
    %v1237 = vmul.f32 %v1213, %v885
    %v1238 = vmul.f32 %v1214, %v886
    %v1239 = vmul.f32 %v1215, %v887
    %v1240 = vadd.f32 %v1200, %v1232
    %v1241 = vadd.f32 %v1201, %v1233
    %v1242 = vadd.f32 %v1202, %v1234
    %v1243 = vadd.f32 %v1203, %v1235
    %v1244 = vadd.f32 %v1204, %v1236
    %v1245 = vadd.f32 %v1205, %v1237
    %v1246 = vadd.f32 %v1206, %v1238
    %v1247 = vadd.f32 %v1207, %v1239
    %v1248 = vld [vmem:[#allocation3 + $0x3c0] sm:$0xff]
    %v1249 = vld [vmem:[#allocation3 + $0x3c8] sm:$0xff]
    %v1250 = vld [vmem:[#allocation3 + $0x3d0] sm:$0xff]
    %v1251 = vld [vmem:[#allocation3 + $0x3d8] sm:$0xff]
    %v1252 = vld [vmem:[#allocation3 + $0x3e0] sm:$0xff]
    %v1253 = vld [vmem:[#allocation3 + $0x3e8] sm:$0xff]
    %v1254 = vld [vmem:[#allocation3 + $0x3f0] sm:$0xff]
    %v1255 = vld [vmem:[#allocation3 + $0x3f8] sm:$0xff]
    %v1256 = vmul.f32 %v1248, %v912
    %v1257 = vmul.f32 %v1249, %v913
    %v1258 = vmul.f32 %v1250, %v914
    %v1259 = vmul.f32 %v1251, %v915
    %v1260 = vmul.f32 %v1252, %v912
    %v1261 = vmul.f32 %v1253, %v913
    %v1262 = vmul.f32 %v1254, %v914
    %v1263 = vmul.f32 %v1255, %v915
    %v1264 = vadd.f32 %v1224, %v1256
    %v1265 = vadd.f32 %v1225, %v1257
    %v1266 = vadd.f32 %v1226, %v1258
    %v1267 = vadd.f32 %v1227, %v1259
    %v1268 = vadd.f32 %v1228, %v1260
    %v1269 = vadd.f32 %v1229, %v1261
    %v1270 = vadd.f32 %v1230, %v1262
    %v1271 = vadd.f32 %v1231, %v1263
    %v1272 = vmul.f32 %v1248, %v932
    %v1273 = vmul.f32 %v1249, %v933
    %v1274 = vmul.f32 %v1250, %v934
    %v1275 = vmul.f32 %v1251, %v935
    %v1276 = vmul.f32 %v1252, %v932
    %v1277 = vmul.f32 %v1253, %v933
    %v1278 = vmul.f32 %v1254, %v934
    %v1279 = vmul.f32 %v1255, %v935
    %v1280 = vadd.f32 %v1240, %v1272
    %v1281 = vadd.f32 %v1241, %v1273
    %v1282 = vadd.f32 %v1242, %v1274
    %v1283 = vadd.f32 %v1243, %v1275
    %v1284 = vadd.f32 %v1244, %v1276
    %v1285 = vadd.f32 %v1245, %v1277
    %v1286 = vadd.f32 %v1246, %v1278
    %v1287 = vadd.f32 %v1247, %v1279
    %1288 = vst [vmem:[#allocation2 + $0x80] sm:$0xff] %v1264
    %1289 = vst [vmem:[#allocation2 + $0x88] sm:$0xff] %v1265
    %1290 = vst [vmem:[#allocation2 + $0x90] sm:$0xff] %v1266
    %1291 = vst [vmem:[#allocation2 + $0x98] sm:$0xff] %v1267
    %1292 = vst [vmem:[#allocation2 + $0xa0] sm:$0xff] %v1268
    %1293 = vst [vmem:[#allocation2 + $0xa8] sm:$0xff] %v1269
    %1294 = vst [vmem:[#allocation2 + $0xb0] sm:$0xff] %v1270
    %1295 = vst [vmem:[#allocation2 + $0xb8] sm:$0xff] %v1271
    %1296 = vst [vmem:[#allocation2 + $0xc0] sm:$0xff] %v1280
    %1297 = vst [vmem:[#allocation2 + $0xc8] sm:$0xff] %v1281
    %1298 = vst [vmem:[#allocation2 + $0xd0] sm:$0xff] %v1282
    %1299 = vst [vmem:[#allocation2 + $0xd8] sm:$0xff] %v1283
    %1300 = vst [vmem:[#allocation2 + $0xe0] sm:$0xff] %v1284
    %1301 = vst [vmem:[#allocation2 + $0xe8] sm:$0xff] %v1285
    %1302 = vst [vmem:[#allocation2 + $0xf0] sm:$0xff] %v1286
    %1303 = vst [vmem:[#allocation2 + $0xf8] sm:$0xff] %v1287
    %v1304 = vld [vmem:[#allocation2] sm:$0xff]
    %v1305 = vld [vmem:[#allocation2 + $0x8] sm:$0xff]
    %v1306 = vld [vmem:[#allocation2 + $0x10] sm:$0xff]
    %v1307 = vld [vmem:[#allocation2 + $0x18] sm:$0xff]
    %v1308 = vld [vmem:[#allocation2 + $0x20] sm:$0xff]
    %v1309 = vld [vmem:[#allocation2 + $0x28] sm:$0xff]
    %v1310 = vld [vmem:[#allocation2 + $0x30] sm:$0xff]
    %v1311 = vld [vmem:[#allocation2 + $0x38] sm:$0xff]
    %v1312 = vadd.f32 %v1304, %v1305
    %v1313 = vadd.f32 %v1312, %v1306
    %v1314 = vadd.f32 %v1313, %v1307
    %1315 = vadd.xlane.f32.xlu0 %v1314
    %v1316 = vpop.xlane.xlu0 %1315
    %v1317 = vadd.f32 %v1308, %v1309
    %v1318 = vadd.f32 %v1317, %v1310
    %v1319 = vadd.f32 %v1318, %v1311
    %1320 = vadd.xlane.f32.xlu0 %v1319
    %v1321 = vpop.xlane.xlu0 %1320
    %v1322 = vmul.f32 %v1316, 0.001953125
    %v1323 = vmul.f32 %v1321, 0.001953125
    %v1324 = vmul.f32 %v1322, %v1322
    %v1325 = vmul.f32 %v1323, %v1323
    %v1326 = vadd.f32 %v1324, %v1325
    %v1327 = vrot.slane %v1326, 4
    %v1328 = vadd.f32 %v1326, %v1327
    %v1329 = vrot.slane %v1328, 2
    %v1330 = vadd.f32 %v1328, %v1329
    %v1331 = vrot.slane %v1330, 1
    %v1332 = vadd.f32 %v1330, %v1331
    %v1333 = vrsqrt.pop %v1332
    %v1334 = vmul.f32 %v1333, %v1332
    %v1335 = vmul.f32 %v1334, %v1333
    %v1336 = vmul.f32 0.5, %v1335
    %v1337 = vsub.f32 1.5, %v1336
    %v1338 = vmul.f32 %v1333, %v1337
    %vm1339 = vweird.f32 %v1332
    %vm1340 = vweird.f32 %v1333
    %vm1341 = vmor %vm1339, %vm1340
    %v1342 = vsel %vm1341, %v1333, %v1338
    %v1343 = vmul.f32 %v1332, %v1342
    %v1344 = vadd.f32 %v1332, 1.0
    %v1345 = vrcp.pop %v1344
    %v1346 = vmul.f32 %v1343, %v1345
    %v1347 = vmul.f32 %v1322, %v1346
    %v1348 = vmul.f32 %v1323, %v1346
    %v1349 = vmul.f32 %v1304, %v1347
    %v1350 = vmul.f32 %v1305, %v1347
    %v1351 = vmul.f32 %v1306, %v1347
    %v1352 = vmul.f32 %v1307, %v1347
    %v1353 = vmul.f32 %v1308, %v1348
    %v1354 = vmul.f32 %v1309, %v1348
    %v1355 = vmul.f32 %v1310, %v1348
    %v1356 = vmul.f32 %v1311, %v1348
    %v1357 = vadd.f32 %v1349, %v1353
    %v1358 = vrot.slane %v1357, 4
    %v1359 = vadd.f32 %v1357, %v1358
    %v1360 = vrot.slane %v1359, 2
    %v1361 = vadd.f32 %v1359, %v1360
    %v1362 = vrot.slane %v1361, 1
    %v1363 = vadd.f32 %v1361, %v1362
    %v1364 = vadd.f32 %v1350, %v1354
    %v1365 = vrot.slane %v1364, 4
    %v1366 = vadd.f32 %v1364, %v1365
    %v1367 = vrot.slane %v1366, 2
    %v1368 = vadd.f32 %v1366, %v1367
    %v1369 = vrot.slane %v1368, 1
    %v1370 = vadd.f32 %v1368, %v1369
    %v1371 = vadd.f32 %v1351, %v1355
    %v1372 = vrot.slane %v1371, 4
    %v1373 = vadd.f32 %v1371, %v1372
    %v1374 = vrot.slane %v1373, 2
    %v1375 = vadd.f32 %v1373, %v1374
    %v1376 = vrot.slane %v1375, 1
    %v1377 = vadd.f32 %v1375, %v1376
    %v1378 = vadd.f32 %v1352, %v1356
    %v1379 = vrot.slane %v1378, 4
    %v1380 = vadd.f32 %v1378, %v1379
    %v1381 = vrot.slane %v1380, 2
    %v1382 = vadd.f32 %v1380, %v1381
    %v1383 = vrot.slane %v1382, 1
    %v1384 = vadd.f32 %v1382, %v1383
    %v1385 = vld [vmem:[#allocation2 + $0x40] sm:$0xff]
    %v1386 = vld [vmem:[#allocation2 + $0x48] sm:$0xff]
    %v1387 = vld [vmem:[#allocation2 + $0x50] sm:$0xff]
    %v1388 = vld [vmem:[#allocation2 + $0x58] sm:$0xff]
    %v1389 = vld [vmem:[#allocation2 + $0x60] sm:$0xff]
    %v1390 = vld [vmem:[#allocation2 + $0x68] sm:$0xff]
    %v1391 = vld [vmem:[#allocation2 + $0x70] sm:$0xff]
    %v1392 = vld [vmem:[#allocation2 + $0x78] sm:$0xff]
    %v1393 = vadd.f32 %v1385, %v1386
    %v1394 = vadd.f32 %v1393, %v1387
    %v1395 = vadd.f32 %v1394, %v1388
    %1396 = vadd.xlane.f32.xlu0 %v1395
    %v1397 = vpop.xlane.xlu0 %1396
    %v1398 = vadd.f32 %v1389, %v1390
    %v1399 = vadd.f32 %v1398, %v1391
    %v1400 = vadd.f32 %v1399, %v1392
    %1401 = vadd.xlane.f32.xlu0 %v1400
    %v1402 = vpop.xlane.xlu0 %1401
    %v1403 = vmul.f32 %v1397, 0.001953125
    %v1404 = vmul.f32 %v1402, 0.001953125
    %v1405 = vmul.f32 %v1403, %v1403
    %v1406 = vmul.f32 %v1404, %v1404
    %v1407 = vadd.f32 %v1405, %v1406
    %v1408 = vrot.slane %v1407, 4
    %v1409 = vadd.f32 %v1407, %v1408
    %v1410 = vrot.slane %v1409, 2
    %v1411 = vadd.f32 %v1409, %v1410
    %v1412 = vrot.slane %v1411, 1
    %v1413 = vadd.f32 %v1411, %v1412
    %v1414 = vrsqrt.pop %v1413
    %v1415 = vmul.f32 %v1414, %v1413
    %v1416 = vmul.f32 %v1415, %v1414
    %v1417 = vmul.f32 0.5, %v1416
    %v1418 = vsub.f32 1.5, %v1417
    %v1419 = vmul.f32 %v1414, %v1418
    %vm1420 = vweird.f32 %v1413
    %vm1421 = vweird.f32 %v1414
    %vm1422 = vmor %vm1420, %vm1421
    %v1423 = vsel %vm1422, %v1414, %v1419
    %v1424 = vmul.f32 %v1413, %v1423
    %v1425 = vadd.f32 %v1413, 1.0
    %v1426 = vrcp.pop %v1425
    %v1427 = vmul.f32 %v1424, %v1426
    %v1428 = vmul.f32 %v1403, %v1427
    %v1429 = vmul.f32 %v1404, %v1427
    %v1430 = vmul.f32 %v1385, %v1428
    %v1431 = vmul.f32 %v1386, %v1428
    %v1432 = vmul.f32 %v1387, %v1428
    %v1433 = vmul.f32 %v1388, %v1428
    %v1434 = vmul.f32 %v1389, %v1429
    %v1435 = vmul.f32 %v1390, %v1429
    %v1436 = vmul.f32 %v1391, %v1429
    %v1437 = vmul.f32 %v1392, %v1429
    %v1438 = vadd.f32 %v1430, %v1434
    %v1439 = vrot.slane %v1438, 4
    %v1440 = vadd.f32 %v1438, %v1439
    %v1441 = vrot.slane %v1440, 2
    %v1442 = vadd.f32 %v1440, %v1441
    %v1443 = vrot.slane %v1442, 1
    %v1444 = vadd.f32 %v1442, %v1443
    %v1445 = vadd.f32 %v1431, %v1435
    %v1446 = vrot.slane %v1445, 4
    %v1447 = vadd.f32 %v1445, %v1446
    %v1448 = vrot.slane %v1447, 2
    %v1449 = vadd.f32 %v1447, %v1448
    %v1450 = vrot.slane %v1449, 1
    %v1451 = vadd.f32 %v1449, %v1450
    %v1452 = vadd.f32 %v1432, %v1436
    %v1453 = vrot.slane %v1452, 4
    %v1454 = vadd.f32 %v1452, %v1453
    %v1455 = vrot.slane %v1454, 2
    %v1456 = vadd.f32 %v1454, %v1455
    %v1457 = vrot.slane %v1456, 1
    %v1458 = vadd.f32 %v1456, %v1457
    %v1459 = vadd.f32 %v1433, %v1437
    %v1460 = vrot.slane %v1459, 4
    %v1461 = vadd.f32 %v1459, %v1460
    %v1462 = vrot.slane %v1461, 2
    %v1463 = vadd.f32 %v1461, %v1462
    %v1464 = vrot.slane %v1463, 1
    %v1465 = vadd.f32 %v1463, %v1464
    %v1466 = vld [vmem:[#allocation2 + $0x80] sm:$0xff]
    %v1467 = vld [vmem:[#allocation2 + $0x88] sm:$0xff]
    %v1468 = vld [vmem:[#allocation2 + $0x90] sm:$0xff]
    %v1469 = vld [vmem:[#allocation2 + $0x98] sm:$0xff]
    %v1470 = vld [vmem:[#allocation2 + $0xa0] sm:$0xff]
    %v1471 = vld [vmem:[#allocation2 + $0xa8] sm:$0xff]
    %v1472 = vld [vmem:[#allocation2 + $0xb0] sm:$0xff]
    %v1473 = vld [vmem:[#allocation2 + $0xb8] sm:$0xff]
    %v1474 = vadd.f32 %v1466, %v1467
    %v1475 = vadd.f32 %v1474, %v1468
    %v1476 = vadd.f32 %v1475, %v1469
    %1477 = vadd.xlane.f32.xlu0 %v1476
    %v1478 = vpop.xlane.xlu0 %1477
    %v1479 = vadd.f32 %v1470, %v1471
    %v1480 = vadd.f32 %v1479, %v1472
    %v1481 = vadd.f32 %v1480, %v1473
    %1482 = vadd.xlane.f32.xlu0 %v1481
    %v1483 = vpop.xlane.xlu0 %1482
    %v1484 = vmul.f32 %v1478, 0.001953125
    %v1485 = vmul.f32 %v1483, 0.001953125
    %v1486 = vmul.f32 %v1484, %v1484
    %v1487 = vmul.f32 %v1485, %v1485
    %v1488 = vadd.f32 %v1486, %v1487
    %v1489 = vrot.slane %v1488, 4
    %v1490 = vadd.f32 %v1488, %v1489
    %v1491 = vrot.slane %v1490, 2
    %v1492 = vadd.f32 %v1490, %v1491
    %v1493 = vrot.slane %v1492, 1
    %v1494 = vadd.f32 %v1492, %v1493
    %v1495 = vrsqrt.pop %v1494
    %v1496 = vmul.f32 %v1495, %v1494
    %v1497 = vmul.f32 %v1496, %v1495
    %v1498 = vmul.f32 0.5, %v1497
    %v1499 = vsub.f32 1.5, %v1498
    %v1500 = vmul.f32 %v1495, %v1499
    %vm1501 = vweird.f32 %v1494
    %vm1502 = vweird.f32 %v1495
    %vm1503 = vmor %vm1501, %vm1502
    %v1504 = vsel %vm1503, %v1495, %v1500
    %v1505 = vmul.f32 %v1494, %v1504
    %v1506 = vadd.f32 %v1494, 1.0
    %v1507 = vrcp.pop %v1506
    %v1508 = vmul.f32 %v1505, %v1507
    %v1509 = vmul.f32 %v1484, %v1508
    %v1510 = vmul.f32 %v1485, %v1508
    %v1511 = vmul.f32 %v1466, %v1509
    %v1512 = vmul.f32 %v1467, %v1509
    %v1513 = vmul.f32 %v1468, %v1509
    %v1514 = vmul.f32 %v1469, %v1509
    %v1515 = vmul.f32 %v1470, %v1510
    %v1516 = vmul.f32 %v1471, %v1510
    %v1517 = vmul.f32 %v1472, %v1510
    %v1518 = vmul.f32 %v1473, %v1510
    %v1519 = vadd.f32 %v1511, %v1515
    %v1520 = vrot.slane %v1519, 4
    %v1521 = vadd.f32 %v1519, %v1520
    %v1522 = vrot.slane %v1521, 2
    %v1523 = vadd.f32 %v1521, %v1522
    %v1524 = vrot.slane %v1523, 1
    %v1525 = vadd.f32 %v1523, %v1524
    %v1526 = vadd.f32 %v1512, %v1516
    %v1527 = vrot.slane %v1526, 4
    %v1528 = vadd.f32 %v1526, %v1527
    %v1529 = vrot.slane %v1528, 2
    %v1530 = vadd.f32 %v1528, %v1529
    %v1531 = vrot.slane %v1530, 1
    %v1532 = vadd.f32 %v1530, %v1531
    %v1533 = vadd.f32 %v1513, %v1517
    %v1534 = vrot.slane %v1533, 4
    %v1535 = vadd.f32 %v1533, %v1534
    %v1536 = vrot.slane %v1535, 2
    %v1537 = vadd.f32 %v1535, %v1536
    %v1538 = vrot.slane %v1537, 1
    %v1539 = vadd.f32 %v1537, %v1538
    %v1540 = vadd.f32 %v1514, %v1518
    %v1541 = vrot.slane %v1540, 4
    %v1542 = vadd.f32 %v1540, %v1541
    %v1543 = vrot.slane %v1542, 2
    %v1544 = vadd.f32 %v1542, %v1543
    %v1545 = vrot.slane %v1544, 1
    %v1546 = vadd.f32 %v1544, %v1545
    %v1547 = vld [vmem:[#allocation2 + $0xc0] sm:$0xff]
    %v1548 = vld [vmem:[#allocation2 + $0xc8] sm:$0xff]
    %v1549 = vld [vmem:[#allocation2 + $0xd0] sm:$0xff]
    %v1550 = vld [vmem:[#allocation2 + $0xd8] sm:$0xff]
    %v1551 = vld [vmem:[#allocation2 + $0xe0] sm:$0xff]
    %v1552 = vld [vmem:[#allocation2 + $0xe8] sm:$0xff]
    %v1553 = vld [vmem:[#allocation2 + $0xf0] sm:$0xff]
    %v1554 = vld [vmem:[#allocation2 + $0xf8] sm:$0xff]
    %v1555 = vadd.f32 %v1547, %v1548
    %v1556 = vadd.f32 %v1555, %v1549
    %v1557 = vadd.f32 %v1556, %v1550
    %1558 = vadd.xlane.f32.xlu0 %v1557
    %v1559 = vpop.xlane.xlu0 %1558
    %v1560 = vadd.f32 %v1551, %v1552
    %v1561 = vadd.f32 %v1560, %v1553
    %v1562 = vadd.f32 %v1561, %v1554
    %1563 = vadd.xlane.f32.xlu0 %v1562
    %v1564 = vpop.xlane.xlu0 %1563
    %v1565 = vmul.f32 %v1559, 0.001953125
    %v1566 = vmul.f32 %v1564, 0.001953125
    %v1567 = vmul.f32 %v1565, %v1565
    %v1568 = vmul.f32 %v1566, %v1566
    %v1569 = vadd.f32 %v1567, %v1568
    %v1570 = vrot.slane %v1569, 4
    %v1571 = vadd.f32 %v1569, %v1570
    %v1572 = vrot.slane %v1571, 2
    %v1573 = vadd.f32 %v1571, %v1572
    %v1574 = vrot.slane %v1573, 1
    %v1575 = vadd.f32 %v1573, %v1574
    %v1576 = vrsqrt.pop %v1575
    %v1577 = vmul.f32 %v1576, %v1575
    %v1578 = vmul.f32 %v1577, %v1576
    %v1579 = vmul.f32 0.5, %v1578
    %v1580 = vsub.f32 1.5, %v1579
    %v1581 = vmul.f32 %v1576, %v1580
    %vm1582 = vweird.f32 %v1575
    %vm1583 = vweird.f32 %v1576
    %vm1584 = vmor %vm1582, %vm1583
    %v1585 = vsel %vm1584, %v1576, %v1581
    %v1586 = vmul.f32 %v1575, %v1585
    %v1587 = vadd.f32 %v1575, 1.0
    %v1588 = vrcp.pop %v1587
    %v1589 = vmul.f32 %v1586, %v1588
    %v1590 = vmul.f32 %v1565, %v1589
    %v1591 = vmul.f32 %v1566, %v1589
    %v1592 = vmul.f32 %v1547, %v1590
    %v1593 = vmul.f32 %v1548, %v1590
    %v1594 = vmul.f32 %v1549, %v1590
    %v1595 = vmul.f32 %v1550, %v1590
    %v1596 = vmul.f32 %v1551, %v1591
    %v1597 = vmul.f32 %v1552, %v1591
    %v1598 = vmul.f32 %v1553, %v1591
    %v1599 = vmul.f32 %v1554, %v1591
    %v1600 = vadd.f32 %v1592, %v1596
    %v1601 = vrot.slane %v1600, 4
    %v1602 = vadd.f32 %v1600, %v1601
    %v1603 = vrot.slane %v1602, 2
    %v1604 = vadd.f32 %v1602, %v1603
    %v1605 = vrot.slane %v1604, 1
    %v1606 = vadd.f32 %v1604, %v1605
    %v1607 = vadd.f32 %v1593, %v1597
    %v1608 = vrot.slane %v1607, 4
    %v1609 = vadd.f32 %v1607, %v1608
    %v1610 = vrot.slane %v1609, 2
    %v1611 = vadd.f32 %v1609, %v1610
    %v1612 = vrot.slane %v1611, 1
    %v1613 = vadd.f32 %v1611, %v1612
    %v1614 = vadd.f32 %v1594, %v1598
    %v1615 = vrot.slane %v1614, 4
    %v1616 = vadd.f32 %v1614, %v1615
    %v1617 = vrot.slane %v1616, 2
    %v1618 = vadd.f32 %v1616, %v1617
    %v1619 = vrot.slane %v1618, 1
    %v1620 = vadd.f32 %v1618, %v1619
    %v1621 = vadd.f32 %v1595, %v1599
    %v1622 = vrot.slane %v1621, 4
    %v1623 = vadd.f32 %v1621, %v1622
    %v1624 = vrot.slane %v1623, 2
    %v1625 = vadd.f32 %v1623, %v1624
    %v1626 = vrot.slane %v1625, 1
    %v1627 = vadd.f32 %v1625, %v1626
    %vm1628 = vcmask 1040384
    %v1629 = vsel %vm1628, %v1363, %v1444
    %v1630 = vsel %vm1628, %v1370, %v1451
    %v1631 = vsel %vm1628, %v1377, %v1458
    %v1632 = vsel %vm1628, %v1384, %v1465
    %vm1633 = vcmask 1041408
    %v1634 = vsel %vm1633, %v1629, %v1525
    %v1635 = vsel %vm1633, %v1630, %v1532
    %v1636 = vsel %vm1633, %v1631, %v1539
    %v1637 = vsel %vm1633, %v1632, %v1546
    %vm1638 = vcmask 1042432
    %v1639 = vsel %vm1638, %v1634, %v1606
    %v1640 = vsel %vm1638, %v1635, %v1613
    %v1641 = vsel %vm1638, %v1636, %v1620
    %v1642 = vsel %vm1638, %v1637, %v1627
    %v1643 = vadd.f32 %v1639, 0.0
    %v1644 = vadd.f32 %v1640, 0.0
    %v1645 = vadd.f32 %v1641, 0.0
    %v1646 = vadd.f32 %v1642, 0.0
    %vm1647 = vcmask 1043456
    %v1648 = vsel %vm1647, %v1643, -inf
    %v1649 = vsel %vm1647, %v1644, -inf
    %v1650 = vsel %vm1647, %v1645, -inf
    %v1651 = vsel %vm1647, %v1646, -inf
    %v1652 = vmax.f32 %v1648, %v1649
    %v1653 = vmax.f32 %v1650, %v1651
    %v1654 = vmax.f32 %v1652, %v1653
    %1655 = vmax.xlane.f32.xlu0 %v1654
    %v1656 = vpop.xlane.xlu0 %1655
    %v1657 = vsub.f32 %v1643, %v1656
    %v1658 = vsub.f32 %v1644, %v1656
    %v1659 = vsub.f32 %v1645, %v1656
    %v1660 = vsub.f32 %v1646, %v1656
    %v1661 = vmul.f32 %v1657, 1.442695
    %v1662 = vpow.pop %v1661
    %v1663 = vmul.f32 %v1658, 1.442695
    %v1664 = vpow.pop %v1663
    %v1665 = vmul.f32 %v1659, 1.442695
    %v1666 = vpow.pop %v1665
    %v1667 = vmul.f32 %v1660, 1.442695
    %v1668 = vpow.pop %v1667
    %v1669 = vsel %vm1647, %v1662, 0.0
    %v1670 = vsel %vm1647, %v1664, 0.0
    %v1671 = vadd.f32 %v1669, %v1670
    %v1672 = vsel %vm1647, %v1666, 0.0
    %v1673 = vadd.f32 %v1671, %v1672
    %v1674 = vsel %vm1647, %v1668, 0.0
    %v1675 = vadd.f32 %v1673, %v1674
    %1676 = vadd.xlane.f32.xlu0 %v1675
    %v1677 = vpop.xlane.xlu0 %1676
    %v1678 = vrcp.pop %v1677
    %v1679 = vmul.f32 %v1662, %v1678
    %v1680 = vmul.f32 %v1664, %v1678
    %v1681 = vmul.f32 %v1666, %v1678
    %v1682 = vmul.f32 %v1668, %v1678
    %v1683 = vperm.slane %v1679, 0
    %v1684 = vperm.slane %v1680, 0
    %v1685 = vperm.slane %v1681, 0
    %v1686 = vperm.slane %v1682, 0
    %v1687 = vmul.f32 %v1683, %v1304
    %v1688 = vmul.f32 %v1684, %v1305
    %v1689 = vmul.f32 %v1685, %v1306
    %v1690 = vmul.f32 %v1686, %v1307
    %v1691 = vmul.f32 %v1683, %v1308
    %v1692 = vmul.f32 %v1684, %v1309
    %v1693 = vmul.f32 %v1685, %v1310
    %v1694 = vmul.f32 %v1686, %v1311
    %v1695 = vadd.f32 %v1687, %v1688
    %v1696 = vadd.f32 %v1695, %v1689
    %v1697 = vadd.f32 %v1696, %v1690
    %1698 = vadd.xlane.f32.xlu0 %v1697
    %v1699 = vpop.xlane.xlu0 %1698
    %v1700 = vadd.f32 %v1691, %v1692
    %v1701 = vadd.f32 %v1700, %v1693
    %v1702 = vadd.f32 %v1701, %v1694
    %1703 = vadd.xlane.f32.xlu0 %v1702
    %v1704 = vpop.xlane.xlu0 %1703
    %v1705 = vmul.f32 %v1699, %v1699
    %v1706 = vmul.f32 %v1704, %v1704
    %v1707 = vadd.f32 %v1705, %v1706
    %v1708 = vrot.slane %v1707, 4
    %v1709 = vadd.f32 %v1707, %v1708
    %v1710 = vrot.slane %v1709, 2
    %v1711 = vadd.f32 %v1709, %v1710
    %v1712 = vrot.slane %v1711, 1
    %v1713 = vadd.f32 %v1711, %v1712
    %v1714 = vrsqrt.pop %v1713
    %v1715 = vmul.f32 %v1714, %v1713
    %v1716 = vmul.f32 %v1715, %v1714
    %v1717 = vmul.f32 0.5, %v1716
    %v1718 = vsub.f32 1.5, %v1717
    %v1719 = vmul.f32 %v1714, %v1718
    %vm1720 = vweird.f32 %v1713
    %vm1721 = vweird.f32 %v1714
    %vm1722 = vmor %vm1720, %vm1721
    %v1723 = vsel %vm1722, %v1714, %v1719
    %v1724 = vmul.f32 %v1713, %v1723
    %v1725 = vadd.f32 %v1713, 1.0
    %v1726 = vrcp.pop %v1725
    %v1727 = vmul.f32 %v1724, %v1726
    %v1728 = vmul.f32 %v1699, %v1727
    %v1729 = vmul.f32 %v1704, %v1727
    %v1730 = vmul.f32 %v1304, %v1728
    %v1731 = vmul.f32 %v1305, %v1728
    %v1732 = vmul.f32 %v1306, %v1728
    %v1733 = vmul.f32 %v1307, %v1728
    %v1734 = vmul.f32 %v1308, %v1729
    %v1735 = vmul.f32 %v1309, %v1729
    %v1736 = vmul.f32 %v1310, %v1729
    %v1737 = vmul.f32 %v1311, %v1729
    %v1738 = vadd.f32 %v1730, %v1734
    %v1739 = vrot.slane %v1738, 4
    %v1740 = vadd.f32 %v1738, %v1739
    %v1741 = vrot.slane %v1740, 2
    %v1742 = vadd.f32 %v1740, %v1741
    %v1743 = vrot.slane %v1742, 1
    %v1744 = vadd.f32 %v1742, %v1743
    %v1745 = vadd.f32 %v1731, %v1735
    %v1746 = vrot.slane %v1745, 4
    %v1747 = vadd.f32 %v1745, %v1746
    %v1748 = vrot.slane %v1747, 2
    %v1749 = vadd.f32 %v1747, %v1748
    %v1750 = vrot.slane %v1749, 1
    %v1751 = vadd.f32 %v1749, %v1750
    %v1752 = vadd.f32 %v1732, %v1736
    %v1753 = vrot.slane %v1752, 4
    %v1754 = vadd.f32 %v1752, %v1753
    %v1755 = vrot.slane %v1754, 2
    %v1756 = vadd.f32 %v1754, %v1755
    %v1757 = vrot.slane %v1756, 1
    %v1758 = vadd.f32 %v1756, %v1757
    %v1759 = vadd.f32 %v1733, %v1737
    %v1760 = vrot.slane %v1759, 4
    %v1761 = vadd.f32 %v1759, %v1760
    %v1762 = vrot.slane %v1761, 2
    %v1763 = vadd.f32 %v1761, %v1762
    %v1764 = vrot.slane %v1763, 1
    %v1765 = vadd.f32 %v1763, %v1764
    %v1766 = vperm.slane %v1679, 1
    %v1767 = vperm.slane %v1680, 1
    %v1768 = vperm.slane %v1681, 1
    %v1769 = vperm.slane %v1682, 1
    %v1770 = vmul.f32 %v1766, %v1385
    %v1771 = vmul.f32 %v1767, %v1386
    %v1772 = vmul.f32 %v1768, %v1387
    %v1773 = vmul.f32 %v1769, %v1388
    %v1774 = vmul.f32 %v1766, %v1389
    %v1775 = vmul.f32 %v1767, %v1390
    %v1776 = vmul.f32 %v1768, %v1391
    %v1777 = vmul.f32 %v1769, %v1392
    %v1778 = vadd.f32 %v1770, %v1771
    %v1779 = vadd.f32 %v1778, %v1772
    %v1780 = vadd.f32 %v1779, %v1773
    %1781 = vadd.xlane.f32.xlu0 %v1780
    %v1782 = vpop.xlane.xlu0 %1781
    %v1783 = vadd.f32 %v1774, %v1775
    %v1784 = vadd.f32 %v1783, %v1776
    %v1785 = vadd.f32 %v1784, %v1777
    %1786 = vadd.xlane.f32.xlu0 %v1785
    %v1787 = vpop.xlane.xlu0 %1786
    %v1788 = vmul.f32 %v1782, %v1782
    %v1789 = vmul.f32 %v1787, %v1787
    %v1790 = vadd.f32 %v1788, %v1789
    %v1791 = vrot.slane %v1790, 4
    %v1792 = vadd.f32 %v1790, %v1791
    %v1793 = vrot.slane %v1792, 2
    %v1794 = vadd.f32 %v1792, %v1793
    %v1795 = vrot.slane %v1794, 1
    %v1796 = vadd.f32 %v1794, %v1795
    %v1797 = vrsqrt.pop %v1796
    %v1798 = vmul.f32 %v1797, %v1796
    %v1799 = vmul.f32 %v1798, %v1797
    %v1800 = vmul.f32 0.5, %v1799
    %v1801 = vsub.f32 1.5, %v1800
    %v1802 = vmul.f32 %v1797, %v1801
    %vm1803 = vweird.f32 %v1796
    %vm1804 = vweird.f32 %v1797
    %vm1805 = vmor %vm1803, %vm1804
    %v1806 = vsel %vm1805, %v1797, %v1802
    %v1807 = vmul.f32 %v1796, %v1806
    %v1808 = vadd.f32 %v1796, 1.0
    %v1809 = vrcp.pop %v1808
    %v1810 = vmul.f32 %v1807, %v1809
    %v1811 = vmul.f32 %v1782, %v1810
    %v1812 = vmul.f32 %v1787, %v1810
    %v1813 = vmul.f32 %v1385, %v1811
    %v1814 = vmul.f32 %v1386, %v1811
    %v1815 = vmul.f32 %v1387, %v1811
    %v1816 = vmul.f32 %v1388, %v1811
    %v1817 = vmul.f32 %v1389, %v1812
    %v1818 = vmul.f32 %v1390, %v1812
    %v1819 = vmul.f32 %v1391, %v1812
    %v1820 = vmul.f32 %v1392, %v1812
    %v1821 = vadd.f32 %v1813, %v1817
    %v1822 = vrot.slane %v1821, 4
    %v1823 = vadd.f32 %v1821, %v1822
    %v1824 = vrot.slane %v1823, 2
    %v1825 = vadd.f32 %v1823, %v1824
    %v1826 = vrot.slane %v1825, 1
    %v1827 = vadd.f32 %v1825, %v1826
    %v1828 = vadd.f32 %v1814, %v1818
    %v1829 = vrot.slane %v1828, 4
    %v1830 = vadd.f32 %v1828, %v1829
    %v1831 = vrot.slane %v1830, 2
    %v1832 = vadd.f32 %v1830, %v1831
    %v1833 = vrot.slane %v1832, 1
    %v1834 = vadd.f32 %v1832, %v1833
    %v1835 = vadd.f32 %v1815, %v1819
    %v1836 = vrot.slane %v1835, 4
    %v1837 = vadd.f32 %v1835, %v1836
    %v1838 = vrot.slane %v1837, 2
    %v1839 = vadd.f32 %v1837, %v1838
    %v1840 = vrot.slane %v1839, 1
    %v1841 = vadd.f32 %v1839, %v1840
    %v1842 = vadd.f32 %v1816, %v1820
    %v1843 = vrot.slane %v1842, 4
    %v1844 = vadd.f32 %v1842, %v1843
    %v1845 = vrot.slane %v1844, 2
    %v1846 = vadd.f32 %v1844, %v1845
    %v1847 = vrot.slane %v1846, 1
    %v1848 = vadd.f32 %v1846, %v1847
    %v1849 = vperm.slane %v1679, 2
    %v1850 = vperm.slane %v1680, 2
    %v1851 = vperm.slane %v1681, 2
    %v1852 = vperm.slane %v1682, 2
    %v1853 = vmul.f32 %v1849, %v1466
    %v1854 = vmul.f32 %v1850, %v1467
    %v1855 = vmul.f32 %v1851, %v1468
    %v1856 = vmul.f32 %v1852, %v1469
    %v1857 = vmul.f32 %v1849, %v1470
    %v1858 = vmul.f32 %v1850, %v1471
    %v1859 = vmul.f32 %v1851, %v1472
    %v1860 = vmul.f32 %v1852, %v1473
    %v1861 = vadd.f32 %v1853, %v1854
    %v1862 = vadd.f32 %v1861, %v1855
    %v1863 = vadd.f32 %v1862, %v1856
    %1864 = vadd.xlane.f32.xlu0 %v1863
    %v1865 = vpop.xlane.xlu0 %1864
    %v1866 = vadd.f32 %v1857, %v1858
    %v1867 = vadd.f32 %v1866, %v1859
    %v1868 = vadd.f32 %v1867, %v1860
    %1869 = vadd.xlane.f32.xlu0 %v1868
    %v1870 = vpop.xlane.xlu0 %1869
    %v1871 = vmul.f32 %v1865, %v1865
    %v1872 = vmul.f32 %v1870, %v1870
    %v1873 = vadd.f32 %v1871, %v1872
    %v1874 = vrot.slane %v1873, 4
    %v1875 = vadd.f32 %v1873, %v1874
    %v1876 = vrot.slane %v1875, 2
    %v1877 = vadd.f32 %v1875, %v1876
    %v1878 = vrot.slane %v1877, 1
    %v1879 = vadd.f32 %v1877, %v1878
    %v1880 = vrsqrt.pop %v1879
    %v1881 = vmul.f32 %v1880, %v1879
    %v1882 = vmul.f32 %v1881, %v1880
    %v1883 = vmul.f32 0.5, %v1882
    %v1884 = vsub.f32 1.5, %v1883
    %v1885 = vmul.f32 %v1880, %v1884
    %vm1886 = vweird.f32 %v1879
    %vm1887 = vweird.f32 %v1880
    %vm1888 = vmor %vm1886, %vm1887
    %v1889 = vsel %vm1888, %v1880, %v1885
    %v1890 = vmul.f32 %v1879, %v1889
    %v1891 = vadd.f32 %v1879, 1.0
    %v1892 = vrcp.pop %v1891
    %v1893 = vmul.f32 %v1890, %v1892
    %v1894 = vmul.f32 %v1865, %v1893
    %v1895 = vmul.f32 %v1870, %v1893
    %v1896 = vmul.f32 %v1466, %v1894
    %v1897 = vmul.f32 %v1467, %v1894
    %v1898 = vmul.f32 %v1468, %v1894
    %v1899 = vmul.f32 %v1469, %v1894
    %v1900 = vmul.f32 %v1470, %v1895
    %v1901 = vmul.f32 %v1471, %v1895
    %v1902 = vmul.f32 %v1472, %v1895
    %v1903 = vmul.f32 %v1473, %v1895
    %v1904 = vadd.f32 %v1896, %v1900
    %v1905 = vrot.slane %v1904, 4
    %v1906 = vadd.f32 %v1904, %v1905
    %v1907 = vrot.slane %v1906, 2
    %v1908 = vadd.f32 %v1906, %v1907
    %v1909 = vrot.slane %v1908, 1
    %v1910 = vadd.f32 %v1908, %v1909
    %v1911 = vadd.f32 %v1897, %v1901
    %v1912 = vrot.slane %v1911, 4
    %v1913 = vadd.f32 %v1911, %v1912
    %v1914 = vrot.slane %v1913, 2
    %v1915 = vadd.f32 %v1913, %v1914
    %v1916 = vrot.slane %v1915, 1
    %v1917 = vadd.f32 %v1915, %v1916
    %v1918 = vadd.f32 %v1898, %v1902
    %v1919 = vrot.slane %v1918, 4
    %v1920 = vadd.f32 %v1918, %v1919
    %v1921 = vrot.slane %v1920, 2
    %v1922 = vadd.f32 %v1920, %v1921
    %v1923 = vrot.slane %v1922, 1
    %v1924 = vadd.f32 %v1922, %v1923
    %v1925 = vadd.f32 %v1899, %v1903
    %v1926 = vrot.slane %v1925, 4
    %v1927 = vadd.f32 %v1925, %v1926
    %v1928 = vrot.slane %v1927, 2
    %v1929 = vadd.f32 %v1927, %v1928
    %v1930 = vrot.slane %v1929, 1
    %v1931 = vadd.f32 %v1929, %v1930
    %v1932 = vperm.slane %v1679, 3
    %v1933 = vperm.slane %v1680, 3
    %v1934 = vperm.slane %v1681, 3
    %v1935 = vperm.slane %v1682, 3
    %v1936 = vmul.f32 %v1932, %v1547
    %v1937 = vmul.f32 %v1933, %v1548
    %v1938 = vmul.f32 %v1934, %v1549
    %v1939 = vmul.f32 %v1935, %v1550
    %v1940 = vmul.f32 %v1932, %v1551
    %v1941 = vmul.f32 %v1933, %v1552
    %v1942 = vmul.f32 %v1934, %v1553
    %v1943 = vmul.f32 %v1935, %v1554
    %v1944 = vadd.f32 %v1936, %v1937
    %v1945 = vadd.f32 %v1944, %v1938
    %v1946 = vadd.f32 %v1945, %v1939
    %1947 = vadd.xlane.f32.xlu0 %v1946
    %v1948 = vpop.xlane.xlu0 %1947
    %v1949 = vadd.f32 %v1940, %v1941
    %v1950 = vadd.f32 %v1949, %v1942
    %v1951 = vadd.f32 %v1950, %v1943
    %1952 = vadd.xlane.f32.xlu0 %v1951
    %v1953 = vpop.xlane.xlu0 %1952
    %v1954 = vmul.f32 %v1948, %v1948
    %v1955 = vmul.f32 %v1953, %v1953
    %v1956 = vadd.f32 %v1954, %v1955
    %v1957 = vrot.slane %v1956, 4
    %v1958 = vadd.f32 %v1956, %v1957
    %v1959 = vrot.slane %v1958, 2
    %v1960 = vadd.f32 %v1958, %v1959
    %v1961 = vrot.slane %v1960, 1
    %v1962 = vadd.f32 %v1960, %v1961
    %v1963 = vrsqrt.pop %v1962
    %v1964 = vmul.f32 %v1963, %v1962
    %v1965 = vmul.f32 %v1964, %v1963
    %v1966 = vmul.f32 0.5, %v1965
    %v1967 = vsub.f32 1.5, %v1966
    %v1968 = vmul.f32 %v1963, %v1967
    %vm1969 = vweird.f32 %v1962
    %vm1970 = vweird.f32 %v1963
    %vm1971 = vmor %vm1969, %vm1970
    %v1972 = vsel %vm1971, %v1963, %v1968
    %v1973 = vmul.f32 %v1962, %v1972
    %v1974 = vadd.f32 %v1962, 1.0
    %v1975 = vrcp.pop %v1974
    %v1976 = vmul.f32 %v1973, %v1975
    %v1977 = vmul.f32 %v1948, %v1976
    %v1978 = vmul.f32 %v1953, %v1976
    %v1979 = vmul.f32 %v1547, %v1977
    %v1980 = vmul.f32 %v1548, %v1977
    %v1981 = vmul.f32 %v1549, %v1977
    %v1982 = vmul.f32 %v1550, %v1977
    %v1983 = vmul.f32 %v1551, %v1978
    %v1984 = vmul.f32 %v1552, %v1978
    %v1985 = vmul.f32 %v1553, %v1978
    %v1986 = vmul.f32 %v1554, %v1978
    %v1987 = vadd.f32 %v1979, %v1983
    %v1988 = vrot.slane %v1987, 4
    %v1989 = vadd.f32 %v1987, %v1988
    %v1990 = vrot.slane %v1989, 2
    %v1991 = vadd.f32 %v1989, %v1990
    %v1992 = vrot.slane %v1991, 1
    %v1993 = vadd.f32 %v1991, %v1992
    %v1994 = vadd.f32 %v1980, %v1984
    %v1995 = vrot.slane %v1994, 4
    %v1996 = vadd.f32 %v1994, %v1995
    %v1997 = vrot.slane %v1996, 2
    %v1998 = vadd.f32 %v1996, %v1997
    %v1999 = vrot.slane %v1998, 1
    %v2000 = vadd.f32 %v1998, %v1999
    %v2001 = vadd.f32 %v1981, %v1985
    %v2002 = vrot.slane %v2001, 4
    %v2003 = vadd.f32 %v2001, %v2002
    %v2004 = vrot.slane %v2003, 2
    %v2005 = vadd.f32 %v2003, %v2004
    %v2006 = vrot.slane %v2005, 1
    %v2007 = vadd.f32 %v2005, %v2006
    %v2008 = vadd.f32 %v1982, %v1986
    %v2009 = vrot.slane %v2008, 4
    %v2010 = vadd.f32 %v2008, %v2009
    %v2011 = vrot.slane %v2010, 2
    %v2012 = vadd.f32 %v2010, %v2011
    %v2013 = vrot.slane %v2012, 1
    %v2014 = vadd.f32 %v2012, %v2013
    %v2015 = vsel %vm1628, %v1744, %v1827
    %v2016 = vsel %vm1628, %v1751, %v1834
    %v2017 = vsel %vm1628, %v1758, %v1841
    %v2018 = vsel %vm1628, %v1765, %v1848
    %v2019 = vsel %vm1633, %v2015, %v1910
    %v2020 = vsel %vm1633, %v2016, %v1917
    %v2021 = vsel %vm1633, %v2017, %v1924
    %v2022 = vsel %vm1633, %v2018, %v1931
    %v2023 = vsel %vm1638, %v2019, %v1993
    %v2024 = vsel %vm1638, %v2020, %v2000
    %v2025 = vsel %vm1638, %v2021, %v2007
    %v2026 = vsel %vm1638, %v2022, %v2014
    %v2027 = vadd.f32 %v1643, %v2023
    %v2028 = vadd.f32 %v1644, %v2024
    %v2029 = vadd.f32 %v1645, %v2025
    %v2030 = vadd.f32 %v1646, %v2026
    %v2031 = vsel %vm1647, %v2027, -inf
    %v2032 = vsel %vm1647, %v2028, -inf
    %v2033 = vsel %vm1647, %v2029, -inf
    %v2034 = vsel %vm1647, %v2030, -inf
    %v2035 = vmax.f32 %v2031, %v2032
    %v2036 = vmax.f32 %v2033, %v2034
    %v2037 = vmax.f32 %v2035, %v2036
    %2038 = vmax.xlane.f32.xlu0 %v2037
    %v2039 = vpop.xlane.xlu0 %2038
    %v2040 = vsub.f32 %v2027, %v2039
    %v2041 = vsub.f32 %v2028, %v2039
    %v2042 = vsub.f32 %v2029, %v2039
    %v2043 = vsub.f32 %v2030, %v2039
    %v2044 = vmul.f32 %v2040, 1.442695
    %v2045 = vpow.pop %v2044
    %v2046 = vmul.f32 %v2041, 1.442695
    %v2047 = vpow.pop %v2046
    %v2048 = vmul.f32 %v2042, 1.442695
    %v2049 = vpow.pop %v2048
    %v2050 = vmul.f32 %v2043, 1.442695
    %v2051 = vpow.pop %v2050
    %v2052 = vsel %vm1647, %v2045, 0.0
    %v2053 = vsel %vm1647, %v2047, 0.0
    %v2054 = vadd.f32 %v2052, %v2053
    %v2055 = vsel %vm1647, %v2049, 0.0
    %v2056 = vadd.f32 %v2054, %v2055
    %v2057 = vsel %vm1647, %v2051, 0.0
    %v2058 = vadd.f32 %v2056, %v2057
    %2059 = vadd.xlane.f32.xlu0 %v2058
    %v2060 = vpop.xlane.xlu0 %2059
    %v2061 = vrcp.pop %v2060
    %v2062 = vmul.f32 %v2045, %v2061
    %v2063 = vmul.f32 %v2047, %v2061
    %v2064 = vmul.f32 %v2049, %v2061
    %v2065 = vmul.f32 %v2051, %v2061
    %v2066 = vperm.slane %v2062, 0
    %v2067 = vperm.slane %v2063, 0
    %v2068 = vperm.slane %v2064, 0
    %v2069 = vperm.slane %v2065, 0
    %v2070 = vmul.f32 %v2066, %v1304
    %v2071 = vmul.f32 %v2067, %v1305
    %v2072 = vmul.f32 %v2068, %v1306
    %v2073 = vmul.f32 %v2069, %v1307
    %v2074 = vmul.f32 %v2066, %v1308
    %v2075 = vmul.f32 %v2067, %v1309
    %v2076 = vmul.f32 %v2068, %v1310
    %v2077 = vmul.f32 %v2069, %v1311
    %v2078 = vadd.f32 %v2070, %v2071
    %v2079 = vadd.f32 %v2078, %v2072
    %v2080 = vadd.f32 %v2079, %v2073
    %2081 = vadd.xlane.f32.xlu0 %v2080
    %v2082 = vpop.xlane.xlu0 %2081
    %v2083 = vadd.f32 %v2074, %v2075
    %v2084 = vadd.f32 %v2083, %v2076
    %v2085 = vadd.f32 %v2084, %v2077
    %2086 = vadd.xlane.f32.xlu0 %v2085
    %v2087 = vpop.xlane.xlu0 %2086
    %v2088 = vmul.f32 %v2082, %v2082
    %v2089 = vmul.f32 %v2087, %v2087
    %v2090 = vadd.f32 %v2088, %v2089
    %v2091 = vrot.slane %v2090, 4
    %v2092 = vadd.f32 %v2090, %v2091
    %v2093 = vrot.slane %v2092, 2
    %v2094 = vadd.f32 %v2092, %v2093
    %v2095 = vrot.slane %v2094, 1
    %v2096 = vadd.f32 %v2094, %v2095
    %v2097 = vrsqrt.pop %v2096
    %v2098 = vmul.f32 %v2097, %v2096
    %v2099 = vmul.f32 %v2098, %v2097
    %v2100 = vmul.f32 0.5, %v2099
    %v2101 = vsub.f32 1.5, %v2100
    %v2102 = vmul.f32 %v2097, %v2101
    %vm2103 = vweird.f32 %v2096
    %vm2104 = vweird.f32 %v2097
    %vm2105 = vmor %vm2103, %vm2104
    %v2106 = vsel %vm2105, %v2097, %v2102
    %v2107 = vmul.f32 %v2096, %v2106
    %v2108 = vadd.f32 %v2096, 1.0
    %v2109 = vrcp.pop %v2108
    %v2110 = vmul.f32 %v2107, %v2109
    %v2111 = vmul.f32 %v2082, %v2110
    %v2112 = vmul.f32 %v2087, %v2110
    %v2113 = vmul.f32 %v2111, %v2111
    %v2114 = vmul.f32 %v2112, %v2112
    %v2115 = vadd.f32 %v2113, %v2114
    %v2116 = vrot.slane %v2115, 4
    %v2117 = vadd.f32 %v2115, %v2116
    %v2118 = vrot.slane %v2117, 2
    %v2119 = vadd.f32 %v2117, %v2118
    %v2120 = vrot.slane %v2119, 1
    %v2121 = vadd.f32 %v2119, %v2120
    %v2122 = vrsqrt.pop %v2121
    %v2123 = vmul.f32 %v2122, %v2121
    %v2124 = vmul.f32 %v2123, %v2122
    %v2125 = vmul.f32 0.5, %v2124
    %v2126 = vsub.f32 1.5, %v2125
    %v2127 = vmul.f32 %v2122, %v2126
    %v2128 = vmul.f32 %v2121, %v2127
    %vm2129 = vcmp.eq.f32.partialorder %v2121, inf
    %v2130 = vsel %vm2129, %v2121, %v2128
    %vm2131 = vcmp.eq.f32.partialorder %v2121, 0.0
    %v2132 = vand.u32 %v2121, 2147483648
    %v2133 = vsel %vm2131, %v2132, %v2130
    %v2134 = vperm.slane %v2062, 1
    %v2135 = vperm.slane %v2063, 1
    %v2136 = vperm.slane %v2064, 1
    %v2137 = vperm.slane %v2065, 1
    %v2138 = vmul.f32 %v2134, %v1385
    %v2139 = vmul.f32 %v2135, %v1386
    %v2140 = vmul.f32 %v2136, %v1387
    %v2141 = vmul.f32 %v2137, %v1388
    %v2142 = vmul.f32 %v2134, %v1389
    %v2143 = vmul.f32 %v2135, %v1390
    %v2144 = vmul.f32 %v2136, %v1391
    %v2145 = vmul.f32 %v2137, %v1392
    %v2146 = vadd.f32 %v2138, %v2139
    %v2147 = vadd.f32 %v2146, %v2140
    %v2148 = vadd.f32 %v2147, %v2141
    %2149 = vadd.xlane.f32.xlu0 %v2148
    %v2150 = vpop.xlane.xlu0 %2149
    %v2151 = vadd.f32 %v2142, %v2143
    %v2152 = vadd.f32 %v2151, %v2144
    %v2153 = vadd.f32 %v2152, %v2145
    %2154 = vadd.xlane.f32.xlu0 %v2153
    %v2155 = vpop.xlane.xlu0 %2154
    %v2156 = vmul.f32 %v2150, %v2150
    %v2157 = vmul.f32 %v2155, %v2155
    %v2158 = vadd.f32 %v2156, %v2157
    %v2159 = vrot.slane %v2158, 4
    %v2160 = vadd.f32 %v2158, %v2159
    %v2161 = vrot.slane %v2160, 2
    %v2162 = vadd.f32 %v2160, %v2161
    %v2163 = vrot.slane %v2162, 1
    %v2164 = vadd.f32 %v2162, %v2163
    %v2165 = vrsqrt.pop %v2164
    %v2166 = vmul.f32 %v2165, %v2164
    %v2167 = vmul.f32 %v2166, %v2165
    %v2168 = vmul.f32 0.5, %v2167
    %v2169 = vsub.f32 1.5, %v2168
    %v2170 = vmul.f32 %v2165, %v2169
    %vm2171 = vweird.f32 %v2164
    %vm2172 = vweird.f32 %v2165
    %vm2173 = vmor %vm2171, %vm2172
    %v2174 = vsel %vm2173, %v2165, %v2170
    %v2175 = vmul.f32 %v2164, %v2174
    %v2176 = vadd.f32 %v2164, 1.0
    %v2177 = vrcp.pop %v2176
    %v2178 = vmul.f32 %v2175, %v2177
    %v2179 = vmul.f32 %v2150, %v2178
    %v2180 = vmul.f32 %v2155, %v2178
    %v2181 = vmul.f32 %v2179, %v2179
    %v2182 = vmul.f32 %v2180, %v2180
    %v2183 = vadd.f32 %v2181, %v2182
    %v2184 = vrot.slane %v2183, 4
    %v2185 = vadd.f32 %v2183, %v2184
    %v2186 = vrot.slane %v2185, 2
    %v2187 = vadd.f32 %v2185, %v2186
    %v2188 = vrot.slane %v2187, 1
    %v2189 = vadd.f32 %v2187, %v2188
    %v2190 = vrsqrt.pop %v2189
    %v2191 = vmul.f32 %v2190, %v2189
    %v2192 = vmul.f32 %v2191, %v2190
    %v2193 = vmul.f32 0.5, %v2192
    %v2194 = vsub.f32 1.5, %v2193
    %v2195 = vmul.f32 %v2190, %v2194
    %v2196 = vmul.f32 %v2189, %v2195
    %vm2197 = vcmp.eq.f32.partialorder %v2189, inf
    %v2198 = vsel %vm2197, %v2189, %v2196
    %vm2199 = vcmp.eq.f32.partialorder %v2189, 0.0
    %v2200 = vand.u32 %v2189, 2147483648
    %v2201 = vsel %vm2199, %v2200, %v2198
    %v2202 = vperm.slane %v2062, 2
    %v2203 = vperm.slane %v2063, 2
    %v2204 = vperm.slane %v2064, 2
    %v2205 = vperm.slane %v2065, 2
    %v2206 = vmul.f32 %v2202, %v1466
    %v2207 = vmul.f32 %v2203, %v1467
    %v2208 = vmul.f32 %v2204, %v1468
    %v2209 = vmul.f32 %v2205, %v1469
    %v2210 = vmul.f32 %v2202, %v1470
    %v2211 = vmul.f32 %v2203, %v1471
    %v2212 = vmul.f32 %v2204, %v1472
    %v2213 = vmul.f32 %v2205, %v1473
    %v2214 = vadd.f32 %v2206, %v2207
    %v2215 = vadd.f32 %v2214, %v2208
    %v2216 = vadd.f32 %v2215, %v2209
    %2217 = vadd.xlane.f32.xlu0 %v2216
    %v2218 = vpop.xlane.xlu0 %2217
    %v2219 = vadd.f32 %v2210, %v2211
    %v2220 = vadd.f32 %v2219, %v2212
    %v2221 = vadd.f32 %v2220, %v2213
    %2222 = vadd.xlane.f32.xlu0 %v2221
    %v2223 = vpop.xlane.xlu0 %2222
    %v2224 = vmul.f32 %v2218, %v2218
    %v2225 = vmul.f32 %v2223, %v2223
    %v2226 = vadd.f32 %v2224, %v2225
    %v2227 = vrot.slane %v2226, 4
    %v2228 = vadd.f32 %v2226, %v2227
    %v2229 = vrot.slane %v2228, 2
    %v2230 = vadd.f32 %v2228, %v2229
    %v2231 = vrot.slane %v2230, 1
    %v2232 = vadd.f32 %v2230, %v2231
    %v2233 = vrsqrt.pop %v2232
    %v2234 = vmul.f32 %v2233, %v2232
    %v2235 = vmul.f32 %v2234, %v2233
    %v2236 = vmul.f32 0.5, %v2235
    %v2237 = vsub.f32 1.5, %v2236
    %v2238 = vmul.f32 %v2233, %v2237
    %vm2239 = vweird.f32 %v2232
    %vm2240 = vweird.f32 %v2233
    %vm2241 = vmor %vm2239, %vm2240
    %v2242 = vsel %vm2241, %v2233, %v2238
    %v2243 = vmul.f32 %v2232, %v2242
    %v2244 = vadd.f32 %v2232, 1.0
    %v2245 = vrcp.pop %v2244
    %v2246 = vmul.f32 %v2243, %v2245
    %v2247 = vmul.f32 %v2218, %v2246
    %v2248 = vmul.f32 %v2223, %v2246
    %v2249 = vmul.f32 %v2247, %v2247
    %v2250 = vmul.f32 %v2248, %v2248
    %v2251 = vadd.f32 %v2249, %v2250
    %v2252 = vrot.slane %v2251, 4
    %v2253 = vadd.f32 %v2251, %v2252
    %v2254 = vrot.slane %v2253, 2
    %v2255 = vadd.f32 %v2253, %v2254
    %v2256 = vrot.slane %v2255, 1
    %v2257 = vadd.f32 %v2255, %v2256
    %v2258 = vrsqrt.pop %v2257
    %v2259 = vmul.f32 %v2258, %v2257
    %v2260 = vmul.f32 %v2259, %v2258
    %v2261 = vmul.f32 0.5, %v2260
    %v2262 = vsub.f32 1.5, %v2261
    %v2263 = vmul.f32 %v2258, %v2262
    %v2264 = vmul.f32 %v2257, %v2263
    %vm2265 = vcmp.eq.f32.partialorder %v2257, inf
    %v2266 = vsel %vm2265, %v2257, %v2264
    %vm2267 = vcmp.eq.f32.partialorder %v2257, 0.0
    %v2268 = vand.u32 %v2257, 2147483648
    %v2269 = vsel %vm2267, %v2268, %v2266
    %v2270 = vperm.slane %v2062, 3
    %v2271 = vperm.slane %v2063, 3
    %v2272 = vperm.slane %v2064, 3
    %v2273 = vperm.slane %v2065, 3
    %v2274 = vmul.f32 %v2270, %v1547
    %v2275 = vmul.f32 %v2271, %v1548
    %v2276 = vmul.f32 %v2272, %v1549
    %v2277 = vmul.f32 %v2273, %v1550
    %v2278 = vmul.f32 %v2270, %v1551
    %v2279 = vmul.f32 %v2271, %v1552
    %v2280 = vmul.f32 %v2272, %v1553
    %v2281 = vmul.f32 %v2273, %v1554
    %v2282 = vadd.f32 %v2274, %v2275
    %v2283 = vadd.f32 %v2282, %v2276
    %v2284 = vadd.f32 %v2283, %v2277
    %2285 = vadd.xlane.f32.xlu0 %v2284
    %v2286 = vpop.xlane.xlu0 %2285
    %v2287 = vadd.f32 %v2278, %v2279
    %v2288 = vadd.f32 %v2287, %v2280
    %v2289 = vadd.f32 %v2288, %v2281
    %2290 = vadd.xlane.f32.xlu0 %v2289
    %v2291 = vpop.xlane.xlu0 %2290
    %v2292 = vmul.f32 %v2286, %v2286
    %v2293 = vmul.f32 %v2291, %v2291
    %v2294 = vadd.f32 %v2292, %v2293
    %v2295 = vrot.slane %v2294, 4
    %v2296 = vadd.f32 %v2294, %v2295
    %v2297 = vrot.slane %v2296, 2
    %v2298 = vadd.f32 %v2296, %v2297
    %v2299 = vrot.slane %v2298, 1
    %v2300 = vadd.f32 %v2298, %v2299
    %v2301 = vrsqrt.pop %v2300
    %v2302 = vmul.f32 %v2301, %v2300
    %v2303 = vmul.f32 %v2302, %v2301
    %v2304 = vmul.f32 0.5, %v2303
    %v2305 = vsub.f32 1.5, %v2304
    %v2306 = vmul.f32 %v2301, %v2305
    %vm2307 = vweird.f32 %v2300
    %vm2308 = vweird.f32 %v2301
    %vm2309 = vmor %vm2307, %vm2308
    %v2310 = vsel %vm2309, %v2301, %v2306
    %v2311 = vmul.f32 %v2300, %v2310
    %v2312 = vadd.f32 %v2300, 1.0
    %v2313 = vrcp.pop %v2312
    %v2314 = vmul.f32 %v2311, %v2313
    %v2315 = vmul.f32 %v2286, %v2314
    %v2316 = vmul.f32 %v2291, %v2314
    %v2317 = vmul.f32 %v2315, %v2315
    %v2318 = vmul.f32 %v2316, %v2316
    %v2319 = vadd.f32 %v2317, %v2318
    %v2320 = vrot.slane %v2319, 4
    %v2321 = vadd.f32 %v2319, %v2320
    %v2322 = vrot.slane %v2321, 2
    %v2323 = vadd.f32 %v2321, %v2322
    %v2324 = vrot.slane %v2323, 1
    %v2325 = vadd.f32 %v2323, %v2324
    %v2326 = vrsqrt.pop %v2325
    %v2327 = vmul.f32 %v2326, %v2325
    %v2328 = vmul.f32 %v2327, %v2326
    %v2329 = vmul.f32 0.5, %v2328
    %v2330 = vsub.f32 1.5, %v2329
    %v2331 = vmul.f32 %v2326, %v2330
    %v2332 = vmul.f32 %v2325, %v2331
    %vm2333 = vcmp.eq.f32.partialorder %v2325, inf
    %v2334 = vsel %vm2333, %v2325, %v2332
    %vm2335 = vcmp.eq.f32.partialorder %v2325, 0.0
    %v2336 = vand.u32 %v2325, 2147483648
    %v2337 = vsel %vm2335, %v2336, %v2334
    %vm2338 = vcmask 7168
    %v2339 = vsel %vm2338, %v2133, %v2269
    %v2340 = vsel %vm2338, %v2201, %v2337
    %v2342 = vrot.slane %v2340, 7
    %v2344 = vsel %vm1628, %v2339, %v2342
    %vm2345 = vcmask 9216
    %v2346 = vsel %vm2345, %v2344, -inf
    %2347 = vmax.xlane.f32.xlu0 %v2346
    %v2348 = vpop.xlane.xlu0 %2347
    %v2349 = vsub.f32 %v2344, %v2348
    %v2350 = vmul.f32 %v2349, 1.442695
    %v2351 = vpow.pop %v2350
    %v2352 = vsel %vm2345, %v2351, 0.0
    %2353 = vadd.xlane.f32.xlu0 %v2352
    %v2354 = vpop.xlane.xlu0 %2353
    %v2355 = vrcp.pop %v2354
    %v2356 = vmul.f32 %v2354, %v2355
    %v2357 = vsub.f32 1.0, %v2356
    %v2358 = vmul.f32 %v2355, %v2357
    %v2359 = vadd.f32 %v2355, %v2358
    %vm2360 = vweird.f32 %v2354
    %vm2361 = vweird.f32 %v2355
    %vm2362 = vmor %vm2360, %vm2361
    %v2363 = vsel %vm2362, %v2355, %v2359
    %v2364 = vand.u32 2147483647, %v2354
    %vm2365 = vcmp.eq.f32.partialorder %v2364, 8.507059e+37
    %v2366 = vand.u32 %v2354, 2147483648
    %v2367 = vor.u32 1.1754944e-38, %v2366
    %v2368 = vsel %vm2365, %v2367, %v2363
    %v2369 = vmul.f32 %v2351, %v2368
    %2370 = vst.msk [vmem:[#allocation6] sm:$0x3] %vm2345, %v2369
    // Predicated region
    $region22: #{capsule_net_forward.1} parent=1 // pred_check
      _
    $region23: #{capsule_net_forward.1} parent=1 // pred_check_branch
      %2372 = sbr.rel (0) target = $region25
    $region24: #{capsule_net_forward.1} parent=1 // pred_region
      %2374 = vsyncadd [#allocation5], 0
      %s2376 = sshll.u32 [#allocation6], 4
      %s2377 = int_to_ptr.vmem [resolvable:$true] %s2376
      %s2378 = sshll.u32 %s4, 4
      %s2379 = int_to_ptr.hbm [resolvable:$true] %s2378
      %2381 = dma.vmem_to_hbm [thread:$0]  %s2377, 32, %s2379, [#allocation5]
    $region25: #{capsule_net_forward.1} parent=1 // pred_fallthru
      _
    // Predicated region
    $region26: #{capsule_net_forward.1} parent=1 // pred_check
      _
    $region27: #{capsule_net_forward.1} parent=1 // pred_check_branch
      %2383 = sbr.rel (0) target = $region29
    $region28: #{capsule_net_forward.1} parent=1 // pred_region
      %2385 = dma.done [#allocation5], 32
    $region29: #{capsule_net_forward.1} parent=1 // pred_fallthru
      _
    %2386 = vsyncpa [#allocation4], 1
    %2387 = vsyncpa [#allocation5], 1

</llo_original>
